<compile_context>
chip_gen: v6e
topology: v6e:2x2x1
jax: 0.10.0
libtpu: 0.0.40
codegen_flags: <defaults>
</compile_context>

<pallas_src>
import functools
import math

import jax
import jax.numpy as jnp
import numpy as np
from jax.experimental import pallas as pl
from jax.experimental.pallas import tpu as pltpu


# ----------------------------------------------------------------------------
# In-kernel helpers
# ----------------------------------------------------------------------------
def _bspline_bases_flat(x, in_features, W, spline_order, h):
    """x: (TB, in_features) f32 -> (TB, in_features*W) flat B-spline bases.

    Column j = i*W + c holds basis c of feature i. Only columns with
    c < W - spline_order are valid; the rest carry finite garbage that is
    matched by zero rows in the (pre-padded) spline weight matrix.
    """
    flat = in_features * W
    fW = float(W)

    # Per-column feature index i = j // W and knot index c = j % W, derived in
    # f32 (the +0.5 margin makes floor immune to any 1-ulp division error).
    j_f = jax.lax.broadcasted_iota(jnp.int32, (1, flat), 1).astype(jnp.float32)
    i_f = jnp.floor((j_f + 0.5) / fW)                # (1, flat) feature index
    c_f = j_f - fW * i_f                             # (1, flat) knot index

    # x replicated to the flat layout via a tiny constant 0/1 matrix on the
    # MXU: x_rep[:, i*W + c] = x[:, i]
    row_f = jax.lax.broadcasted_iota(
        jnp.int32, (in_features, flat), 0).astype(jnp.float32)
    expand = jnp.where(row_f == i_f, 1.0, 0.0).astype(jnp.float32)
    x_rep = jnp.dot(x, expand, preferred_element_type=jnp.float32)

    # Uniform knots over [-1, 1]: knot[c] = (c - spline_order)*h - 1
    knot_lo = (c_f - spline_order) * h - 1.0          # grid[c]
    knot_hi = (c_f + 1.0 - spline_order) * h - 1.0    # grid[c+1]

    # order-0 bases: indicator of the knot interval
    b = jnp.where((x_rep >= knot_lo) & (x_rep < knot_hi),
                  1.0, 0.0).astype(jnp.float32)

    # Cox-de Boor recursion. Uniform grid => every denominator is k*h, folded
    # into compile-time reciprocals (pure VPU multiplies, no divides).
    left_num = x_rep - knot_lo                        # k-independent numerator
    shift_mask = jnp.where(c_f < float(W - 1), 1.0, 0.0)   # no cross-feature pull
    zeros_col = jnp.zeros((x.shape[0], 1), jnp.float32)
    for k in range(1, spline_order + 1):
        inv = 1.0 / (k * h)
        # grid[c+k+1], clamped to the last knot on the (masked) tail columns
        knot_rt = (jnp.minimum(c_f + (k + 1.0), fW) - spline_order) * h - 1.0
        b_shift = jnp.concatenate([b[:, 1:], zeros_col], axis=1) * shift_mask
        b = (left_num * inv) * b + ((knot_rt - x_rep) * inv) * b_shift
    return b


def _kbasic_qhead_kernel(x_ref, *refs, dims, W, spline_order, h):
    """Fused forward over all KANLinear layers for one batch tile.

    refs = (base_w_t_0, spline_w_0, base_w_t_1, spline_w_1, ..., out_ref)
      base_w_t_l:  (in_l, out_l)
      spline_w_l:  (in_l*W, out_l)   rows with c >= grid_size+spline_order are 0
    """
    out_ref = refs[-1]
    w_refs = refs[:-1]
    act = x_ref[...].astype(jnp.float32)
    for layer in range(len(dims) - 1):
        in_f = dims[layer]
        base_w = w_refs[2 * layer][...]
        spline_w = w_refs[2 * layer + 1][...]
        bases = _bspline_bases_flat(act, in_f, W, spline_order, h)
        silu = act * jax.nn.sigmoid(act)
        act = (jnp.dot(silu, base_w, preferred_element_type=jnp.float32)
               + jnp.dot(bases, spline_w, preferred_element_type=jnp.float32))
    out_ref[...] = act.astype(out_ref.dtype)


# ----------------------------------------------------------------------------
# Wrapper
# ----------------------------------------------------------------------------
def _round_up(v, m):
    return ((v + m - 1) // m) * m


def _choose_batch_tile(batch):
    bp = _round_up(max(batch, 1), 8)
    if bp < 16:
        return bp
    if bp <= 512:
        # split so the grid has >= 2 steps (both TensorCores on v7x megacore)
        return _round_up(bp // 2, 8)
    return 256


def prepare_params(params, spline_order, grid_size):
    """One-time weight prep (NOT per forward call):
    transpose base weights, fold spline_scaler into spline_weight, zero-pad
    the basis axis from C=grid_size+spline_order to W=grid_size+2*spline_order,
    and flatten to (in*W, out)."""
    W = grid_size + 2 * spline_order
    C = grid_size + spline_order
    h = 2.0 / grid_size                       # grid_range = [-1, 1]
    dims = []
    flat_weights = []
    out_f = None
    for p in params:
        out_f, in_f = p['base_w'].shape
        dims.append(in_f)
        base_w_t = jnp.asarray(p['base_w'].T, jnp.float32)              # (in, out)
        scaled = p['spline_w'] * p['spline_scaler'][..., None]          # (out, in, C)
        padded = jnp.pad(scaled, ((0, 0), (0, 0), (0, W - C)))          # (out, in, W)
        spline_flat = jnp.asarray(padded.reshape(out_f, in_f * W).T,
                                  jnp.float32)                          # (in*W, out)
        flat_weights.append(base_w_t)
        flat_weights.append(spline_flat)
    dims.append(out_f)
    return (tuple(dims), W, spline_order, float(h), tuple(flat_weights))


def kbasic_qhead_pallas(prepped, x):
    """Fused KBasicQhead forward. x: (B, state_dim) f32 -> (B, n_actions)."""
    dims, W, spline_order, h, flat_weights = prepped
    B = x.shape[0]
    tb = _choose_batch_tile(B)
    Bt = _round_up(B, tb)
    if Bt != B:
        x = jnp.pad(x, ((0, Bt - B), (0, 0)))

    n_layers = len(dims) - 1
    in_specs = [pl.BlockSpec((tb, dims[0]), lambda b: (b, 0))]
    for l in range(n_layers):
        in_f, out_f = dims[l], dims[l + 1]
        in_specs.append(pl.BlockSpec((in_f, out_f), lambda b: (0, 0)))
        in_specs.append(pl.BlockSpec((in_f * W, out_f), lambda b: (0, 0)))

    kernel = functools.partial(_kbasic_qhead_kernel, dims=dims, W=W,
                               spline_order=spline_order, h=h)
    out = pl.pallas_call(
        kernel,
        out_shape=jax.ShapeDtypeStruct((Bt, dims[-1]), jnp.float32),
        grid_spec=pltpu.PrefetchScalarGridSpec(
            num_scalar_prefetch=0,
            grid=(Bt // tb,),
            in_specs=in_specs,
            out_specs=pl.BlockSpec((tb, dims[-1]), lambda b: (b, 0)),
        ),
        compiler_params=pltpu.CompilerParams(
            dimension_semantics=("parallel",)),
    )(x, *flat_weights)
    return out[:B]


# ----------------------------------------------------------------------------
# Parameter construction (deterministic, synthetic init)
# ----------------------------------------------------------------------------
def init_kan_linear(key, in_features, out_features, grid_size, spline_order):
    h = 2.0 / grid_size                                        # grid_range=[-1,1]
    knots = (jnp.arange(-spline_order, grid_size + spline_order + 1,
                        dtype=jnp.float32) * h - 1.0)
    grid = jnp.tile(knots[None, :], (in_features, 1))          # (in, nk)
    k1, k2, k3 = jax.random.split(key, 3)
    bound = 1.0 / math.sqrt(in_features)
    n_coeff = grid_size + spline_order
    base_w = jax.random.uniform(k1, (out_features, in_features),
                                jnp.float32, -bound, bound)
    spline_w = jax.random.uniform(k2, (out_features, in_features, n_coeff),
                                  jnp.float32, -0.1, 0.1)
    spline_scaler = jax.random.uniform(k3, (out_features, in_features),
                                       jnp.float32, -bound, bound)
    # TODO(synk): torch's curve2coeff (lstsq) based init is not replicated;
    # synthetic random init is used since it does not affect forward semantics.
    return dict(grid=grid, base_w=base_w, spline_w=spline_w,
                spline_scaler=spline_scaler)


def init_kbasic_qhead(key, state_dim, n_actions, hidden_sizes, grid_size,
                      spline_order):
    dims = [state_dim] + list(hidden_sizes) + [n_actions]
    params = []
    for li in range(len(dims) - 1):
        key, sub = jax.random.split(key)
        params.append(init_kan_linear(sub, dims[li], dims[li + 1],
                                      grid_size, spline_order))
    return params


# ----------------------------------------------------------------------------
# Pure-JAX reference (mirrors the PyTorch forward) for a sanity check
# ----------------------------------------------------------------------------
def _kan_linear_ref(x, p, spline_order):
    grid = p['grid']
    xe = x[:, :, None]
    b = ((xe >= grid[:, :-1]) & (xe < grid[:, 1:])).astype(x.dtype)
    for k in range(1, spline_order + 1):
        b = ((xe - grid[:, :-(k + 1)]) /
             (grid[:, k:-1] - grid[:, :-(k + 1)]) * b[:, :, :-1]
             + (grid[:, k + 1:] - xe) /
             (grid[:, k + 1:] - grid[:, 1:-k]) * b[:, :, 1:])
    base_out = (x * jax.nn.sigmoid(x)) @ p['base_w'].T
    scaled = p['spline_w'] * p['spline_scaler'][..., None]
    spline_out = b.reshape(x.shape[0], -1) @ scaled.reshape(scaled.shape[0], -1).T
    return base_out + spline_out


def kbasic_qhead_ref(params, x, *, spline_order):
    for p in params:
        x = _kan_linear_ref(x, p, spline_order)
    return x


# ----------------------------------------------------------------------------
if __name__ == "__main__":
    state_dim = 8
    hidden_sizes = [32, 32]
    n_actions = 4
    batch = 64
    size = {'grid_size': 5, 'spline_order': 3}   # kan_block's `size` dict

    key = jax.random.PRNGKey(0)
    key, pkey, xkey = jax.random.split(key, 3)
    params = init_kbasic_qhead(pkey, state_dim, n_actions, hidden_sizes,
                               size['grid_size'], size['spline_order'])
    x = jax.random.uniform(xkey, (batch, state_dim), jnp.float32, -1.0, 1.0)

    prepped = prepare_params(params, size['spline_order'], size['grid_size'])
    out = kbasic_qhead_pallas(prepped, x)
    out = jax.block_until_ready(out)

    ref = kbasic_qhead_ref(params, x, spline_order=size['spline_order'])
    np.testing.assert_allclose(np.asarray(out), np.asarray(ref),
                               rtol=2e-2, atol=2e-3)
    assert out.shape == (batch, n_actions)
    print("KERNEL_OK")
</pallas_src>

<mosaic_0001>
module attributes {stable_mosaic.version = 11 : i64} {
  func.func @_kbasic_qhead_kernel(%arg0: i32, %arg1: memref<32x8xf32, #tpu.memory_space<vmem>>, %arg2: memref<8x32xf32, #tpu.memory_space<vmem>>, %arg3: memref<88x32xf32, #tpu.memory_space<vmem>>, %arg4: memref<32x32xf32, #tpu.memory_space<vmem>>, %arg5: memref<352x32xf32, #tpu.memory_space<vmem>>, %arg6: memref<32x4xf32, #tpu.memory_space<vmem>>, %arg7: memref<352x4xf32, #tpu.memory_space<vmem>>, %arg8: memref<32x4xf32, #tpu.memory_space<vmem>>) attributes {dimension_semantics = [#tpu.dimension_semantics<parallel>], iteration_bounds = array<i64: 2>, scalar_prefetch = 0 : i64, scratch_operands = 0 : i64, tpu.core_type = #tpu.core_type<tc>, window_params = [{transform_indices = @transform_0, window_bounds = array<i64: 32, 8>}, {pipeline_mode = #tpu.pipeline_mode<synchronous>, transform_indices = @transform_1, window_bounds = array<i64: 8, 32>}, {pipeline_mode = #tpu.pipeline_mode<synchronous>, transform_indices = @transform_2, window_bounds = array<i64: 88, 32>}, {pipeline_mode = #tpu.pipeline_mode<synchronous>, transform_indices = @transform_3, window_bounds = array<i64: 32, 32>}, {pipeline_mode = #tpu.pipeline_mode<synchronous>, transform_indices = @transform_4, window_bounds = array<i64: 352, 32>}, {pipeline_mode = #tpu.pipeline_mode<synchronous>, transform_indices = @transform_5, window_bounds = array<i64: 32, 4>}, {pipeline_mode = #tpu.pipeline_mode<synchronous>, transform_indices = @transform_6, window_bounds = array<i64: 352, 4>}, {transform_indices = @transform_7, window_bounds = array<i64: 32, 4>}]} {
    %c0 = arith.constant 0 : index
    %c0_0 = arith.constant 0 : index
    %0 = vector.load %arg1[%c0, %c0_0] : memref<32x8xf32, #tpu.memory_space<vmem>>, vector<32x8xf32>
    %c0_1 = arith.constant 0 : index
    %c0_2 = arith.constant 0 : index
    %1 = vector.load %arg2[%c0_1, %c0_2] : memref<8x32xf32, #tpu.memory_space<vmem>>, vector<8x32xf32>
    %c0_3 = arith.constant 0 : index
    %c0_4 = arith.constant 0 : index
    %2 = vector.load %arg3[%c0_3, %c0_4] : memref<88x32xf32, #tpu.memory_space<vmem>>, vector<88x32xf32>
    %3 = tpu.iota {dimensions = array<i32: 1>} : vector<1x88xi32>
    %4 = arith.sitofp %3 : vector<1x88xi32> to vector<1x88xf32>
    %cst = arith.constant 5.000000e-01 : f32
    %5 = vector.broadcast %cst : f32 to vector<1x88xf32>
    %6 = arith.addf %4, %5 : vector<1x88xf32>
    %cst_5 = arith.constant 1.100000e+01 : f32
    %7 = vector.broadcast %cst_5 : f32 to vector<1x88xf32>
    %8 = arith.divf %6, %7 : vector<1x88xf32>
    %9 = math.floor %8 : vector<1x88xf32>
    %cst_6 = arith.constant 1.100000e+01 : f32
    %10 = vector.broadcast %cst_6 : f32 to vector<1x88xf32>
    %11 = arith.mulf %10, %9 : vector<1x88xf32>
    %12 = arith.subf %4, %11 : vector<1x88xf32>
    %13 = tpu.iota {dimensions = array<i32: 0>} : vector<8x88xi32>
    %14 = arith.sitofp %13 : vector<8x88xi32> to vector<8x88xf32>
    %15 = vector.broadcast %9 : vector<1x88xf32> to vector<8x88xf32>
    %16 = arith.cmpf oeq, %14, %15 : vector<8x88xf32>
    %cst_7 = arith.constant 1.000000e+00 : f32
    %cst_8 = arith.constant 0.000000e+00 : f32
    %17 = vector.broadcast %cst_7 : f32 to vector<8x88xf32>
    %18 = vector.broadcast %cst_8 : f32 to vector<8x88xf32>
    %19 = arith.select %16, %17, %18 : vector<8x88xi1>, vector<8x88xf32>
    %cst_9 = arith.constant dense<0.000000e+00> : vector<32x88xf32>
    %20 = tpu.matmul %0, %19, %cst_9 {dimension_numbers = #tpu.dot_dimension_numbers<[1], [0], [0], [1], [0, 0, 1, 1], [], []>} : vector<32x8xf32>, vector<8x88xf32>, vector<32x88xf32> -> vector<32x88xf32>
    %cst_10 = arith.constant 3.000000e+00 : f32
    %21 = vector.broadcast %cst_10 : f32 to vector<1x88xf32>
    %22 = arith.subf %12, %21 : vector<1x88xf32>
    %cst_11 = arith.constant 4.000000e-01 : f32
    %23 = vector.broadcast %cst_11 : f32 to vector<1x88xf32>
    %24 = arith.mulf %22, %23 : vector<1x88xf32>
    %cst_12 = arith.constant 1.000000e+00 : f32
    %25 = vector.broadcast %cst_12 : f32 to vector<1x88xf32>
    %26 = arith.subf %24, %25 : vector<1x88xf32>
    %cst_13 = arith.constant 1.000000e+00 : f32
    %27 = vector.broadcast %cst_13 : f32 to vector<1x88xf32>
    %28 = arith.addf %12, %27 : vector<1x88xf32>
    %cst_14 = arith.constant 3.000000e+00 : f32
    %29 = vector.broadcast %cst_14 : f32 to vector<1x88xf32>
    %30 = arith.subf %28, %29 : vector<1x88xf32>
    %cst_15 = arith.constant 4.000000e-01 : f32
    %31 = vector.broadcast %cst_15 : f32 to vector<1x88xf32>
    %32 = arith.mulf %30, %31 : vector<1x88xf32>
    %cst_16 = arith.constant 1.000000e+00 : f32
    %33 = vector.broadcast %cst_16 : f32 to vector<1x88xf32>
    %34 = arith.subf %32, %33 : vector<1x88xf32>
    %35 = vector.broadcast %26 : vector<1x88xf32> to vector<32x88xf32>
    %36 = arith.cmpf oge, %20, %35 : vector<32x88xf32>
    %37 = vector.broadcast %34 : vector<1x88xf32> to vector<32x88xf32>
    %38 = arith.cmpf olt, %20, %37 : vector<32x88xf32>
    %39 = arith.andi %36, %38 : vector<32x88xi1>
    %cst_17 = arith.constant 1.000000e+00 : f32
    %cst_18 = arith.constant 0.000000e+00 : f32
    %40 = vector.broadcast %cst_17 : f32 to vector<32x88xf32>
    %41 = vector.broadcast %cst_18 : f32 to vector<32x88xf32>
    %42 = arith.select %39, %40, %41 : vector<32x88xi1>, vector<32x88xf32>
    %43 = vector.broadcast %26 : vector<1x88xf32> to vector<32x88xf32>
    %44 = arith.subf %20, %43 : vector<32x88xf32>
    %cst_19 = arith.constant 1.000000e+01 : f32
    %45 = vector.broadcast %cst_19 : f32 to vector<1x88xf32>
    %46 = arith.cmpf olt, %12, %45 : vector<1x88xf32>
    %cst_20 = arith.constant 1.000000e+00 : f32
    %cst_21 = arith.constant 0.000000e+00 : f32
    %47 = vector.broadcast %cst_20 : f32 to vector<1x88xf32>
    %48 = vector.broadcast %cst_21 : f32 to vector<1x88xf32>
    %49 = arith.select %46, %47, %48 : vector<1x88xi1>, vector<1x88xf32>
    %cst_22 = arith.constant 0.000000e+00 : f32
    %50 = vector.broadcast %cst_22 : f32 to vector<32x1xf32>
    %cst_23 = arith.constant 2.000000e+00 : f32
    %51 = vector.broadcast %cst_23 : f32 to vector<1x88xf32>
    %52 = arith.addf %12, %51 : vector<1x88xf32>
    %cst_24 = arith.constant 1.100000e+01 : f32
    %53 = vector.broadcast %cst_24 : f32 to vector<1x88xf32>
    %54 = arith.minimumf %52, %53 : vector<1x88xf32>
    %cst_25 = arith.constant 3.000000e+00 : f32
    %55 = vector.broadcast %cst_25 : f32 to vector<1x88xf32>
    %56 = arith.subf %54, %55 : vector<1x88xf32>
    %cst_26 = arith.constant 4.000000e-01 : f32
    %57 = vector.broadcast %cst_26 : f32 to vector<1x88xf32>
    %58 = arith.mulf %56, %57 : vector<1x88xf32>
    %cst_27 = arith.constant 1.000000e+00 : f32
    %59 = vector.broadcast %cst_27 : f32 to vector<1x88xf32>
    %60 = arith.subf %58, %59 : vector<1x88xf32>
    %61 = vector.extract_strided_slice %42 {offsets = [0, 1], sizes = [32, 87], strides = [1, 1]} : vector<32x88xf32> to vector<32x87xf32>
    %62 = tpu.concatenate %61, %50 in 1 : vector<32x87xf32>, vector<32x1xf32> -> vector<32x88xf32>
    %63 = vector.broadcast %49 : vector<1x88xf32> to vector<32x88xf32>
    %64 = arith.mulf %62, %63 : vector<32x88xf32>
    %cst_28 = arith.constant 2.500000e+00 : f32
    %65 = vector.broadcast %cst_28 : f32 to vector<32x88xf32>
    %66 = arith.mulf %44, %65 : vector<32x88xf32>
    %67 = arith.mulf %66, %42 : vector<32x88xf32>
    %68 = vector.broadcast %60 : vector<1x88xf32> to vector<32x88xf32>
    %69 = arith.subf %68, %20 : vector<32x88xf32>
    %cst_29 = arith.constant 2.500000e+00 : f32
    %70 = vector.broadcast %cst_29 : f32 to vector<32x88xf32>
    %71 = arith.mulf %69, %70 : vector<32x88xf32>
    %72 = arith.mulf %71, %64 : vector<32x88xf32>
    %73 = arith.addf %67, %72 : vector<32x88xf32>
    %cst_30 = arith.constant 3.000000e+00 : f32
    %74 = vector.broadcast %cst_30 : f32 to vector<1x88xf32>
    %75 = arith.addf %12, %74 : vector<1x88xf32>
    %cst_31 = arith.constant 1.100000e+01 : f32
    %76 = vector.broadcast %cst_31 : f32 to vector<1x88xf32>
    %77 = arith.minimumf %75, %76 : vector<1x88xf32>
    %cst_32 = arith.constant 3.000000e+00 : f32
    %78 = vector.broadcast %cst_32 : f32 to vector<1x88xf32>
    %79 = arith.subf %77, %78 : vector<1x88xf32>
    %cst_33 = arith.constant 4.000000e-01 : f32
    %80 = vector.broadcast %cst_33 : f32 to vector<1x88xf32>
    %81 = arith.mulf %79, %80 : vector<1x88xf32>
    %cst_34 = arith.constant 1.000000e+00 : f32
    %82 = vector.broadcast %cst_34 : f32 to vector<1x88xf32>
    %83 = arith.subf %81, %82 : vector<1x88xf32>
    %84 = vector.extract_strided_slice %73 {offsets = [0, 1], sizes = [32, 87], strides = [1, 1]} : vector<32x88xf32> to vector<32x87xf32>
    %85 = tpu.concatenate %84, %50 in 1 : vector<32x87xf32>, vector<32x1xf32> -> vector<32x88xf32>
    %86 = vector.broadcast %49 : vector<1x88xf32> to vector<32x88xf32>
    %87 = arith.mulf %85, %86 : vector<32x88xf32>
    %cst_35 = arith.constant 1.250000e+00 : f32
    %88 = vector.broadcast %cst_35 : f32 to vector<32x88xf32>
    %89 = arith.mulf %44, %88 : vector<32x88xf32>
    %90 = arith.mulf %89, %73 : vector<32x88xf32>
    %91 = vector.broadcast %83 : vector<1x88xf32> to vector<32x88xf32>
    %92 = arith.subf %91, %20 : vector<32x88xf32>
    %cst_36 = arith.constant 1.250000e+00 : f32
    %93 = vector.broadcast %cst_36 : f32 to vector<32x88xf32>
    %94 = arith.mulf %92, %93 : vector<32x88xf32>
    %95 = arith.mulf %94, %87 : vector<32x88xf32>
    %96 = arith.addf %90, %95 : vector<32x88xf32>
    %cst_37 = arith.constant 4.000000e+00 : f32
    %97 = vector.broadcast %cst_37 : f32 to vector<1x88xf32>
    %98 = arith.addf %12, %97 : vector<1x88xf32>
    %cst_38 = arith.constant 1.100000e+01 : f32
    %99 = vector.broadcast %cst_38 : f32 to vector<1x88xf32>
    %100 = arith.minimumf %98, %99 : vector<1x88xf32>
    %cst_39 = arith.constant 3.000000e+00 : f32
    %101 = vector.broadcast %cst_39 : f32 to vector<1x88xf32>
    %102 = arith.subf %100, %101 : vector<1x88xf32>
    %cst_40 = arith.constant 4.000000e-01 : f32
    %103 = vector.broadcast %cst_40 : f32 to vector<1x88xf32>
    %104 = arith.mulf %102, %103 : vector<1x88xf32>
    %cst_41 = arith.constant 1.000000e+00 : f32
    %105 = vector.broadcast %cst_41 : f32 to vector<1x88xf32>
    %106 = arith.subf %104, %105 : vector<1x88xf32>
    %107 = vector.extract_strided_slice %96 {offsets = [0, 1], sizes = [32, 87], strides = [1, 1]} : vector<32x88xf32> to vector<32x87xf32>
    %108 = tpu.concatenate %107, %50 in 1 : vector<32x87xf32>, vector<32x1xf32> -> vector<32x88xf32>
    %109 = vector.broadcast %49 : vector<1x88xf32> to vector<32x88xf32>
    %110 = arith.mulf %108, %109 : vector<32x88xf32>
    %cst_42 = arith.constant 0.833333313 : f32
    %111 = vector.broadcast %cst_42 : f32 to vector<32x88xf32>
    %112 = arith.mulf %44, %111 : vector<32x88xf32>
    %113 = arith.mulf %112, %96 : vector<32x88xf32>
    %114 = vector.broadcast %106 : vector<1x88xf32> to vector<32x88xf32>
    %115 = arith.subf %114, %20 : vector<32x88xf32>
    %cst_43 = arith.constant 0.833333313 : f32
    %116 = vector.broadcast %cst_43 : f32 to vector<32x88xf32>
    %117 = arith.mulf %115, %116 : vector<32x88xf32>
    %118 = arith.mulf %117, %110 : vector<32x88xf32>
    %119 = arith.addf %113, %118 : vector<32x88xf32>
    %120 = arith.negf %0 : vector<32x8xf32>
    %121 = math.exp %120 : vector<32x8xf32>
    %cst_44 = arith.constant 1.000000e+00 : f32
    %122 = vector.broadcast %cst_44 : f32 to vector<32x8xf32>
    %123 = arith.addf %122, %121 : vector<32x8xf32>
    %124 = arith.divf %122, %123 : vector<32x8xf32>
    %125 = arith.mulf %0, %124 : vector<32x8xf32>
    %cst_45 = arith.constant dense<0.000000e+00> : vector<32x32xf32>
    %126 = tpu.matmul %125, %1, %cst_45 {dimension_numbers = #tpu.dot_dimension_numbers<[1], [0], [0], [1], [0, 0, 1, 1], [], []>} : vector<32x8xf32>, vector<8x32xf32>, vector<32x32xf32> -> vector<32x32xf32>
    %cst_46 = arith.constant dense<0.000000e+00> : vector<32x32xf32>
    %127 = tpu.matmul %119, %2, %cst_46 {dimension_numbers = #tpu.dot_dimension_numbers<[1], [0], [0], [1], [0, 0, 1, 1], [], []>} : vector<32x88xf32>, vector<88x32xf32>, vector<32x32xf32> -> vector<32x32xf32>
    %128 = arith.addf %126, %127 : vector<32x32xf32>
    %c0_47 = arith.constant 0 : index
    %c0_48 = arith.constant 0 : index
    %129 = vector.load %arg4[%c0_47, %c0_48] : memref<32x32xf32, #tpu.memory_space<vmem>>, vector<32x32xf32>
    %c0_49 = arith.constant 0 : index
    %c0_50 = arith.constant 0 : index
    %130 = vector.load %arg5[%c0_49, %c0_50] : memref<352x32xf32, #tpu.memory_space<vmem>>, vector<352x32xf32>
    %131 = tpu.iota {dimensions = array<i32: 1>} : vector<1x352xi32>
    %132 = arith.sitofp %131 : vector<1x352xi32> to vector<1x352xf32>
    %cst_51 = arith.constant 5.000000e-01 : f32
    %133 = vector.broadcast %cst_51 : f32 to vector<1x352xf32>
    %134 = arith.addf %132, %133 : vector<1x352xf32>
    %cst_52 = arith.constant 1.100000e+01 : f32
    %135 = vector.broadcast %cst_52 : f32 to vector<1x352xf32>
    %136 = arith.divf %134, %135 : vector<1x352xf32>
    %137 = math.floor %136 : vector<1x352xf32>
    %cst_53 = arith.constant 1.100000e+01 : f32
    %138 = vector.broadcast %cst_53 : f32 to vector<1x352xf32>
    %139 = arith.mulf %138, %137 : vector<1x352xf32>
    %140 = arith.subf %132, %139 : vector<1x352xf32>
    %141 = tpu.iota {dimensions = array<i32: 0>} : vector<32x352xi32>
    %142 = arith.sitofp %141 : vector<32x352xi32> to vector<32x352xf32>
    %143 = vector.broadcast %137 : vector<1x352xf32> to vector<32x352xf32>
    %144 = arith.cmpf oeq, %142, %143 : vector<32x352xf32>
    %cst_54 = arith.constant 1.000000e+00 : f32
    %cst_55 = arith.constant 0.000000e+00 : f32
    %145 = vector.broadcast %cst_54 : f32 to vector<32x352xf32>
    %146 = vector.broadcast %cst_55 : f32 to vector<32x352xf32>
    %147 = arith.select %144, %145, %146 : vector<32x352xi1>, vector<32x352xf32>
    %cst_56 = arith.constant dense<0.000000e+00> : vector<32x352xf32>
    %148 = tpu.matmul %128, %147, %cst_56 {dimension_numbers = #tpu.dot_dimension_numbers<[1], [0], [0], [1], [0, 0, 1, 1], [], []>} : vector<32x32xf32>, vector<32x352xf32>, vector<32x352xf32> -> vector<32x352xf32>
    %cst_57 = arith.constant 3.000000e+00 : f32
    %149 = vector.broadcast %cst_57 : f32 to vector<1x352xf32>
    %150 = arith.subf %140, %149 : vector<1x352xf32>
    %cst_58 = arith.constant 4.000000e-01 : f32
    %151 = vector.broadcast %cst_58 : f32 to vector<1x352xf32>
    %152 = arith.mulf %150, %151 : vector<1x352xf32>
    %cst_59 = arith.constant 1.000000e+00 : f32
    %153 = vector.broadcast %cst_59 : f32 to vector<1x352xf32>
    %154 = arith.subf %152, %153 : vector<1x352xf32>
    %cst_60 = arith.constant 1.000000e+00 : f32
    %155 = vector.broadcast %cst_60 : f32 to vector<1x352xf32>
    %156 = arith.addf %140, %155 : vector<1x352xf32>
    %cst_61 = arith.constant 3.000000e+00 : f32
    %157 = vector.broadcast %cst_61 : f32 to vector<1x352xf32>
    %158 = arith.subf %156, %157 : vector<1x352xf32>
    %cst_62 = arith.constant 4.000000e-01 : f32
    %159 = vector.broadcast %cst_62 : f32 to vector<1x352xf32>
    %160 = arith.mulf %158, %159 : vector<1x352xf32>
    %cst_63 = arith.constant 1.000000e+00 : f32
    %161 = vector.broadcast %cst_63 : f32 to vector<1x352xf32>
    %162 = arith.subf %160, %161 : vector<1x352xf32>
    %163 = vector.broadcast %154 : vector<1x352xf32> to vector<32x352xf32>
    %164 = arith.cmpf oge, %148, %163 : vector<32x352xf32>
    %165 = vector.broadcast %162 : vector<1x352xf32> to vector<32x352xf32>
    %166 = arith.cmpf olt, %148, %165 : vector<32x352xf32>
    %167 = arith.andi %164, %166 : vector<32x352xi1>
    %cst_64 = arith.constant 1.000000e+00 : f32
    %cst_65 = arith.constant 0.000000e+00 : f32
    %168 = vector.broadcast %cst_64 : f32 to vector<32x352xf32>
    %169 = vector.broadcast %cst_65 : f32 to vector<32x352xf32>
    %170 = arith.select %167, %168, %169 : vector<32x352xi1>, vector<32x352xf32>
    %171 = vector.broadcast %154 : vector<1x352xf32> to vector<32x352xf32>
    %172 = arith.subf %148, %171 : vector<32x352xf32>
    %cst_66 = arith.constant 1.000000e+01 : f32
    %173 = vector.broadcast %cst_66 : f32 to vector<1x352xf32>
    %174 = arith.cmpf olt, %140, %173 : vector<1x352xf32>
    %cst_67 = arith.constant 1.000000e+00 : f32
    %cst_68 = arith.constant 0.000000e+00 : f32
    %175 = vector.broadcast %cst_67 : f32 to vector<1x352xf32>
    %176 = vector.broadcast %cst_68 : f32 to vector<1x352xf32>
    %177 = arith.select %174, %175, %176 : vector<1x352xi1>, vector<1x352xf32>
    %cst_69 = arith.constant 0.000000e+00 : f32
    %178 = vector.broadcast %cst_69 : f32 to vector<32x1xf32>
    %cst_70 = arith.constant 2.000000e+00 : f32
    %179 = vector.broadcast %cst_70 : f32 to vector<1x352xf32>
    %180 = arith.addf %140, %179 : vector<1x352xf32>
    %cst_71 = arith.constant 1.100000e+01 : f32
    %181 = vector.broadcast %cst_71 : f32 to vector<1x352xf32>
    %182 = arith.minimumf %180, %181 : vector<1x352xf32>
    %cst_72 = arith.constant 3.000000e+00 : f32
    %183 = vector.broadcast %cst_72 : f32 to vector<1x352xf32>
    %184 = arith.subf %182, %183 : vector<1x352xf32>
    %cst_73 = arith.constant 4.000000e-01 : f32
    %185 = vector.broadcast %cst_73 : f32 to vector<1x352xf32>
    %186 = arith.mulf %184, %185 : vector<1x352xf32>
    %cst_74 = arith.constant 1.000000e+00 : f32
    %187 = vector.broadcast %cst_74 : f32 to vector<1x352xf32>
    %188 = arith.subf %186, %187 : vector<1x352xf32>
    %189 = vector.extract_strided_slice %170 {offsets = [0, 1], sizes = [32, 351], strides = [1, 1]} : vector<32x352xf32> to vector<32x351xf32>
    %190 = tpu.concatenate %189, %178 in 1 : vector<32x351xf32>, vector<32x1xf32> -> vector<32x352xf32>
    %191 = vector.broadcast %177 : vector<1x352xf32> to vector<32x352xf32>
    %192 = arith.mulf %190, %191 : vector<32x352xf32>
    %cst_75 = arith.constant 2.500000e+00 : f32
    %193 = vector.broadcast %cst_75 : f32 to vector<32x352xf32>
    %194 = arith.mulf %172, %193 : vector<32x352xf32>
    %195 = arith.mulf %194, %170 : vector<32x352xf32>
    %196 = vector.broadcast %188 : vector<1x352xf32> to vector<32x352xf32>
    %197 = arith.subf %196, %148 : vector<32x352xf32>
    %cst_76 = arith.constant 2.500000e+00 : f32
    %198 = vector.broadcast %cst_76 : f32 to vector<32x352xf32>
    %199 = arith.mulf %197, %198 : vector<32x352xf32>
    %200 = arith.mulf %199, %192 : vector<32x352xf32>
    %201 = arith.addf %195, %200 : vector<32x352xf32>
    %cst_77 = arith.constant 3.000000e+00 : f32
    %202 = vector.broadcast %cst_77 : f32 to vector<1x352xf32>
    %203 = arith.addf %140, %202 : vector<1x352xf32>
    %cst_78 = arith.constant 1.100000e+01 : f32
    %204 = vector.broadcast %cst_78 : f32 to vector<1x352xf32>
    %205 = arith.minimumf %203, %204 : vector<1x352xf32>
    %cst_79 = arith.constant 3.000000e+00 : f32
    %206 = vector.broadcast %cst_79 : f32 to vector<1x352xf32>
    %207 = arith.subf %205, %206 : vector<1x352xf32>
    %cst_80 = arith.constant 4.000000e-01 : f32
    %208 = vector.broadcast %cst_80 : f32 to vector<1x352xf32>
    %209 = arith.mulf %207, %208 : vector<1x352xf32>
    %cst_81 = arith.constant 1.000000e+00 : f32
    %210 = vector.broadcast %cst_81 : f32 to vector<1x352xf32>
    %211 = arith.subf %209, %210 : vector<1x352xf32>
    %212 = vector.extract_strided_slice %201 {offsets = [0, 1], sizes = [32, 351], strides = [1, 1]} : vector<32x352xf32> to vector<32x351xf32>
    %213 = tpu.concatenate %212, %178 in 1 : vector<32x351xf32>, vector<32x1xf32> -> vector<32x352xf32>
    %214 = vector.broadcast %177 : vector<1x352xf32> to vector<32x352xf32>
    %215 = arith.mulf %213, %214 : vector<32x352xf32>
    %cst_82 = arith.constant 1.250000e+00 : f32
    %216 = vector.broadcast %cst_82 : f32 to vector<32x352xf32>
    %217 = arith.mulf %172, %216 : vector<32x352xf32>
    %218 = arith.mulf %217, %201 : vector<32x352xf32>
    %219 = vector.broadcast %211 : vector<1x352xf32> to vector<32x352xf32>
    %220 = arith.subf %219, %148 : vector<32x352xf32>
    %cst_83 = arith.constant 1.250000e+00 : f32
    %221 = vector.broadcast %cst_83 : f32 to vector<32x352xf32>
    %222 = arith.mulf %220, %221 : vector<32x352xf32>
    %223 = arith.mulf %222, %215 : vector<32x352xf32>
    %224 = arith.addf %218, %223 : vector<32x352xf32>
    %cst_84 = arith.constant 4.000000e+00 : f32
    %225 = vector.broadcast %cst_84 : f32 to vector<1x352xf32>
    %226 = arith.addf %140, %225 : vector<1x352xf32>
    %cst_85 = arith.constant 1.100000e+01 : f32
    %227 = vector.broadcast %cst_85 : f32 to vector<1x352xf32>
    %228 = arith.minimumf %226, %227 : vector<1x352xf32>
    %cst_86 = arith.constant 3.000000e+00 : f32
    %229 = vector.broadcast %cst_86 : f32 to vector<1x352xf32>
    %230 = arith.subf %228, %229 : vector<1x352xf32>
    %cst_87 = arith.constant 4.000000e-01 : f32
    %231 = vector.broadcast %cst_87 : f32 to vector<1x352xf32>
    %232 = arith.mulf %230, %231 : vector<1x352xf32>
    %cst_88 = arith.constant 1.000000e+00 : f32
    %233 = vector.broadcast %cst_88 : f32 to vector<1x352xf32>
    %234 = arith.subf %232, %233 : vector<1x352xf32>
    %235 = vector.extract_strided_slice %224 {offsets = [0, 1], sizes = [32, 351], strides = [1, 1]} : vector<32x352xf32> to vector<32x351xf32>
    %236 = tpu.concatenate %235, %178 in 1 : vector<32x351xf32>, vector<32x1xf32> -> vector<32x352xf32>
    %237 = vector.broadcast %177 : vector<1x352xf32> to vector<32x352xf32>
    %238 = arith.mulf %236, %237 : vector<32x352xf32>
    %cst_89 = arith.constant 0.833333313 : f32
    %239 = vector.broadcast %cst_89 : f32 to vector<32x352xf32>
    %240 = arith.mulf %172, %239 : vector<32x352xf32>
    %241 = arith.mulf %240, %224 : vector<32x352xf32>
    %242 = vector.broadcast %234 : vector<1x352xf32> to vector<32x352xf32>
    %243 = arith.subf %242, %148 : vector<32x352xf32>
    %cst_90 = arith.constant 0.833333313 : f32
    %244 = vector.broadcast %cst_90 : f32 to vector<32x352xf32>
    %245 = arith.mulf %243, %244 : vector<32x352xf32>
    %246 = arith.mulf %245, %238 : vector<32x352xf32>
    %247 = arith.addf %241, %246 : vector<32x352xf32>
    %248 = arith.negf %128 : vector<32x32xf32>
    %249 = math.exp %248 : vector<32x32xf32>
    %cst_91 = arith.constant 1.000000e+00 : f32
    %250 = vector.broadcast %cst_91 : f32 to vector<32x32xf32>
    %251 = arith.addf %250, %249 : vector<32x32xf32>
    %252 = arith.divf %250, %251 : vector<32x32xf32>
    %253 = arith.mulf %128, %252 : vector<32x32xf32>
    %cst_92 = arith.constant dense<0.000000e+00> : vector<32x32xf32>
    %254 = tpu.matmul %253, %129, %cst_92 {dimension_numbers = #tpu.dot_dimension_numbers<[1], [0], [0], [1], [0, 0, 1, 1], [], []>} : vector<32x32xf32>, vector<32x32xf32>, vector<32x32xf32> -> vector<32x32xf32>
    %cst_93 = arith.constant dense<0.000000e+00> : vector<32x32xf32>
    %255 = tpu.matmul %247, %130, %cst_93 {dimension_numbers = #tpu.dot_dimension_numbers<[1], [0], [0], [1], [0, 0, 1, 1], [], []>} : vector<32x352xf32>, vector<352x32xf32>, vector<32x32xf32> -> vector<32x32xf32>
    %256 = arith.addf %254, %255 : vector<32x32xf32>
    %c0_94 = arith.constant 0 : index
    %c0_95 = arith.constant 0 : index
    %257 = vector.load %arg6[%c0_94, %c0_95] : memref<32x4xf32, #tpu.memory_space<vmem>>, vector<32x4xf32>
    %c0_96 = arith.constant 0 : index
    %c0_97 = arith.constant 0 : index
    %258 = vector.load %arg7[%c0_96, %c0_97] : memref<352x4xf32, #tpu.memory_space<vmem>>, vector<352x4xf32>
    %259 = tpu.iota {dimensions = array<i32: 1>} : vector<1x352xi32>
    %260 = arith.sitofp %259 : vector<1x352xi32> to vector<1x352xf32>
    %cst_98 = arith.constant 5.000000e-01 : f32
    %261 = vector.broadcast %cst_98 : f32 to vector<1x352xf32>
    %262 = arith.addf %260, %261 : vector<1x352xf32>
    %cst_99 = arith.constant 1.100000e+01 : f32
    %263 = vector.broadcast %cst_99 : f32 to vector<1x352xf32>
    %264 = arith.divf %262, %263 : vector<1x352xf32>
    %265 = math.floor %264 : vector<1x352xf32>
    %cst_100 = arith.constant 1.100000e+01 : f32
    %266 = vector.broadcast %cst_100 : f32 to vector<1x352xf32>
    %267 = arith.mulf %266, %265 : vector<1x352xf32>
    %268 = arith.subf %260, %267 : vector<1x352xf32>
    %269 = tpu.iota {dimensions = array<i32: 0>} : vector<32x352xi32>
    %270 = arith.sitofp %269 : vector<32x352xi32> to vector<32x352xf32>
    %271 = vector.broadcast %265 : vector<1x352xf32> to vector<32x352xf32>
    %272 = arith.cmpf oeq, %270, %271 : vector<32x352xf32>
    %cst_101 = arith.constant 1.000000e+00 : f32
    %cst_102 = arith.constant 0.000000e+00 : f32
    %273 = vector.broadcast %cst_101 : f32 to vector<32x352xf32>
    %274 = vector.broadcast %cst_102 : f32 to vector<32x352xf32>
    %275 = arith.select %272, %273, %274 : vector<32x352xi1>, vector<32x352xf32>
    %cst_103 = arith.constant dense<0.000000e+00> : vector<32x352xf32>
    %276 = tpu.matmul %256, %275, %cst_103 {dimension_numbers = #tpu.dot_dimension_numbers<[1], [0], [0], [1], [0, 0, 1, 1], [], []>} : vector<32x32xf32>, vector<32x352xf32>, vector<32x352xf32> -> vector<32x352xf32>
    %cst_104 = arith.constant 3.000000e+00 : f32
    %277 = vector.broadcast %cst_104 : f32 to vector<1x352xf32>
    %278 = arith.subf %268, %277 : vector<1x352xf32>
    %cst_105 = arith.constant 4.000000e-01 : f32
    %279 = vector.broadcast %cst_105 : f32 to vector<1x352xf32>
    %280 = arith.mulf %278, %279 : vector<1x352xf32>
    %cst_106 = arith.constant 1.000000e+00 : f32
    %281 = vector.broadcast %cst_106 : f32 to vector<1x352xf32>
    %282 = arith.subf %280, %281 : vector<1x352xf32>
    %cst_107 = arith.constant 1.000000e+00 : f32
    %283 = vector.broadcast %cst_107 : f32 to vector<1x352xf32>
    %284 = arith.addf %268, %283 : vector<1x352xf32>
    %cst_108 = arith.constant 3.000000e+00 : f32
    %285 = vector.broadcast %cst_108 : f32 to vector<1x352xf32>
    %286 = arith.subf %284, %285 : vector<1x352xf32>
    %cst_109 = arith.constant 4.000000e-01 : f32
    %287 = vector.broadcast %cst_109 : f32 to vector<1x352xf32>
    %288 = arith.mulf %286, %287 : vector<1x352xf32>
    %cst_110 = arith.constant 1.000000e+00 : f32
    %289 = vector.broadcast %cst_110 : f32 to vector<1x352xf32>
    %290 = arith.subf %288, %289 : vector<1x352xf32>
    %291 = vector.broadcast %282 : vector<1x352xf32> to vector<32x352xf32>
    %292 = arith.cmpf oge, %276, %291 : vector<32x352xf32>
    %293 = vector.broadcast %290 : vector<1x352xf32> to vector<32x352xf32>
    %294 = arith.cmpf olt, %276, %293 : vector<32x352xf32>
    %295 = arith.andi %292, %294 : vector<32x352xi1>
    %cst_111 = arith.constant 1.000000e+00 : f32
    %cst_112 = arith.constant 0.000000e+00 : f32
    %296 = vector.broadcast %cst_111 : f32 to vector<32x352xf32>
    %297 = vector.broadcast %cst_112 : f32 to vector<32x352xf32>
    %298 = arith.select %295, %296, %297 : vector<32x352xi1>, vector<32x352xf32>
    %299 = vector.broadcast %282 : vector<1x352xf32> to vector<32x352xf32>
    %300 = arith.subf %276, %299 : vector<32x352xf32>
    %cst_113 = arith.constant 1.000000e+01 : f32
    %301 = vector.broadcast %cst_113 : f32 to vector<1x352xf32>
    %302 = arith.cmpf olt, %268, %301 : vector<1x352xf32>
    %cst_114 = arith.constant 1.000000e+00 : f32
    %cst_115 = arith.constant 0.000000e+00 : f32
    %303 = vector.broadcast %cst_114 : f32 to vector<1x352xf32>
    %304 = vector.broadcast %cst_115 : f32 to vector<1x352xf32>
    %305 = arith.select %302, %303, %304 : vector<1x352xi1>, vector<1x352xf32>
    %cst_116 = arith.constant 0.000000e+00 : f32
    %306 = vector.broadcast %cst_116 : f32 to vector<32x1xf32>
    %cst_117 = arith.constant 2.000000e+00 : f32
    %307 = vector.broadcast %cst_117 : f32 to vector<1x352xf32>
    %308 = arith.addf %268, %307 : vector<1x352xf32>
    %cst_118 = arith.constant 1.100000e+01 : f32
    %309 = vector.broadcast %cst_118 : f32 to vector<1x352xf32>
    %310 = arith.minimumf %308, %309 : vector<1x352xf32>
    %cst_119 = arith.constant 3.000000e+00 : f32
    %311 = vector.broadcast %cst_119 : f32 to vector<1x352xf32>
    %312 = arith.subf %310, %311 : vector<1x352xf32>
    %cst_120 = arith.constant 4.000000e-01 : f32
    %313 = vector.broadcast %cst_120 : f32 to vector<1x352xf32>
    %314 = arith.mulf %312, %313 : vector<1x352xf32>
    %cst_121 = arith.constant 1.000000e+00 : f32
    %315 = vector.broadcast %cst_121 : f32 to vector<1x352xf32>
    %316 = arith.subf %314, %315 : vector<1x352xf32>
    %317 = vector.extract_strided_slice %298 {offsets = [0, 1], sizes = [32, 351], strides = [1, 1]} : vector<32x352xf32> to vector<32x351xf32>
    %318 = tpu.concatenate %317, %306 in 1 : vector<32x351xf32>, vector<32x1xf32> -> vector<32x352xf32>
    %319 = vector.broadcast %305 : vector<1x352xf32> to vector<32x352xf32>
    %320 = arith.mulf %318, %319 : vector<32x352xf32>
    %cst_122 = arith.constant 2.500000e+00 : f32
    %321 = vector.broadcast %cst_122 : f32 to vector<32x352xf32>
    %322 = arith.mulf %300, %321 : vector<32x352xf32>
    %323 = arith.mulf %322, %298 : vector<32x352xf32>
    %324 = vector.broadcast %316 : vector<1x352xf32> to vector<32x352xf32>
    %325 = arith.subf %324, %276 : vector<32x352xf32>
    %cst_123 = arith.constant 2.500000e+00 : f32
    %326 = vector.broadcast %cst_123 : f32 to vector<32x352xf32>
    %327 = arith.mulf %325, %326 : vector<32x352xf32>
    %328 = arith.mulf %327, %320 : vector<32x352xf32>
    %329 = arith.addf %323, %328 : vector<32x352xf32>
    %cst_124 = arith.constant 3.000000e+00 : f32
    %330 = vector.broadcast %cst_124 : f32 to vector<1x352xf32>
    %331 = arith.addf %268, %330 : vector<1x352xf32>
    %cst_125 = arith.constant 1.100000e+01 : f32
    %332 = vector.broadcast %cst_125 : f32 to vector<1x352xf32>
    %333 = arith.minimumf %331, %332 : vector<1x352xf32>
    %cst_126 = arith.constant 3.000000e+00 : f32
    %334 = vector.broadcast %cst_126 : f32 to vector<1x352xf32>
    %335 = arith.subf %333, %334 : vector<1x352xf32>
    %cst_127 = arith.constant 4.000000e-01 : f32
    %336 = vector.broadcast %cst_127 : f32 to vector<1x352xf32>
    %337 = arith.mulf %335, %336 : vector<1x352xf32>
    %cst_128 = arith.constant 1.000000e+00 : f32
    %338 = vector.broadcast %cst_128 : f32 to vector<1x352xf32>
    %339 = arith.subf %337, %338 : vector<1x352xf32>
    %340 = vector.extract_strided_slice %329 {offsets = [0, 1], sizes = [32, 351], strides = [1, 1]} : vector<32x352xf32> to vector<32x351xf32>
    %341 = tpu.concatenate %340, %306 in 1 : vector<32x351xf32>, vector<32x1xf32> -> vector<32x352xf32>
    %342 = vector.broadcast %305 : vector<1x352xf32> to vector<32x352xf32>
    %343 = arith.mulf %341, %342 : vector<32x352xf32>
    %cst_129 = arith.constant 1.250000e+00 : f32
    %344 = vector.broadcast %cst_129 : f32 to vector<32x352xf32>
    %345 = arith.mulf %300, %344 : vector<32x352xf32>
    %346 = arith.mulf %345, %329 : vector<32x352xf32>
    %347 = vector.broadcast %339 : vector<1x352xf32> to vector<32x352xf32>
    %348 = arith.subf %347, %276 : vector<32x352xf32>
    %cst_130 = arith.constant 1.250000e+00 : f32
    %349 = vector.broadcast %cst_130 : f32 to vector<32x352xf32>
    %350 = arith.mulf %348, %349 : vector<32x352xf32>
    %351 = arith.mulf %350, %343 : vector<32x352xf32>
    %352 = arith.addf %346, %351 : vector<32x352xf32>
    %cst_131 = arith.constant 4.000000e+00 : f32
    %353 = vector.broadcast %cst_131 : f32 to vector<1x352xf32>
    %354 = arith.addf %268, %353 : vector<1x352xf32>
    %cst_132 = arith.constant 1.100000e+01 : f32
    %355 = vector.broadcast %cst_132 : f32 to vector<1x352xf32>
    %356 = arith.minimumf %354, %355 : vector<1x352xf32>
    %cst_133 = arith.constant 3.000000e+00 : f32
    %357 = vector.broadcast %cst_133 : f32 to vector<1x352xf32>
    %358 = arith.subf %356, %357 : vector<1x352xf32>
    %cst_134 = arith.constant 4.000000e-01 : f32
    %359 = vector.broadcast %cst_134 : f32 to vector<1x352xf32>
    %360 = arith.mulf %358, %359 : vector<1x352xf32>
    %cst_135 = arith.constant 1.000000e+00 : f32
    %361 = vector.broadcast %cst_135 : f32 to vector<1x352xf32>
    %362 = arith.subf %360, %361 : vector<1x352xf32>
    %363 = vector.extract_strided_slice %352 {offsets = [0, 1], sizes = [32, 351], strides = [1, 1]} : vector<32x352xf32> to vector<32x351xf32>
    %364 = tpu.concatenate %363, %306 in 1 : vector<32x351xf32>, vector<32x1xf32> -> vector<32x352xf32>
    %365 = vector.broadcast %305 : vector<1x352xf32> to vector<32x352xf32>
    %366 = arith.mulf %364, %365 : vector<32x352xf32>
    %cst_136 = arith.constant 0.833333313 : f32
    %367 = vector.broadcast %cst_136 : f32 to vector<32x352xf32>
    %368 = arith.mulf %300, %367 : vector<32x352xf32>
    %369 = arith.mulf %368, %352 : vector<32x352xf32>
    %370 = vector.broadcast %362 : vector<1x352xf32> to vector<32x352xf32>
    %371 = arith.subf %370, %276 : vector<32x352xf32>
    %cst_137 = arith.constant 0.833333313 : f32
    %372 = vector.broadcast %cst_137 : f32 to vector<32x352xf32>
    %373 = arith.mulf %371, %372 : vector<32x352xf32>
    %374 = arith.mulf %373, %366 : vector<32x352xf32>
    %375 = arith.addf %369, %374 : vector<32x352xf32>
    %376 = arith.negf %256 : vector<32x32xf32>
    %377 = math.exp %376 : vector<32x32xf32>
    %cst_138 = arith.constant 1.000000e+00 : f32
    %378 = vector.broadcast %cst_138 : f32 to vector<32x32xf32>
    %379 = arith.addf %378, %377 : vector<32x32xf32>
    %380 = arith.divf %378, %379 : vector<32x32xf32>
    %381 = arith.mulf %256, %380 : vector<32x32xf32>
    %cst_139 = arith.constant dense<0.000000e+00> : vector<32x4xf32>
    %382 = tpu.matmul %381, %257, %cst_139 {dimension_numbers = #tpu.dot_dimension_numbers<[1], [0], [0], [1], [0, 0, 1, 1], [], []>} : vector<32x32xf32>, vector<32x4xf32>, vector<32x4xf32> -> vector<32x4xf32>
    %cst_140 = arith.constant dense<0.000000e+00> : vector<32x4xf32>
    %383 = tpu.matmul %375, %258, %cst_140 {dimension_numbers = #tpu.dot_dimension_numbers<[1], [0], [0], [1], [0, 0, 1, 1], [], []>} : vector<32x352xf32>, vector<352x4xf32>, vector<32x4xf32> -> vector<32x4xf32>
    %384 = arith.addf %382, %383 : vector<32x4xf32>
    %c0_141 = arith.constant 0 : index
    %c0_142 = arith.constant 0 : index
    %385 = vector.load %arg8[%c0_141, %c0_142] : memref<32x4xf32, #tpu.memory_space<vmem>>, vector<32x4xf32>
    tpu.vector_store %arg8[%c0_141, %c0_142], %384 {strides = array<i32>} : memref<32x4xf32, #tpu.memory_space<vmem>>, vector<32x4xf32>,
    return
  }
  func.func @transform_0(%arg0: i32) -> (i32, i32) {
    %c0_i32 = arith.constant 0 : i32
    %c0_i32_0 = arith.constant 0 : i32
    return %arg0, %c0_i32 : i32, i32
  }
  func.func @transform_1(%arg0: i32) -> (i32, i32) {
    %c0_i32 = arith.constant 0 : i32
    %c0_i32_0 = arith.constant 0 : i32
    %c0_i32_1 = arith.constant 0 : i32
    return %c0_i32, %c0_i32_0 : i32, i32
  }
  func.func @transform_2(%arg0: i32) -> (i32, i32) {
    %c0_i32 = arith.constant 0 : i32
    %c0_i32_0 = arith.constant 0 : i32
    %c0_i32_1 = arith.constant 0 : i32
    return %c0_i32, %c0_i32_0 : i32, i32
  }
  func.func @transform_3(%arg0: i32) -> (i32, i32) {
    %c0_i32 = arith.constant 0 : i32
    %c0_i32_0 = arith.constant 0 : i32
    %c0_i32_1 = arith.constant 0 : i32
    return %c0_i32, %c0_i32_0 : i32, i32
  }
  func.func @transform_4(%arg0: i32) -> (i32, i32) {
    %c0_i32 = arith.constant 0 : i32
    %c0_i32_0 = arith.constant 0 : i32
    %c0_i32_1 = arith.constant 0 : i32
    return %c0_i32, %c0_i32_0 : i32, i32
  }
  func.func @transform_5(%arg0: i32) -> (i32, i32) {
    %c0_i32 = arith.constant 0 : i32
    %c0_i32_0 = arith.constant 0 : i32
    %c0_i32_1 = arith.constant 0 : i32
    return %c0_i32, %c0_i32_0 : i32, i32
  }
  func.func @transform_6(%arg0: i32) -> (i32, i32) {
    %c0_i32 = arith.constant 0 : i32
    %c0_i32_0 = arith.constant 0 : i32
    %c0_i32_1 = arith.constant 0 : i32
    return %c0_i32, %c0_i32_0 : i32, i32
  }
  func.func @transform_7(%arg0: i32) -> (i32, i32) {
    %c0_i32 = arith.constant 0 : i32
    %c0_i32_0 = arith.constant 0 : i32
    return %arg0, %c0_i32 : i32, i32
  }
}

</mosaic_0001>

<llo_original>
// kernel: tpu_custom_call.1
$region0: #{tpu_custom_call.1}
  #allocation0 [shape = 'u32[]', space=smem, size = 0x4, offset = 0x4, fixed_abs, tag = 'smem constant byte address 0x4 - core index']
  #allocation1 [shape = 'u32[144,128]{1,0:T(1,128)}', space=vmem, size = 0x12000, scoped, tag = 'internal scratch']
  %s0 = inlined_call_operand.vmem [shape: f32[64,8], index: 0, kind: input, shape index: {}]
  %s1 = inlined_call_operand.vmem [shape: f32[8,32], index: 1, kind: input, shape index: {}]
  %s2 = inlined_call_operand.vmem [shape: f32[88,32], index: 2, kind: input, shape index: {}]
  %s3 = inlined_call_operand.vmem [shape: f32[32,32], index: 3, kind: input, shape index: {}]
  %s4 = inlined_call_operand.vmem [shape: f32[352,32], index: 4, kind: input, shape index: {}]
  %s5 = inlined_call_operand.vmem [shape: f32[32,4], index: 5, kind: input, shape index: {}]
  %s6 = inlined_call_operand.vmem [shape: f32[352,4], index: 6, kind: input, shape index: {}]
  %s7 = inlined_call_operand.vmem [shape: f32[64,4], index: 7, kind: output, shape index: {}]
  %s8 = sld [smem:[#allocation0]]
  $region61: #{tpu_custom_call.1} parent=0
    _
  %s10 = ssub.s32 1, %s8
  %s11 = scalar_select 0, %s10, %s8
  loop: start=0, step=1, limit=4
  $region2: #{tpu_custom_call.1} parent=0 // loop_pre_header
    _
  $region3: #{tpu_custom_call.1} parent=0 // loop_header
    %s13 = sphi 0, %s17
    %p14 = scmp.ge.s32.totalorder %s13, 4
    %s23 = sphi 0, %s25
    %s26 = sphi 0, %s23
    %s27 = sphi 0, %s26
    %s43 = sphi 0, %s27
    %s47 = sphi 0, %s47
    %s49 = sphi 0, %s47
    %s50 = sphi 0, %s49
    %s64 = sphi 0, %s50
    %s68 = sphi 0, %s68
    %s70 = sphi 0, %s68
    %s71 = sphi 0, %s70
    %s85 = sphi 0, %s71
    %s89 = sphi 0, %s89
    %s91 = sphi 0, %s89
    %s92 = sphi 0, %s91
    %s106 = sphi 0, %s92
    %s110 = sphi 0, %s110
    %s112 = sphi 0, %s110
    %s113 = sphi 0, %s112
    %s127 = sphi 0, %s113
    %s131 = sphi 0, %s131
    %s133 = sphi 0, %s131
    %s134 = sphi 0, %s133
    %s148 = sphi 0, %s134
    %s152 = sphi 0, %s152
    %s154 = sphi 0, %s152
    %s155 = sphi 0, %s154
    %s169 = sphi 0, %s155
    %s175 = sphi 0, %s177
    %s178 = sphi 0, %s175
    %s179 = sphi 0, %s178
    %s195 = sphi 0, %s179
  $region4: #{tpu_custom_call.1} parent=0 // loop_header_branch
    %16 = sbr.rel (%p14) target = $region8
  $region5: #{tpu_custom_call.1} parent=0 // loop_body
    %s18 = ssub.s32 %s13, 1
    %s19 = ssub.s32 %s13, 2
    %s20 = sadd.s32 %s13, 1
    %s21 = ssub.s32 %s13, %s20
    %p22 = scmp.eq.s32.totalorder %s21, 0
    %s24 = sadd.s32 %s23, 1
    %s25 = scalar_select %p22, %s23, %s24
    %p28 = pneg %p22
    %p29 = scmp.eq.s32.totalorder %s13, 1
    %p30 = por %p28, %p29
    %p31 = scmp.ne.s32.totalorder %s23, %s26
    %p32 = scmp.eq.s32.totalorder %s13, 0
    %p33 = por %p31, %p32
    %p34 = scmp.ne.s32.totalorder %s23, %s26
    %p35 = scmp.eq.s32.totalorder %s18, 1
    %p36 = por %p34, %p35
    %p37 = scmp.ne.s32.totalorder %s26, %s27
    %p38 = scmp.eq.s32.totalorder %s18, 0
    %p39 = por %p37, %p38
    %p40 = scmp.ne.s32.totalorder %s26, %s27
    %p41 = scmp.eq.s32.totalorder %s19, 1
    %p42 = por %p40, %p41
    %p44 = scmp.ne.s32.totalorder %s27, %s43
    %p45 = scmp.eq.s32.totalorder %s19, 0
    %p46 = por %p44, %p45
    %s48 = sadd.s32 %s47, 1
    %p51 = scmp.eq.s32.totalorder %s13, 1
    %p52 = scmp.ne.s32.totalorder %s47, %s49
    %p53 = scmp.eq.s32.totalorder %s13, 0
    %p54 = por %p52, %p53
    %p55 = scmp.ne.s32.totalorder %s47, %s49
    %p56 = scmp.eq.s32.totalorder %s18, 1
    %p57 = por %p55, %p56
    %p58 = scmp.ne.s32.totalorder %s49, %s50
    %p59 = scmp.eq.s32.totalorder %s18, 0
    %p60 = por %p58, %p59
    %p61 = scmp.ne.s32.totalorder %s49, %s50
    %p62 = scmp.eq.s32.totalorder %s19, 1
    %p63 = por %p61, %p62
    %p65 = scmp.ne.s32.totalorder %s50, %s64
    %p66 = scmp.eq.s32.totalorder %s19, 0
    %p67 = por %p65, %p66
    %s69 = sadd.s32 %s68, 1
    %p72 = scmp.eq.s32.totalorder %s13, 1
    %p73 = scmp.ne.s32.totalorder %s68, %s70
    %p74 = scmp.eq.s32.totalorder %s13, 0
    %p75 = por %p73, %p74
    %p76 = scmp.ne.s32.totalorder %s68, %s70
    %p77 = scmp.eq.s32.totalorder %s18, 1
    %p78 = por %p76, %p77
    %p79 = scmp.ne.s32.totalorder %s70, %s71
    %p80 = scmp.eq.s32.totalorder %s18, 0
    %p81 = por %p79, %p80
    %p82 = scmp.ne.s32.totalorder %s70, %s71
    %p83 = scmp.eq.s32.totalorder %s19, 1
    %p84 = por %p82, %p83
    %p86 = scmp.ne.s32.totalorder %s71, %s85
    %p87 = scmp.eq.s32.totalorder %s19, 0
    %p88 = por %p86, %p87
    %s90 = sadd.s32 %s89, 1
    %p93 = scmp.eq.s32.totalorder %s13, 1
    %p94 = scmp.ne.s32.totalorder %s89, %s91
    %p95 = scmp.eq.s32.totalorder %s13, 0
    %p96 = por %p94, %p95
    %p97 = scmp.ne.s32.totalorder %s89, %s91
    %p98 = scmp.eq.s32.totalorder %s18, 1
    %p99 = por %p97, %p98
    %p100 = scmp.ne.s32.totalorder %s91, %s92
    %p101 = scmp.eq.s32.totalorder %s18, 0
    %p102 = por %p100, %p101
    %p103 = scmp.ne.s32.totalorder %s91, %s92
    %p104 = scmp.eq.s32.totalorder %s19, 1
    %p105 = por %p103, %p104
    %p107 = scmp.ne.s32.totalorder %s92, %s106
    %p108 = scmp.eq.s32.totalorder %s19, 0
    %p109 = por %p107, %p108
    %s111 = sadd.s32 %s110, 1
    %p114 = scmp.eq.s32.totalorder %s13, 1
    %p115 = scmp.ne.s32.totalorder %s110, %s112
    %p116 = scmp.eq.s32.totalorder %s13, 0
    %p117 = por %p115, %p116
    %p118 = scmp.ne.s32.totalorder %s110, %s112
    %p119 = scmp.eq.s32.totalorder %s18, 1
    %p120 = por %p118, %p119
    %p121 = scmp.ne.s32.totalorder %s112, %s113
    %p122 = scmp.eq.s32.totalorder %s18, 0
    %p123 = por %p121, %p122
    %p124 = scmp.ne.s32.totalorder %s112, %s113
    %p125 = scmp.eq.s32.totalorder %s19, 1
    %p126 = por %p124, %p125
    %p128 = scmp.ne.s32.totalorder %s113, %s127
    %p129 = scmp.eq.s32.totalorder %s19, 0
    %p130 = por %p128, %p129
    %s132 = sadd.s32 %s131, 1
    %p135 = scmp.eq.s32.totalorder %s13, 1
    %p136 = scmp.ne.s32.totalorder %s131, %s133
    %p137 = scmp.eq.s32.totalorder %s13, 0
    %p138 = por %p136, %p137
    %p139 = scmp.ne.s32.totalorder %s131, %s133
    %p140 = scmp.eq.s32.totalorder %s18, 1
    %p141 = por %p139, %p140
    %p142 = scmp.ne.s32.totalorder %s133, %s134
    %p143 = scmp.eq.s32.totalorder %s18, 0
    %p144 = por %p142, %p143
    %p145 = scmp.ne.s32.totalorder %s133, %s134
    %p146 = scmp.eq.s32.totalorder %s19, 1
    %p147 = por %p145, %p146
    %p149 = scmp.ne.s32.totalorder %s134, %s148
    %p150 = scmp.eq.s32.totalorder %s19, 0
    %p151 = por %p149, %p150
    %s153 = sadd.s32 %s152, 1
    %p156 = scmp.eq.s32.totalorder %s13, 1
    %p157 = scmp.ne.s32.totalorder %s152, %s154
    %p158 = scmp.eq.s32.totalorder %s13, 0
    %p159 = por %p157, %p158
    %p160 = scmp.ne.s32.totalorder %s152, %s154
    %p161 = scmp.eq.s32.totalorder %s18, 1
    %p162 = por %p160, %p161
    %p163 = scmp.ne.s32.totalorder %s154, %s155
    %p164 = scmp.eq.s32.totalorder %s18, 0
    %p165 = por %p163, %p164
    %p166 = scmp.ne.s32.totalorder %s154, %s155
    %p167 = scmp.eq.s32.totalorder %s19, 1
    %p168 = por %p166, %p167
    %p170 = scmp.ne.s32.totalorder %s155, %s169
    %p171 = scmp.eq.s32.totalorder %s19, 0
    %p172 = por %p170, %p171
    %s173 = ssub.s32 %s13, %s20
    %p174 = scmp.eq.s32.totalorder %s173, 0
    %s176 = sadd.s32 %s175, 1
    %s177 = scalar_select %p174, %s175, %s176
    %p180 = pneg %p174
    %p181 = scmp.eq.s32.totalorder %s13, 1
    %p182 = por %p180, %p181
    %p183 = scmp.ne.s32.totalorder %s175, %s178
    %p184 = scmp.eq.s32.totalorder %s13, 0
    %p185 = por %p183, %p184
    %p186 = scmp.ne.s32.totalorder %s175, %s178
    %p187 = scmp.eq.s32.totalorder %s18, 1
    %p188 = por %p186, %p187
    %p189 = scmp.ne.s32.totalorder %s178, %s179
    %p190 = scmp.eq.s32.totalorder %s18, 0
    %p191 = por %p189, %p190
    %p192 = scmp.ne.s32.totalorder %s178, %s179
    %p193 = scmp.eq.s32.totalorder %s19, 1
    %p194 = por %p192, %p193
    %p196 = scmp.ne.s32.totalorder %s179, %s195
    %p197 = scmp.eq.s32.totalorder %s19, 0
    %p198 = por %p196, %p197
    %p199 = scmp.le.s32.totalorder 1, %s13
    %p200 = scmp.lt.s32.totalorder %s13, 3
    %p201 = pnand %p199, %p200
    %p202 = pneg %p201
    // Predicated region
    $region9: #{tpu_custom_call.1} parent=5 // pred_check
      _
    $region10: #{tpu_custom_call.1} parent=5 // pred_check_branch
      %204 = sbr.rel (%p201) target = $region12
    $region11: #{tpu_custom_call.1} parent=5 // pred_region
      %s205 = ssub.s32 %s13, 1
      // Predicated region
      $region13: #{tpu_custom_call.1} parent=11 // pred_check
        %p206 = pneg %p60
      $region14: #{tpu_custom_call.1} parent=11 // pred_check_branch
        %208 = sbr.rel (%p206) target = $region16
      $region15: #{tpu_custom_call.1} parent=11 // pred_region
        _
      $region16: #{tpu_custom_call.1} parent=11 // pred_fallthru
        _
      // Predicated region
      $region17: #{tpu_custom_call.1} parent=11 // pred_check
        %p209 = pneg %p81
      $region18: #{tpu_custom_call.1} parent=11 // pred_check_branch
        %211 = sbr.rel (%p209) target = $region20
      $region19: #{tpu_custom_call.1} parent=11 // pred_region
        _
      $region20: #{tpu_custom_call.1} parent=11 // pred_fallthru
        _
      // Predicated region
      $region21: #{tpu_custom_call.1} parent=11 // pred_check
        %p212 = pneg %p102
      $region22: #{tpu_custom_call.1} parent=11 // pred_check_branch
        %214 = sbr.rel (%p212) target = $region24
      $region23: #{tpu_custom_call.1} parent=11 // pred_region
        _
      $region24: #{tpu_custom_call.1} parent=11 // pred_fallthru
        _
      // Predicated region
      $region25: #{tpu_custom_call.1} parent=11 // pred_check
        %p215 = pneg %p123
      $region26: #{tpu_custom_call.1} parent=11 // pred_check_branch
        %217 = sbr.rel (%p215) target = $region28
      $region27: #{tpu_custom_call.1} parent=11 // pred_region
        _
      $region28: #{tpu_custom_call.1} parent=11 // pred_fallthru
        _
      // Predicated region
      $region29: #{tpu_custom_call.1} parent=11 // pred_check
        %p218 = pneg %p144
      $region30: #{tpu_custom_call.1} parent=11 // pred_check_branch
        %220 = sbr.rel (%p218) target = $region32
      $region31: #{tpu_custom_call.1} parent=11 // pred_region
        _
      $region32: #{tpu_custom_call.1} parent=11 // pred_fallthru
        _
      // Predicated region
      $region33: #{tpu_custom_call.1} parent=11 // pred_check
        %p221 = pneg %p165
      $region34: #{tpu_custom_call.1} parent=11 // pred_check_branch
        %223 = sbr.rel (%p221) target = $region36
      $region35: #{tpu_custom_call.1} parent=11 // pred_region
        _
      $region36: #{tpu_custom_call.1} parent=11 // pred_fallthru
        _
    $region12: #{tpu_custom_call.1} parent=5 // pred_fallthru
      _
    %p224 = scmp.lt.s32.totalorder %s13, 2
    // Predicated region
    $region37: #{tpu_custom_call.1} parent=5 // pred_check
      %p225 = pneg %p224
    $region38: #{tpu_custom_call.1} parent=5 // pred_check_branch
      %227 = sbr.rel (%p225) target = $region40
    $region39: #{tpu_custom_call.1} parent=5 // pred_region
      // Predicated region
      $region41: #{tpu_custom_call.1} parent=39 // pred_check
        %p228 = pneg %p33
      $region42: #{tpu_custom_call.1} parent=39 // pred_check_branch
        %230 = sbr.rel (%p228) target = $region44
      $region43: #{tpu_custom_call.1} parent=39 // pred_region
        %s231 = smul.u32 4, %s13
        %p232 = scmp.lt.s32.totalorder %s231, 7
        %s233 = scalar_select %p232, %s231, 7
        %s234 = smul.addr %s233, 8
        %s235 = scalar_lea.vmem %s0, %s234
        %s236 = smul.u32 4, %s13
      $region44: #{tpu_custom_call.1} parent=39 // pred_fallthru
        _
    $region40: #{tpu_custom_call.1} parent=5 // pred_fallthru
      _
    %p237 = scmp.le.s32.totalorder 1, %s13
    %p238 = scmp.lt.s32.totalorder %s13, 3
    %p239 = pnand %p237, %p238
    %p240 = pneg %p239
    // Predicated region
    $region45: #{tpu_custom_call.1} parent=5 // pred_check
      _
    $region46: #{tpu_custom_call.1} parent=5 // pred_check_branch
      %242 = sbr.rel (%p239) target = $region48
    $region47: #{tpu_custom_call.1} parent=5 // pred_region
      %s243 = ssub.s32 %s13, 1
      %s244 = smul.u32 4, %s18
      %p245 = scmp.lt.s32.totalorder %s244, 7
      %s246 = scalar_select %p245, %s244, 7
      %s247 = smul.addr %s246, 8
      %s248 = scalar_lea.vmem %s0, %s247
      %p249 = pneg %p39
      %p250 = pneg %p36
      %p251 = pneg %p60
      %p252 = pneg %p57
      %p253 = pneg %p81
      %p254 = pneg %p78
      %p255 = pneg %p102
      %p256 = pneg %p99
      %p257 = pneg %p123
      %p258 = pneg %p120
      %p259 = pneg %p144
      %p260 = pneg %p141
      %p261 = pneg %p165
      %p262 = pneg %p162
      %p263 = pneg %p191
      %p264 = pneg %p188
      %s265 = smul.u32 4, %s18
      %p266 = scmp.lt.s32.totalorder %s265, 7
      %s267 = scalar_select %p266, %s265, 7
      %s268 = smul.addr %s267, 8
      %s269 = scalar_lea.vmem %s7, %s268
      %s270 = smul.u32 4, %s18
      %p271 = scmp.lt.s32.totalorder %s270, 7
      %s272 = scalar_select %p271, %s270, 7
      %s273 = smul.addr %s272, 8
      %s274 = scalar_lea.vmem %s0, %s273
      %s275 = smul.u32 4, %s18
      %s276 = smul.u32 4, %s18
      %p277 = scmp.lt.s32.totalorder %s276, 7
      %s278 = scalar_select %p277, %s276, 7
      %s279 = smul.addr %s278, 8
      %s280 = scalar_lea.vmem %s7, %s279
      %s281 = smul.u32 4, %s18
      %v282 = vld [vmem:[%s274] sm:$0xff]
      %v283 = vld [vmem:[%s274 + $0x8] sm:$0xff]
      %v284 = vld [vmem:[%s274 + $0x10] sm:$0xff]
      %v285 = vld [vmem:[%s274 + $0x18] sm:$0xff]
      %v286 = vld [vmem:[%s1] sm:$0xff]
      %v287 = vld [vmem:[%s2] sm:$0xff]
      %v288 = vld [vmem:[%s2 + $0x8] sm:$0xff]
      %v289 = vld [vmem:[%s2 + $0x10] sm:$0xff]
      %v290 = vld [vmem:[%s2 + $0x18] sm:$0xff]
      %v291 = vld [vmem:[%s2 + $0x20] sm:$0xff]
      %v292 = vld [vmem:[%s2 + $0x28] sm:$0xff]
      %v293 = vld [vmem:[%s2 + $0x30] sm:$0xff]
      %v294 = vld [vmem:[%s2 + $0x38] sm:$0xff]
      %v295 = vld [vmem:[%s2 + $0x40] sm:$0xff]
      %v296 = vld [vmem:[%s2 + $0x48] sm:$0xff]
      %v297 = vld [vmem:[%s2 + $0x50] sm:$0xff]
      %v298 = vlaneseq
      %v299 = vand.u32 %v298, 127
      %v300 = vcvt.s32.f32 %v299
      %v301 = vadd.f32 %v300, 0.5
      %v302 = vrcp.pop 11.0
      %v303 = vmul.f32 %v301, %v302
      %v304 = vfloor.f32 %v303
      %v305 = vmul.f32 %v304, 11.0
      %v306 = vsub.f32 %v300, %v305
      %v307 = vlaneseq
      %v308 = vshrl.u32 %v307, 7
      %v309 = vcvt.s32.f32 %v308
      %vm310 = vcmp.eq.f32.partialorder %v309, %v304
      %v311 = vsel %vm310, 1.0, 0.0
      %vm312 = vcmask 64512
      %v314 = vsel %vm312, %v282, 0
      %v317 = vsel %vm312, %v283, 0
      %v320 = vsel %vm312, %v284, 0
      %v323 = vsel %vm312, %v285, 0
      %325 = vmatprep.subr.mxu0 0.0
      %326 = vmatpush1.msra.mxu0 0.0
      %327 = vmatprep.subr.mxu0 0.0
      %328 = vmatpush1.msra.mxu0 0.0
      %329 = vmatprep.subr.mxu0 0.0
      %330 = vmatpush1.msra.mxu0 0.0
      %331 = vmatprep.subr.mxu0 0.0
      %332 = vmatpush1.msra.mxu0 0.0
      %333 = vmatprep.subr.mxu0 0.0
      %334 = vmatpush1.msra.mxu0 0.0
      %335 = vmatprep.subr.mxu0 0.0
      %336 = vmatpush1.msra.mxu0 0.0
      %337 = vmatprep.subr.mxu0 0.0
      %338 = vmatpush1.msra.mxu0 0.0
      %339 = vmatprep.subr.mxu0 0.0
      %340 = vmatpush1.msra.mxu0 0.0
      %341 = vmatprep.subr.mxu0 0.0
      %342 = vmatpush1.msra.mxu0 0.0
      %343 = vmatprep.subr.mxu0 0.0
      %344 = vmatpush1.msra.mxu0 0.0
      %345 = vmatprep.subr.mxu0 0.0
      %346 = vmatpush1.msra.mxu0 0.0
      %347 = vmatprep.subr.mxu0 0.0
      %348 = vmatpush1.msra.mxu0 0.0
      %349 = vmatprep.subr.mxu0 0.0
      %350 = vmatpush1.msra.mxu0 0.0
      %351 = vmatprep.subr.mxu0 0.0
      %352 = vmatpush1.msra.mxu0 0.0
      %353 = vmatprep.subr.mxu0 0.0
      %354 = vmatpush1.msra.mxu0 0.0
      %355 = vmatprep.subr.mxu0 0.0
      %356 = vmatpush1.msra.mxu0 %v311
      %357 = vmatprep.subr.mxu0 0.0
      %358 = vmatpush2.msra.mxu0 0.0
      %359 = vmatprep.subr.mxu0 0.0
      %360 = vmatpush2.msra.mxu0 0.0
      %361 = vmatprep.subr.mxu0 0.0
      %362 = vmatpush2.msra.mxu0 0.0
      %363 = vmatprep.subr.mxu0 0.0
      %364 = vmatpush2.msra.mxu0 0.0
      %365 = vmatprep.subr.mxu0 0.0
      %366 = vmatpush2.msra.mxu0 0.0
      %367 = vmatprep.subr.mxu0 0.0
      %368 = vmatpush2.msra.mxu0 0.0
      %369 = vmatprep.subr.mxu0 0.0
      %370 = vmatpush2.msra.mxu0 0.0
      %371 = vmatprep.subr.mxu0 0.0
      %372 = vmatpush2.msra.mxu0 0.0
      %373 = vmatprep.subr.mxu0 0.0
      %374 = vmatpush2.msra.mxu0 0.0
      %375 = vmatprep.subr.mxu0 0.0
      %376 = vmatpush2.msra.mxu0 0.0
      %377 = vmatprep.subr.mxu0 0.0
      %378 = vmatpush2.msra.mxu0 0.0
      %379 = vmatprep.subr.mxu0 0.0
      %380 = vmatpush2.msra.mxu0 0.0
      %381 = vmatprep.subr.mxu0 0.0
      %382 = vmatpush2.msra.mxu0 0.0
      %383 = vmatprep.subr.mxu0 0.0
      %384 = vmatpush2.msra.mxu0 0.0
      %385 = vmatprep.subr.mxu0 0.0
      %386 = vmatpush2.msra.mxu0 0.0
      %387 = vmatprep.subr.mxu0 0.0
      %388 = vmatpush2.msra.mxu0 0.0
      %389 = vmatprep.mubr.f32.mxu0 0.0
      %390 = vmatmul.mubr.f32.gmra.mxu0 %v314
      %v391 = vpop.f32.mrf.mxu0
      %v392 = vadd.f32 0.0, %v391
      %v393 = vpop.f32.mrf.mxu0
      %394 = vmatprep.mubr.f32.mxu0 0.0
      %395 = vmatmul.mubr.f32.gmra.mxu0 %v317
      %v396 = vpop.f32.mrf.mxu0
      %v397 = vadd.f32 0.0, %v396
      %v398 = vpop.f32.mrf.mxu0
      %399 = vmatprep.mubr.f32.mxu0 0.0
      %400 = vmatmul.mubr.f32.gmra.mxu0 %v320
      %v401 = vpop.f32.mrf.mxu0
      %v402 = vadd.f32 0.0, %v401
      %v403 = vpop.f32.mrf.mxu0
      %404 = vmatprep.mubr.f32.mxu0 0.0
      %405 = vmatmul.mubr.f32.gmra.mxu0 %v323
      %v406 = vpop.f32.mrf.mxu0
      %v407 = vadd.f32 0.0, %v406
      %v408 = vpop.f32.mrf.mxu0
      %409 = vdwg.mxu0
      %v410 = vsub.f32 %v306, 3.0
      %v411 = vmul.f32 %v410, 0.4
      %v412 = vsub.f32 %v411, 1.0
      %v413 = vadd.f32 %v306, 1.0
      %v414 = vsub.f32 %v413, 3.0
      %v415 = vmul.f32 %v414, 0.4
      %v416 = vsub.f32 %v415, 1.0
      %vm417 = vcmp.ge.f32.partialorder %v392, %v412
      %vm418 = vcmp.ge.f32.partialorder %v397, %v412
      %vm419 = vcmp.ge.f32.partialorder %v402, %v412
      %vm420 = vcmp.ge.f32.partialorder %v407, %v412
      %vm421 = vcmp.lt.f32.partialorder %v392, %v416
      %vm422 = vcmp.lt.f32.partialorder %v397, %v416
      %vm423 = vcmp.lt.f32.partialorder %v402, %v416
      %vm424 = vcmp.lt.f32.partialorder %v407, %v416
      %vm425 = vmand %vm417, %vm421
      %vm426 = vmand %vm418, %vm422
      %vm427 = vmand %vm419, %vm423
      %vm428 = vmand %vm420, %vm424
      %v429 = vsel %vm425, 1.0, 0.0
      %v430 = vsel %vm426, 1.0, 0.0
      %v431 = vsel %vm427, 1.0, 0.0
      %v432 = vsel %vm428, 1.0, 0.0
      %v433 = vsub.f32 %v392, %v412
      %v434 = vsub.f32 %v397, %v412
      %v435 = vsub.f32 %v402, %v412
      %v436 = vsub.f32 %v407, %v412
      %vm437 = vcmp.lt.f32.partialorder %v306, 10.0
      %v438 = vsel %vm437, 1.0, 0.0
      %v439 = vadd.f32 %v306, 2.0
      %v440 = vmin.f32 %v439, 11.0
      %v441 = vsub.f32 %v440, 3.0
      %v442 = vmul.f32 %v441, 0.4
      %v443 = vsub.f32 %v442, 1.0
      %448 = vrot.lane.b32.xlu0 %v429, 127
      %v449 = vpop.permute.xlu0 %448
      %450 = vrot.lane.b32.xlu0 %v430, 127
      %v451 = vpop.permute.xlu0 %450
      %452 = vrot.lane.b32.xlu0 %v431, 127
      %v453 = vpop.permute.xlu0 %452
      %454 = vrot.lane.b32.xlu0 %v432, 127
      %v455 = vpop.permute.xlu0 %454
      %vm460 = vcmask 711680
      %v461 = vsel %vm460, %v449, 0.0
      %v462 = vsel %vm460, %v451, 0.0
      %v463 = vsel %vm460, %v453, 0.0
      %v464 = vsel %vm460, %v455, 0.0
      %v465 = vmul.f32 %v461, %v438
      %v466 = vmul.f32 %v462, %v438
      %v467 = vmul.f32 %v463, %v438
      %v468 = vmul.f32 %v464, %v438
      %v469 = vmul.f32 %v433, 2.5
      %v470 = vmul.f32 %v434, 2.5
      %v471 = vmul.f32 %v435, 2.5
      %v472 = vmul.f32 %v436, 2.5
      %v473 = vmul.f32 %v469, %v429
      %v474 = vmul.f32 %v470, %v430
      %v475 = vmul.f32 %v471, %v431
      %v476 = vmul.f32 %v472, %v432
      %v477 = vsub.f32 %v443, %v392
      %v478 = vsub.f32 %v443, %v397
      %v479 = vsub.f32 %v443, %v402
      %v480 = vsub.f32 %v443, %v407
      %v481 = vmul.f32 %v477, 2.5
      %v482 = vmul.f32 %v478, 2.5
      %v483 = vmul.f32 %v479, 2.5
      %v484 = vmul.f32 %v480, 2.5
      %v485 = vmul.f32 %v481, %v465
      %v486 = vmul.f32 %v482, %v466
      %v487 = vmul.f32 %v483, %v467
      %v488 = vmul.f32 %v484, %v468
      %v489 = vadd.f32 %v473, %v485
      %v490 = vadd.f32 %v474, %v486
      %v491 = vadd.f32 %v475, %v487
      %v492 = vadd.f32 %v476, %v488
      %v493 = vadd.f32 %v306, 3.0
      %v494 = vmin.f32 %v493, 11.0
      %v495 = vsub.f32 %v494, 3.0
      %v496 = vmul.f32 %v495, 0.4
      %v497 = vsub.f32 %v496, 1.0
      %502 = vrot.lane.b32.xlu0 %v489, 127
      %v503 = vpop.permute.xlu0 %502
      %504 = vrot.lane.b32.xlu0 %v490, 127
      %v505 = vpop.permute.xlu0 %504
      %506 = vrot.lane.b32.xlu0 %v491, 127
      %v507 = vpop.permute.xlu0 %506
      %508 = vrot.lane.b32.xlu0 %v492, 127
      %v509 = vpop.permute.xlu0 %508
      %v514 = vsel %vm460, %v503, 0.0
      %v515 = vsel %vm460, %v505, 0.0
      %v516 = vsel %vm460, %v507, 0.0
      %v517 = vsel %vm460, %v509, 0.0
      %v518 = vmul.f32 %v514, %v438
      %v519 = vmul.f32 %v515, %v438
      %v520 = vmul.f32 %v516, %v438
      %v521 = vmul.f32 %v517, %v438
      %v522 = vmul.f32 %v433, 1.25
      %v523 = vmul.f32 %v434, 1.25
      %v524 = vmul.f32 %v435, 1.25
      %v525 = vmul.f32 %v436, 1.25
      %v526 = vmul.f32 %v522, %v489
      %v527 = vmul.f32 %v523, %v490
      %v528 = vmul.f32 %v524, %v491
      %v529 = vmul.f32 %v525, %v492
      %v530 = vsub.f32 %v497, %v392
      %v531 = vsub.f32 %v497, %v397
      %v532 = vsub.f32 %v497, %v402
      %v533 = vsub.f32 %v497, %v407
      %v534 = vmul.f32 %v530, 1.25
      %v535 = vmul.f32 %v531, 1.25
      %v536 = vmul.f32 %v532, 1.25
      %v537 = vmul.f32 %v533, 1.25
      %v538 = vmul.f32 %v534, %v518
      %v539 = vmul.f32 %v535, %v519
      %v540 = vmul.f32 %v536, %v520
      %v541 = vmul.f32 %v537, %v521
      %v542 = vadd.f32 %v526, %v538
      %v543 = vadd.f32 %v527, %v539
      %v544 = vadd.f32 %v528, %v540
      %v545 = vadd.f32 %v529, %v541
      %v546 = vadd.f32 %v306, 4.0
      %v547 = vmin.f32 %v546, 11.0
      %v548 = vsub.f32 %v547, 3.0
      %v549 = vmul.f32 %v548, 0.4
      %v550 = vsub.f32 %v549, 1.0
      %555 = vrot.lane.b32.xlu0 %v542, 127
      %v556 = vpop.permute.xlu0 %555
      %557 = vrot.lane.b32.xlu0 %v543, 127
      %v558 = vpop.permute.xlu0 %557
      %559 = vrot.lane.b32.xlu0 %v544, 127
      %v560 = vpop.permute.xlu0 %559
      %561 = vrot.lane.b32.xlu0 %v545, 127
      %v562 = vpop.permute.xlu0 %561
      %v567 = vsel %vm460, %v556, 0.0
      %v568 = vsel %vm460, %v558, 0.0
      %v569 = vsel %vm460, %v560, 0.0
      %v570 = vsel %vm460, %v562, 0.0
      %v571 = vmul.f32 %v567, %v438
      %v572 = vmul.f32 %v568, %v438
      %v573 = vmul.f32 %v569, %v438
      %v574 = vmul.f32 %v570, %v438
      %v575 = vmul.f32 %v433, 0.8333333
      %v576 = vmul.f32 %v434, 0.8333333
      %v577 = vmul.f32 %v435, 0.8333333
      %v578 = vmul.f32 %v436, 0.8333333
      %v579 = vmul.f32 %v575, %v542
      %v580 = vmul.f32 %v576, %v543
      %v581 = vmul.f32 %v577, %v544
      %v582 = vmul.f32 %v578, %v545
      %v583 = vsub.f32 %v550, %v392
      %v584 = vsub.f32 %v550, %v397
      %v585 = vsub.f32 %v550, %v402
      %v586 = vsub.f32 %v550, %v407
      %v587 = vmul.f32 %v583, 0.8333333
      %v588 = vmul.f32 %v584, 0.8333333
      %v589 = vmul.f32 %v585, 0.8333333
      %v590 = vmul.f32 %v586, 0.8333333
      %v591 = vmul.f32 %v587, %v571
      %v592 = vmul.f32 %v588, %v572
      %v593 = vmul.f32 %v589, %v573
      %v594 = vmul.f32 %v590, %v574
      %v595 = vadd.f32 %v579, %v591
      %v596 = vadd.f32 %v580, %v592
      %v597 = vadd.f32 %v581, %v593
      %v598 = vadd.f32 %v582, %v594
      %v599 = vxor.u32 %v282, 2147483648
      %v600 = vxor.u32 %v283, 2147483648
      %v601 = vxor.u32 %v284, 2147483648
      %v602 = vxor.u32 %v285, 2147483648
      %v603 = vmul.f32 %v599, 1.442695
      %v604 = vpow.pop %v603
      %v605 = vmul.f32 %v600, 1.442695
      %v606 = vpow.pop %v605
      %v607 = vmul.f32 %v601, 1.442695
      %v608 = vpow.pop %v607
      %v609 = vmul.f32 %v602, 1.442695
      %v610 = vpow.pop %v609
      %v611 = vadd.f32 %v604, 1.0
      %v612 = vadd.f32 %v606, 1.0
      %v613 = vadd.f32 %v608, 1.0
      %v614 = vadd.f32 %v610, 1.0
      %v615 = vrcp.pop %v611
      %v616 = vmul.f32 1.0, %v615
      %v617 = vrcp.pop %v612
      %v618 = vmul.f32 1.0, %v617
      %v619 = vrcp.pop %v613
      %v620 = vmul.f32 1.0, %v619
      %v621 = vrcp.pop %v614
      %v622 = vmul.f32 1.0, %v621
      %v623 = vmul.f32 %v282, %v616
      %v624 = vmul.f32 %v283, %v618
      %v625 = vmul.f32 %v284, %v620
      %v626 = vmul.f32 %v285, %v622
      %vm627 = vcmask 719872
      %v629 = vsel %vm627, %v595, 0
      %v632 = vsel %vm627, %v596, 0
      %v635 = vsel %vm627, %v597, 0
      %v638 = vsel %vm627, %v598, 0
      %640 = vmatprep.subr.mxu0 0.0
      %641 = vmatpush1.msra.mxu0 0.0
      %642 = vmatprep.subr.mxu0 0.0
      %643 = vmatpush1.msra.mxu0 0.0
      %644 = vmatprep.subr.mxu0 0.0
      %645 = vmatpush1.msra.mxu0 0.0
      %646 = vmatprep.subr.mxu0 0.0
      %647 = vmatpush1.msra.mxu0 0.0
      %648 = vmatprep.subr.mxu0 0.0
      %649 = vmatpush1.msra.mxu0 0.0
      %650 = vmatprep.subr.mxu0 0.0
      %651 = vmatpush1.msra.mxu0 %v297
      %652 = vmatprep.subr.mxu0 0.0
      %653 = vmatpush1.msra.mxu0 %v296
      %654 = vmatprep.subr.mxu0 0.0
      %655 = vmatpush1.msra.mxu0 %v295
      %656 = vmatprep.subr.mxu0 0.0
      %657 = vmatpush1.msra.mxu0 %v294
      %658 = vmatprep.subr.mxu0 0.0
      %659 = vmatpush1.msra.mxu0 %v293
      %660 = vmatprep.subr.mxu0 0.0
      %661 = vmatpush1.msra.mxu0 %v292
      %662 = vmatprep.subr.mxu0 0.0
      %663 = vmatpush1.msra.mxu0 %v291
      %664 = vmatprep.subr.mxu0 0.0
      %665 = vmatpush1.msra.mxu0 %v290
      %666 = vmatprep.subr.mxu0 0.0
      %667 = vmatpush1.msra.mxu0 %v289
      %668 = vmatprep.subr.mxu0 0.0
      %669 = vmatpush1.msra.mxu0 %v288
      %670 = vmatprep.subr.mxu0 0.0
      %671 = vmatpush1.msra.mxu0 %v287
      %672 = vmatprep.subr.mxu0 0.0
      %673 = vmatpush2.msra.mxu0 0.0
      %674 = vmatprep.subr.mxu0 0.0
      %675 = vmatpush2.msra.mxu0 0.0
      %676 = vmatprep.subr.mxu0 0.0
      %677 = vmatpush2.msra.mxu0 0.0
      %678 = vmatprep.subr.mxu0 0.0
      %679 = vmatpush2.msra.mxu0 0.0
      %680 = vmatprep.subr.mxu0 0.0
      %681 = vmatpush2.msra.mxu0 0.0
      %682 = vmatprep.subr.mxu0 0.0
      %683 = vmatpush2.msra.mxu0 0.0
      %684 = vmatprep.subr.mxu0 0.0
      %685 = vmatpush2.msra.mxu0 0.0
      %686 = vmatprep.subr.mxu0 0.0
      %687 = vmatpush2.msra.mxu0 0.0
      %688 = vmatprep.subr.mxu0 0.0
      %689 = vmatpush2.msra.mxu0 0.0
      %690 = vmatprep.subr.mxu0 0.0
      %691 = vmatpush2.msra.mxu0 0.0
      %692 = vmatprep.subr.mxu0 0.0
      %693 = vmatpush2.msra.mxu0 0.0
      %694 = vmatprep.subr.mxu0 0.0
      %695 = vmatpush2.msra.mxu0 0.0
      %696 = vmatprep.subr.mxu0 0.0
      %697 = vmatpush2.msra.mxu0 0.0
      %698 = vmatprep.subr.mxu0 0.0
      %699 = vmatpush2.msra.mxu0 0.0
      %700 = vmatprep.subr.mxu0 0.0
      %701 = vmatpush2.msra.mxu0 0.0
      %702 = vmatprep.subr.mxu0 0.0
      %703 = vmatpush2.msra.mxu0 0.0
      %704 = vmatprep.mubr.f32.mxu0 0.0
      %705 = vmatmul.mubr.f32.gmra.mxu0 %v629
      %v706 = vpop.f32.mrf.mxu0
      %v707 = vadd.f32 0.0, %v706
      %v708 = vpop.f32.mrf.mxu0
      %709 = vmatprep.mubr.f32.mxu0 0.0
      %710 = vmatmul.mubr.f32.gmra.mxu0 %v632
      %v711 = vpop.f32.mrf.mxu0
      %v712 = vadd.f32 0.0, %v711
      %v713 = vpop.f32.mrf.mxu0
      %714 = vmatprep.mubr.f32.mxu0 0.0
      %715 = vmatmul.mubr.f32.gmra.mxu0 %v635
      %v716 = vpop.f32.mrf.mxu0
      %v717 = vadd.f32 0.0, %v716
      %v718 = vpop.f32.mrf.mxu0
      %719 = vmatprep.mubr.f32.mxu0 0.0
      %720 = vmatmul.mubr.f32.gmra.mxu0 %v638
      %v721 = vpop.f32.mrf.mxu0
      %v722 = vadd.f32 0.0, %v721
      %v723 = vpop.f32.mrf.mxu0
      %724 = vdwg.mxu0
      %v726 = vsel %vm312, %v623, 0
      %v729 = vsel %vm312, %v624, 0
      %v732 = vsel %vm312, %v625, 0
      %v735 = vsel %vm312, %v626, 0
      %737 = vmatprep.subr.mxu0 0.0
      %738 = vmatpush1.msra.mxu0 0.0
      %739 = vmatprep.subr.mxu0 0.0
      %740 = vmatpush1.msra.mxu0 0.0
      %741 = vmatprep.subr.mxu0 0.0
      %742 = vmatpush1.msra.mxu0 0.0
      %743 = vmatprep.subr.mxu0 0.0
      %744 = vmatpush1.msra.mxu0 0.0
      %745 = vmatprep.subr.mxu0 0.0
      %746 = vmatpush1.msra.mxu0 0.0
      %747 = vmatprep.subr.mxu0 0.0
      %748 = vmatpush1.msra.mxu0 0.0
      %749 = vmatprep.subr.mxu0 0.0
      %750 = vmatpush1.msra.mxu0 0.0
      %751 = vmatprep.subr.mxu0 0.0
      %752 = vmatpush1.msra.mxu0 0.0
      %753 = vmatprep.subr.mxu0 0.0
      %754 = vmatpush1.msra.mxu0 0.0
      %755 = vmatprep.subr.mxu0 0.0
      %756 = vmatpush1.msra.mxu0 0.0
      %757 = vmatprep.subr.mxu0 0.0
      %758 = vmatpush1.msra.mxu0 0.0
      %759 = vmatprep.subr.mxu0 0.0
      %760 = vmatpush1.msra.mxu0 0.0
      %761 = vmatprep.subr.mxu0 0.0
      %762 = vmatpush1.msra.mxu0 0.0
      %763 = vmatprep.subr.mxu0 0.0
      %764 = vmatpush1.msra.mxu0 0.0
      %765 = vmatprep.subr.mxu0 0.0
      %766 = vmatpush1.msra.mxu0 0.0
      %767 = vmatprep.subr.mxu0 0.0
      %768 = vmatpush1.msra.mxu0 %v286
      %769 = vmatprep.subr.mxu0 0.0
      %770 = vmatpush2.msra.mxu0 0.0
      %771 = vmatprep.subr.mxu0 0.0
      %772 = vmatpush2.msra.mxu0 0.0
      %773 = vmatprep.subr.mxu0 0.0
      %774 = vmatpush2.msra.mxu0 0.0
      %775 = vmatprep.subr.mxu0 0.0
      %776 = vmatpush2.msra.mxu0 0.0
      %777 = vmatprep.subr.mxu0 0.0
      %778 = vmatpush2.msra.mxu0 0.0
      %779 = vmatprep.subr.mxu0 0.0
      %780 = vmatpush2.msra.mxu0 0.0
      %781 = vmatprep.subr.mxu0 0.0
      %782 = vmatpush2.msra.mxu0 0.0
      %783 = vmatprep.subr.mxu0 0.0
      %784 = vmatpush2.msra.mxu0 0.0
      %785 = vmatprep.subr.mxu0 0.0
      %786 = vmatpush2.msra.mxu0 0.0
      %787 = vmatprep.subr.mxu0 0.0
      %788 = vmatpush2.msra.mxu0 0.0
      %789 = vmatprep.subr.mxu0 0.0
      %790 = vmatpush2.msra.mxu0 0.0
      %791 = vmatprep.subr.mxu0 0.0
      %792 = vmatpush2.msra.mxu0 0.0
      %793 = vmatprep.subr.mxu0 0.0
      %794 = vmatpush2.msra.mxu0 0.0
      %795 = vmatprep.subr.mxu0 0.0
      %796 = vmatpush2.msra.mxu0 0.0
      %797 = vmatprep.subr.mxu0 0.0
      %798 = vmatpush2.msra.mxu0 0.0
      %799 = vmatprep.subr.mxu0 0.0
      %800 = vmatpush2.msra.mxu0 0.0
      %801 = vmatprep.mubr.f32.mxu0 0.0
      %802 = vmatmul.mubr.f32.gmra.mxu0 %v726
      %v803 = vpop.f32.mrf.mxu0
      %v804 = vadd.f32 %v707, %v803
      %v805 = vpop.f32.mrf.mxu0
      %806 = vmatprep.mubr.f32.mxu0 0.0
      %807 = vmatmul.mubr.f32.gmra.mxu0 %v729
      %v808 = vpop.f32.mrf.mxu0
      %v809 = vadd.f32 %v712, %v808
      %v810 = vpop.f32.mrf.mxu0
      %811 = vmatprep.mubr.f32.mxu0 0.0
      %812 = vmatmul.mubr.f32.gmra.mxu0 %v732
      %v813 = vpop.f32.mrf.mxu0
      %v814 = vadd.f32 %v717, %v813
      %v815 = vpop.f32.mrf.mxu0
      %816 = vmatprep.mubr.f32.mxu0 0.0
      %817 = vmatmul.mubr.f32.gmra.mxu0 %v735
      %v818 = vpop.f32.mrf.mxu0
      %v819 = vadd.f32 %v722, %v818
      %v820 = vpop.f32.mrf.mxu0
      %821 = vdwg.mxu0
      %v822 = vld [vmem:[%s3] sm:$0xff]
      %v823 = vld [vmem:[%s3 + $0x8] sm:$0xff]
      %v824 = vld [vmem:[%s3 + $0x10] sm:$0xff]
      %v825 = vld [vmem:[%s3 + $0x18] sm:$0xff]
      %v826 = vld [vmem:[%s4] sm:$0xff]
      %v827 = vld [vmem:[%s4 + $0x8] sm:$0xff]
      %v828 = vld [vmem:[%s4 + $0x10] sm:$0xff]
      %v829 = vld [vmem:[%s4 + $0x18] sm:$0xff]
      %v830 = vld [vmem:[%s4 + $0x20] sm:$0xff]
      %v831 = vld [vmem:[%s4 + $0x28] sm:$0xff]
      %v832 = vld [vmem:[%s4 + $0x30] sm:$0xff]
      %v833 = vld [vmem:[%s4 + $0x38] sm:$0xff]
      %v834 = vld [vmem:[%s4 + $0x40] sm:$0xff]
      %v835 = vld [vmem:[%s4 + $0x48] sm:$0xff]
      %v836 = vld [vmem:[%s4 + $0x50] sm:$0xff]
      %v837 = vld [vmem:[%s4 + $0x58] sm:$0xff]
      %v838 = vld [vmem:[%s4 + $0x60] sm:$0xff]
      %v839 = vld [vmem:[%s4 + $0x68] sm:$0xff]
      %v840 = vld [vmem:[%s4 + $0x70] sm:$0xff]
      %v841 = vld [vmem:[%s4 + $0x78] sm:$0xff]
      %v842 = vld [vmem:[%s4 + $0x80] sm:$0xff]
      %v843 = vld [vmem:[%s4 + $0x88] sm:$0xff]
      %v844 = vld [vmem:[%s4 + $0x90] sm:$0xff]
      %v845 = vld [vmem:[%s4 + $0x98] sm:$0xff]
      %v846 = vld [vmem:[%s4 + $0xa0] sm:$0xff]
      %v847 = vld [vmem:[%s4 + $0xa8] sm:$0xff]
      %v848 = vld [vmem:[%s4 + $0xb0] sm:$0xff]
      %v849 = vld [vmem:[%s4 + $0xb8] sm:$0xff]
      %v850 = vld [vmem:[%s4 + $0xc0] sm:$0xff]
      %v851 = vld [vmem:[%s4 + $0xc8] sm:$0xff]
      %v852 = vld [vmem:[%s4 + $0xd0] sm:$0xff]
      %v853 = vld [vmem:[%s4 + $0xd8] sm:$0xff]
      %v854 = vld [vmem:[%s4 + $0xe0] sm:$0xff]
      %v855 = vld [vmem:[%s4 + $0xe8] sm:$0xff]
      %v856 = vld [vmem:[%s4 + $0xf0] sm:$0xff]
      %v857 = vld [vmem:[%s4 + $0xf8] sm:$0xff]
      %v858 = vld [vmem:[%s4 + $0x100] sm:$0xff]
      %v859 = vld [vmem:[%s4 + $0x108] sm:$0xff]
      %v860 = vld [vmem:[%s4 + $0x110] sm:$0xff]
      %v861 = vld [vmem:[%s4 + $0x118] sm:$0xff]
      %v862 = vld [vmem:[%s4 + $0x120] sm:$0xff]
      %v863 = vld [vmem:[%s4 + $0x128] sm:$0xff]
      %v864 = vld [vmem:[%s4 + $0x130] sm:$0xff]
      %v865 = vld [vmem:[%s4 + $0x138] sm:$0xff]
      %v866 = vld [vmem:[%s4 + $0x140] sm:$0xff]
      %v867 = vld [vmem:[%s4 + $0x148] sm:$0xff]
      %v868 = vld [vmem:[%s4 + $0x150] sm:$0xff]
      %v869 = vld [vmem:[%s4 + $0x158] sm:$0xff]
      %v870 = vadd.s32 %v299, 128
      %v871 = vadd.s32 %v299, 256
      %v872 = vcvt.s32.f32 %v870
      %v873 = vcvt.s32.f32 %v871
      %v874 = vadd.f32 %v872, 0.5
      %v875 = vadd.f32 %v873, 0.5
      %v876 = vmul.f32 %v874, %v302
      %v877 = vmul.f32 %v875, %v302
      %v878 = vfloor.f32 %v876
      %v879 = vfloor.f32 %v877
      %v880 = vmul.f32 %v878, 11.0
      %v881 = vmul.f32 %v879, 11.0
      %v882 = vsub.f32 %v872, %v880
      %v883 = vsub.f32 %v873, %v881
      %v884 = vadd.s32 %v308, 8
      %v885 = vadd.s32 %v308, 16
      %v886 = vadd.s32 %v308, 24
      %v887 = vcvt.s32.f32 %v884
      %v888 = vcvt.s32.f32 %v885
      %v889 = vcvt.s32.f32 %v886
      %vm890 = vcmp.eq.f32.partialorder %v309, %v878
      %vm891 = vcmp.eq.f32.partialorder %v309, %v879
      %vm892 = vcmp.eq.f32.partialorder %v887, %v304
      %vm893 = vcmp.eq.f32.partialorder %v887, %v878
      %vm894 = vcmp.eq.f32.partialorder %v887, %v879
      %vm895 = vcmp.eq.f32.partialorder %v888, %v304
      %vm896 = vcmp.eq.f32.partialorder %v888, %v878
      %vm897 = vcmp.eq.f32.partialorder %v888, %v879
      %vm898 = vcmp.eq.f32.partialorder %v889, %v304
      %vm899 = vcmp.eq.f32.partialorder %v889, %v878
      %vm900 = vcmp.eq.f32.partialorder %v889, %v879
      %v901 = vsel %vm890, 1.0, 0.0
      %v902 = vsel %vm891, 1.0, 0.0
      %v903 = vsel %vm892, 1.0, 0.0
      %v904 = vsel %vm893, 1.0, 0.0
      %v905 = vsel %vm894, 1.0, 0.0
      %v906 = vsel %vm895, 1.0, 0.0
      %v907 = vsel %vm896, 1.0, 0.0
      %v908 = vsel %vm897, 1.0, 0.0
      %v909 = vsel %vm898, 1.0, 0.0
      %v910 = vsel %vm899, 1.0, 0.0
      %v911 = vsel %vm900, 1.0, 0.0
      %vm912 = vcmask 261120
      %v914 = vsel %vm912, %v804, 0
      %v917 = vsel %vm912, %v809, 0
      %v920 = vsel %vm912, %v814, 0
      %v923 = vsel %vm912, %v819, 0
      %925 = vmatprep.subr.mxu0 0.0
      %926 = vmatpush1.msra.mxu0 0.0
      %927 = vmatprep.subr.mxu0 0.0
      %928 = vmatpush1.msra.mxu0 0.0
      %929 = vmatprep.subr.mxu0 0.0
      %930 = vmatpush1.msra.mxu0 0.0
      %931 = vmatprep.subr.mxu0 0.0
      %932 = vmatpush1.msra.mxu0 0.0
      %933 = vmatprep.subr.mxu0 0.0
      %934 = vmatpush1.msra.mxu0 0.0
      %935 = vmatprep.subr.mxu0 0.0
      %936 = vmatpush1.msra.mxu0 0.0
      %937 = vmatprep.subr.mxu0 0.0
      %938 = vmatpush1.msra.mxu0 0.0
      %939 = vmatprep.subr.mxu0 0.0
      %940 = vmatpush1.msra.mxu0 0.0
      %941 = vmatprep.subr.mxu0 0.0
      %942 = vmatpush1.msra.mxu0 0.0
      %943 = vmatprep.subr.mxu0 0.0
      %944 = vmatpush1.msra.mxu0 0.0
      %945 = vmatprep.subr.mxu0 0.0
      %946 = vmatpush1.msra.mxu0 0.0
      %947 = vmatprep.subr.mxu0 0.0
      %948 = vmatpush1.msra.mxu0 0.0
      %949 = vmatprep.subr.mxu0 %v910
      %950 = vmatpush1.msra.mxu0 %v909
      %951 = vmatprep.subr.mxu0 %v907
      %952 = vmatpush1.msra.mxu0 %v906
      %953 = vmatprep.subr.mxu0 %v904
      %954 = vmatpush1.msra.mxu0 %v903
      %955 = vmatprep.subr.mxu0 %v901
      %956 = vmatpush1.msra.mxu0 %v311
      %957 = vmatprep.subr.mxu0 0.0
      %958 = vmatpush2.msra.mxu0 0.0
      %959 = vmatprep.subr.mxu0 0.0
      %960 = vmatpush2.msra.mxu0 0.0
      %961 = vmatprep.subr.mxu0 0.0
      %962 = vmatpush2.msra.mxu0 0.0
      %963 = vmatprep.subr.mxu0 0.0
      %964 = vmatpush2.msra.mxu0 0.0
      %965 = vmatprep.subr.mxu0 0.0
      %966 = vmatpush2.msra.mxu0 0.0
      %967 = vmatprep.subr.mxu0 0.0
      %968 = vmatpush2.msra.mxu0 0.0
      %969 = vmatprep.subr.mxu0 0.0
      %970 = vmatpush2.msra.mxu0 0.0
      %971 = vmatprep.subr.mxu0 0.0
      %972 = vmatpush2.msra.mxu0 0.0
      %973 = vmatprep.subr.mxu0 0.0
      %974 = vmatpush2.msra.mxu0 0.0
      %975 = vmatprep.subr.mxu0 0.0
      %976 = vmatpush2.msra.mxu0 0.0
      %977 = vmatprep.subr.mxu0 0.0
      %978 = vmatpush2.msra.mxu0 0.0
      %979 = vmatprep.subr.mxu0 0.0
      %980 = vmatpush2.msra.mxu0 0.0
      %981 = vmatprep.subr.mxu0 0.0
      %982 = vmatpush2.msra.mxu0 0.0
      %983 = vmatprep.subr.mxu0 0.0
      %984 = vmatpush2.msra.mxu0 0.0
      %985 = vmatprep.subr.mxu0 0.0
      %986 = vmatpush2.msra.mxu0 0.0
      %987 = vmatprep.subr.mxu0 0.0
      %988 = vmatpush2.msra.mxu0 0.0
      %989 = vmatprep.mubr.f32.mxu0 0.0
      %990 = vmatmul.mubr.f32.gmra.mxu0 %v914
      %v991 = vpop.f32.mrf.mxu0
      %v992 = vadd.f32 0.0, %v991
      %v993 = vpop.f32.mrf.mxu0
      %v994 = vadd.f32 0.0, %v993
      %995 = vmatprep.mubr.f32.mxu0 0.0
      %996 = vmatmul.mubr.f32.gmra.mxu0 %v917
      %v997 = vpop.f32.mrf.mxu0
      %v998 = vadd.f32 0.0, %v997
      %v999 = vpop.f32.mrf.mxu0
      %v1000 = vadd.f32 0.0, %v999
      %1001 = vmatprep.mubr.f32.mxu0 0.0
      %1002 = vmatmul.mubr.f32.gmra.mxu0 %v920
      %v1003 = vpop.f32.mrf.mxu0
      %v1004 = vadd.f32 0.0, %v1003
      %v1005 = vpop.f32.mrf.mxu0
      %v1006 = vadd.f32 0.0, %v1005
      %1007 = vmatprep.mubr.f32.mxu0 0.0
      %1008 = vmatmul.mubr.f32.gmra.mxu0 %v923
      %v1009 = vpop.f32.mrf.mxu0
      %v1010 = vadd.f32 0.0, %v1009
      %v1011 = vpop.f32.mrf.mxu0
      %v1012 = vadd.f32 0.0, %v1011
      %1013 = vdwg.mxu0
      %1014 = vmatprep.subr.mxu0 0.0
      %1015 = vmatpush1.msra.mxu0 0.0
      %1016 = vmatprep.subr.mxu0 0.0
      %1017 = vmatpush1.msra.mxu0 0.0
      %1018 = vmatprep.subr.mxu0 0.0
      %1019 = vmatpush1.msra.mxu0 0.0
      %1020 = vmatprep.subr.mxu0 0.0
      %1021 = vmatpush1.msra.mxu0 0.0
      %1022 = vmatprep.subr.mxu0 0.0
      %1023 = vmatpush1.msra.mxu0 0.0
      %1024 = vmatprep.subr.mxu0 0.0
      %1025 = vmatpush1.msra.mxu0 0.0
      %1026 = vmatprep.subr.mxu0 0.0
      %1027 = vmatpush1.msra.mxu0 0.0
      %1028 = vmatprep.subr.mxu0 0.0
      %1029 = vmatpush1.msra.mxu0 0.0
      %1030 = vmatprep.subr.mxu0 0.0
      %1031 = vmatpush1.msra.mxu0 0.0
      %1032 = vmatprep.subr.mxu0 0.0
      %1033 = vmatpush1.msra.mxu0 0.0
      %1034 = vmatprep.subr.mxu0 0.0
      %1035 = vmatpush1.msra.mxu0 0.0
      %1036 = vmatprep.subr.mxu0 0.0
      %1037 = vmatpush1.msra.mxu0 0.0
      %1038 = vmatprep.subr.mxu0 0.0
      %1039 = vmatpush1.msra.mxu0 %v911
      %1040 = vmatprep.subr.mxu0 0.0
      %1041 = vmatpush1.msra.mxu0 %v908
      %1042 = vmatprep.subr.mxu0 0.0
      %1043 = vmatpush1.msra.mxu0 %v905
      %1044 = vmatprep.subr.mxu0 0.0
      %1045 = vmatpush1.msra.mxu0 %v902
      %1046 = vmatprep.subr.mxu0 0.0
      %1047 = vmatpush2.msra.mxu0 0.0
      %1048 = vmatprep.subr.mxu0 0.0
      %1049 = vmatpush2.msra.mxu0 0.0
      %1050 = vmatprep.subr.mxu0 0.0
      %1051 = vmatpush2.msra.mxu0 0.0
      %1052 = vmatprep.subr.mxu0 0.0
      %1053 = vmatpush2.msra.mxu0 0.0
      %1054 = vmatprep.subr.mxu0 0.0
      %1055 = vmatpush2.msra.mxu0 0.0
      %1056 = vmatprep.subr.mxu0 0.0
      %1057 = vmatpush2.msra.mxu0 0.0
      %1058 = vmatprep.subr.mxu0 0.0
      %1059 = vmatpush2.msra.mxu0 0.0
      %1060 = vmatprep.subr.mxu0 0.0
      %1061 = vmatpush2.msra.mxu0 0.0
      %1062 = vmatprep.subr.mxu0 0.0
      %1063 = vmatpush2.msra.mxu0 0.0
      %1064 = vmatprep.subr.mxu0 0.0
      %1065 = vmatpush2.msra.mxu0 0.0
      %1066 = vmatprep.subr.mxu0 0.0
      %1067 = vmatpush2.msra.mxu0 0.0
      %1068 = vmatprep.subr.mxu0 0.0
      %1069 = vmatpush2.msra.mxu0 0.0
      %1070 = vmatprep.subr.mxu0 0.0
      %1071 = vmatpush2.msra.mxu0 0.0
      %1072 = vmatprep.subr.mxu0 0.0
      %1073 = vmatpush2.msra.mxu0 0.0
      %1074 = vmatprep.subr.mxu0 0.0
      %1075 = vmatpush2.msra.mxu0 0.0
      %1076 = vmatprep.subr.mxu0 0.0
      %1077 = vmatpush2.msra.mxu0 0.0
      %1078 = vmatprep.mubr.f32.mxu0 0.0
      %1079 = vmatmul.mubr.f32.gmra.mxu0 %v914
      %v1080 = vpop.f32.mrf.mxu0
      %v1081 = vadd.f32 0.0, %v1080
      %v1082 = vpop.f32.mrf.mxu0
      %1083 = vmatprep.mubr.f32.mxu0 0.0
      %1084 = vmatmul.mubr.f32.gmra.mxu0 %v917
      %v1085 = vpop.f32.mrf.mxu0
      %v1086 = vadd.f32 0.0, %v1085
      %v1087 = vpop.f32.mrf.mxu0
      %1088 = vmatprep.mubr.f32.mxu0 0.0
      %1089 = vmatmul.mubr.f32.gmra.mxu0 %v920
      %v1090 = vpop.f32.mrf.mxu0
      %v1091 = vadd.f32 0.0, %v1090
      %v1092 = vpop.f32.mrf.mxu0
      %1093 = vmatprep.mubr.f32.mxu0 0.0
      %1094 = vmatmul.mubr.f32.gmra.mxu0 %v923
      %v1095 = vpop.f32.mrf.mxu0
      %v1096 = vadd.f32 0.0, %v1095
      %v1097 = vpop.f32.mrf.mxu0
      %1098 = vdwg.mxu0
      %v1099 = vsub.f32 %v882, 3.0
      %v1100 = vsub.f32 %v883, 3.0
      %v1101 = vmul.f32 %v1099, 0.4
      %v1102 = vmul.f32 %v1100, 0.4
      %v1103 = vsub.f32 %v1101, 1.0
      %v1104 = vsub.f32 %v1102, 1.0
      %v1105 = vadd.f32 %v882, 1.0
      %v1106 = vadd.f32 %v883, 1.0
      %v1107 = vsub.f32 %v1105, 3.0
      %v1108 = vsub.f32 %v1106, 3.0
      %v1109 = vmul.f32 %v1107, 0.4
      %v1110 = vmul.f32 %v1108, 0.4
      %v1111 = vsub.f32 %v1109, 1.0
      %v1112 = vsub.f32 %v1110, 1.0
      %vm1113 = vcmp.ge.f32.partialorder %v992, %v412
      %vm1114 = vcmp.ge.f32.partialorder %v994, %v1103
      %vm1115 = vcmp.ge.f32.partialorder %v1081, %v1104
      %vm1116 = vcmp.ge.f32.partialorder %v998, %v412
      %vm1117 = vcmp.ge.f32.partialorder %v1000, %v1103
      %vm1118 = vcmp.ge.f32.partialorder %v1086, %v1104
      %vm1119 = vcmp.ge.f32.partialorder %v1004, %v412
      %vm1120 = vcmp.ge.f32.partialorder %v1006, %v1103
      %vm1121 = vcmp.ge.f32.partialorder %v1091, %v1104
      %vm1122 = vcmp.ge.f32.partialorder %v1010, %v412
      %vm1123 = vcmp.ge.f32.partialorder %v1012, %v1103
      %vm1124 = vcmp.ge.f32.partialorder %v1096, %v1104
      %vm1125 = vcmp.lt.f32.partialorder %v992, %v416
      %vm1126 = vcmp.lt.f32.partialorder %v994, %v1111
      %vm1127 = vcmp.lt.f32.partialorder %v1081, %v1112
      %vm1128 = vcmp.lt.f32.partialorder %v998, %v416
      %vm1129 = vcmp.lt.f32.partialorder %v1000, %v1111
      %vm1130 = vcmp.lt.f32.partialorder %v1086, %v1112
      %vm1131 = vcmp.lt.f32.partialorder %v1004, %v416
      %vm1132 = vcmp.lt.f32.partialorder %v1006, %v1111
      %vm1133 = vcmp.lt.f32.partialorder %v1091, %v1112
      %vm1134 = vcmp.lt.f32.partialorder %v1010, %v416
      %vm1135 = vcmp.lt.f32.partialorder %v1012, %v1111
      %vm1136 = vcmp.lt.f32.partialorder %v1096, %v1112
      %vm1137 = vmand %vm1113, %vm1125
      %vm1138 = vmand %vm1114, %vm1126
      %vm1139 = vmand %vm1115, %vm1127
      %vm1140 = vmand %vm1116, %vm1128
      %vm1141 = vmand %vm1117, %vm1129
      %vm1142 = vmand %vm1118, %vm1130
      %vm1143 = vmand %vm1119, %vm1131
      %vm1144 = vmand %vm1120, %vm1132
      %vm1145 = vmand %vm1121, %vm1133
      %vm1146 = vmand %vm1122, %vm1134
      %vm1147 = vmand %vm1123, %vm1135
      %vm1148 = vmand %vm1124, %vm1136
      %v1149 = vsel %vm1137, 1.0, 0.0
      %v1150 = vsel %vm1138, 1.0, 0.0
      %v1151 = vsel %vm1139, 1.0, 0.0
      %v1152 = vsel %vm1140, 1.0, 0.0
      %v1153 = vsel %vm1141, 1.0, 0.0
      %v1154 = vsel %vm1142, 1.0, 0.0
      %v1155 = vsel %vm1143, 1.0, 0.0
      %v1156 = vsel %vm1144, 1.0, 0.0
      %v1157 = vsel %vm1145, 1.0, 0.0
      %v1158 = vsel %vm1146, 1.0, 0.0
      %v1159 = vsel %vm1147, 1.0, 0.0
      %v1160 = vsel %vm1148, 1.0, 0.0
      %v1161 = vsub.f32 %v992, %v412
      %v1162 = vsub.f32 %v994, %v1103
      %v1163 = vsub.f32 %v1081, %v1104
      %v1164 = vsub.f32 %v998, %v412
      %v1165 = vsub.f32 %v1000, %v1103
      %v1166 = vsub.f32 %v1086, %v1104
      %v1167 = vsub.f32 %v1004, %v412
      %v1168 = vsub.f32 %v1006, %v1103
      %v1169 = vsub.f32 %v1091, %v1104
      %v1170 = vsub.f32 %v1010, %v412
      %v1171 = vsub.f32 %v1012, %v1103
      %v1172 = vsub.f32 %v1096, %v1104
      %vm1173 = vcmp.lt.f32.partialorder %v882, 10.0
      %vm1174 = vcmp.lt.f32.partialorder %v883, 10.0
      %v1175 = vsel %vm1173, 1.0, 0.0
      %v1176 = vsel %vm1174, 1.0, 0.0
      %v1177 = vadd.f32 %v882, 2.0
      %v1178 = vadd.f32 %v883, 2.0
      %v1179 = vmin.f32 %v1177, 11.0
      %v1180 = vmin.f32 %v1178, 11.0
      %v1181 = vsub.f32 %v1179, 3.0
      %v1182 = vsub.f32 %v1180, 3.0
      %v1183 = vmul.f32 %v1181, 0.4
      %v1184 = vmul.f32 %v1182, 0.4
      %v1185 = vsub.f32 %v1183, 1.0
      %v1186 = vsub.f32 %v1184, 1.0
      %1199 = vrot.lane.b32.xlu0 %v1149, 127
      %v1200 = vpop.permute.xlu0 %1199
      %1201 = vrot.lane.b32.xlu0 %v1150, 127
      %v1202 = vpop.permute.xlu0 %1201
      %1203 = vrot.lane.b32.xlu0 %v1151, 127
      %v1204 = vpop.permute.xlu0 %1203
      %1205 = vrot.lane.b32.xlu0 %v1152, 127
      %v1206 = vpop.permute.xlu0 %1205
      %1207 = vrot.lane.b32.xlu0 %v1153, 127
      %v1208 = vpop.permute.xlu0 %1207
      %1209 = vrot.lane.b32.xlu0 %v1154, 127
      %v1210 = vpop.permute.xlu0 %1209
      %1211 = vrot.lane.b32.xlu0 %v1155, 127
      %v1212 = vpop.permute.xlu0 %1211
      %1213 = vrot.lane.b32.xlu0 %v1156, 127
      %v1214 = vpop.permute.xlu0 %1213
      %1215 = vrot.lane.b32.xlu0 %v1157, 127
      %v1216 = vpop.permute.xlu0 %1215
      %1217 = vrot.lane.b32.xlu0 %v1158, 127
      %v1218 = vpop.permute.xlu0 %1217
      %1219 = vrot.lane.b32.xlu0 %v1159, 127
      %v1220 = vpop.permute.xlu0 %1219
      %1221 = vrot.lane.b32.xlu0 %v1160, 127
      %v1222 = vpop.permute.xlu0 %1221
      %vm1223 = vcmask 1039360
      %v1224 = vsel %vm1223, %v1200, %v1202
      %v1225 = vsel %vm1223, %v1202, %v1204
      %v1226 = vsel %vm1223, %v1206, %v1208
      %v1227 = vsel %vm1223, %v1208, %v1210
      %v1228 = vsel %vm1223, %v1212, %v1214
      %v1229 = vsel %vm1223, %v1214, %v1216
      %v1230 = vsel %vm1223, %v1218, %v1220
      %v1231 = vsel %vm1223, %v1220, %v1222
      %vm1244 = vcmask 777216
      %v1245 = vsel %vm1244, %v1204, 0.0
      %v1246 = vsel %vm1244, %v1210, 0.0
      %v1247 = vsel %vm1244, %v1216, 0.0
      %v1248 = vsel %vm1244, %v1222, 0.0
      %v1249 = vmul.f32 %v1224, %v438
      %v1250 = vmul.f32 %v1225, %v1175
      %v1251 = vmul.f32 %v1245, %v1176
      %v1252 = vmul.f32 %v1226, %v438
      %v1253 = vmul.f32 %v1227, %v1175
      %v1254 = vmul.f32 %v1246, %v1176
      %v1255 = vmul.f32 %v1228, %v438
      %v1256 = vmul.f32 %v1229, %v1175
      %v1257 = vmul.f32 %v1247, %v1176
      %v1258 = vmul.f32 %v1230, %v438
      %v1259 = vmul.f32 %v1231, %v1175
      %v1260 = vmul.f32 %v1248, %v1176
      %v1261 = vmul.f32 %v1161, 2.5
      %v1262 = vmul.f32 %v1162, 2.5
      %v1263 = vmul.f32 %v1163, 2.5
      %v1264 = vmul.f32 %v1164, 2.5
      %v1265 = vmul.f32 %v1165, 2.5
      %v1266 = vmul.f32 %v1166, 2.5
      %v1267 = vmul.f32 %v1167, 2.5
      %v1268 = vmul.f32 %v1168, 2.5
      %v1269 = vmul.f32 %v1169, 2.5
      %v1270 = vmul.f32 %v1170, 2.5
      %v1271 = vmul.f32 %v1171, 2.5
      %v1272 = vmul.f32 %v1172, 2.5
      %v1273 = vmul.f32 %v1261, %v1149
      %v1274 = vmul.f32 %v1262, %v1150
      %v1275 = vmul.f32 %v1263, %v1151
      %v1276 = vmul.f32 %v1264, %v1152
      %v1277 = vmul.f32 %v1265, %v1153
      %v1278 = vmul.f32 %v1266, %v1154
      %v1279 = vmul.f32 %v1267, %v1155
      %v1280 = vmul.f32 %v1268, %v1156
      %v1281 = vmul.f32 %v1269, %v1157
      %v1282 = vmul.f32 %v1270, %v1158
      %v1283 = vmul.f32 %v1271, %v1159
      %v1284 = vmul.f32 %v1272, %v1160
      %v1285 = vsub.f32 %v443, %v992
      %v1286 = vsub.f32 %v1185, %v994
      %v1287 = vsub.f32 %v1186, %v1081
      %v1288 = vsub.f32 %v443, %v998
      %v1289 = vsub.f32 %v1185, %v1000
      %v1290 = vsub.f32 %v1186, %v1086
      %v1291 = vsub.f32 %v443, %v1004
      %v1292 = vsub.f32 %v1185, %v1006
      %v1293 = vsub.f32 %v1186, %v1091
      %v1294 = vsub.f32 %v443, %v1010
      %v1295 = vsub.f32 %v1185, %v1012
      %v1296 = vsub.f32 %v1186, %v1096
      %v1297 = vmul.f32 %v1285, 2.5
      %v1298 = vmul.f32 %v1286, 2.5
      %v1299 = vmul.f32 %v1287, 2.5
      %v1300 = vmul.f32 %v1288, 2.5
      %v1301 = vmul.f32 %v1289, 2.5
      %v1302 = vmul.f32 %v1290, 2.5
      %v1303 = vmul.f32 %v1291, 2.5
      %v1304 = vmul.f32 %v1292, 2.5
      %v1305 = vmul.f32 %v1293, 2.5
      %v1306 = vmul.f32 %v1294, 2.5
      %v1307 = vmul.f32 %v1295, 2.5
      %v1308 = vmul.f32 %v1296, 2.5
      %v1309 = vmul.f32 %v1297, %v1249
      %v1310 = vmul.f32 %v1298, %v1250
      %v1311 = vmul.f32 %v1299, %v1251
      %v1312 = vmul.f32 %v1300, %v1252
      %v1313 = vmul.f32 %v1301, %v1253
      %v1314 = vmul.f32 %v1302, %v1254
      %v1315 = vmul.f32 %v1303, %v1255
      %v1316 = vmul.f32 %v1304, %v1256
      %v1317 = vmul.f32 %v1305, %v1257
      %v1318 = vmul.f32 %v1306, %v1258
      %v1319 = vmul.f32 %v1307, %v1259
      %v1320 = vmul.f32 %v1308, %v1260
      %v1321 = vadd.f32 %v1273, %v1309
      %v1322 = vadd.f32 %v1274, %v1310
      %v1323 = vadd.f32 %v1275, %v1311
      %v1324 = vadd.f32 %v1276, %v1312
      %v1325 = vadd.f32 %v1277, %v1313
      %v1326 = vadd.f32 %v1278, %v1314
      %v1327 = vadd.f32 %v1279, %v1315
      %v1328 = vadd.f32 %v1280, %v1316
      %v1329 = vadd.f32 %v1281, %v1317
      %v1330 = vadd.f32 %v1282, %v1318
      %v1331 = vadd.f32 %v1283, %v1319
      %v1332 = vadd.f32 %v1284, %v1320
      %v1333 = vadd.f32 %v882, 3.0
      %v1334 = vadd.f32 %v883, 3.0
      %v1335 = vmin.f32 %v1333, 11.0
      %v1336 = vmin.f32 %v1334, 11.0
      %v1337 = vsub.f32 %v1335, 3.0
      %v1338 = vsub.f32 %v1336, 3.0
      %v1339 = vmul.f32 %v1337, 0.4
      %v1340 = vmul.f32 %v1338, 0.4
      %v1341 = vsub.f32 %v1339, 1.0
      %v1342 = vsub.f32 %v1340, 1.0
      %1355 = vrot.lane.b32.xlu0 %v1321, 127
      %v1356 = vpop.permute.xlu0 %1355
      %1357 = vrot.lane.b32.xlu0 %v1322, 127
      %v1358 = vpop.permute.xlu0 %1357
      %1359 = vrot.lane.b32.xlu0 %v1323, 127
      %v1360 = vpop.permute.xlu0 %1359
      %1361 = vrot.lane.b32.xlu0 %v1324, 127
      %v1362 = vpop.permute.xlu0 %1361
      %1363 = vrot.lane.b32.xlu0 %v1325, 127
      %v1364 = vpop.permute.xlu0 %1363
      %1365 = vrot.lane.b32.xlu0 %v1326, 127
      %v1366 = vpop.permute.xlu0 %1365
      %1367 = vrot.lane.b32.xlu0 %v1327, 127
      %v1368 = vpop.permute.xlu0 %1367
      %1369 = vrot.lane.b32.xlu0 %v1328, 127
      %v1370 = vpop.permute.xlu0 %1369
      %1371 = vrot.lane.b32.xlu0 %v1329, 127
      %v1372 = vpop.permute.xlu0 %1371
      %1373 = vrot.lane.b32.xlu0 %v1330, 127
      %v1374 = vpop.permute.xlu0 %1373
      %1375 = vrot.lane.b32.xlu0 %v1331, 127
      %v1376 = vpop.permute.xlu0 %1375
      %1377 = vrot.lane.b32.xlu0 %v1332, 127
      %v1378 = vpop.permute.xlu0 %1377
      %v1379 = vsel %vm1223, %v1356, %v1358
      %v1380 = vsel %vm1223, %v1358, %v1360
      %v1381 = vsel %vm1223, %v1362, %v1364
      %v1382 = vsel %vm1223, %v1364, %v1366
      %v1383 = vsel %vm1223, %v1368, %v1370
      %v1384 = vsel %vm1223, %v1370, %v1372
      %v1385 = vsel %vm1223, %v1374, %v1376
      %v1386 = vsel %vm1223, %v1376, %v1378
      %v1399 = vsel %vm1244, %v1360, 0.0
      %v1400 = vsel %vm1244, %v1366, 0.0
      %v1401 = vsel %vm1244, %v1372, 0.0
      %v1402 = vsel %vm1244, %v1378, 0.0
      %v1403 = vmul.f32 %v1379, %v438
      %v1404 = vmul.f32 %v1380, %v1175
      %v1405 = vmul.f32 %v1399, %v1176
      %v1406 = vmul.f32 %v1381, %v438
      %v1407 = vmul.f32 %v1382, %v1175
      %v1408 = vmul.f32 %v1400, %v1176
      %v1409 = vmul.f32 %v1383, %v438
      %v1410 = vmul.f32 %v1384, %v1175
      %v1411 = vmul.f32 %v1401, %v1176
      %v1412 = vmul.f32 %v1385, %v438
      %v1413 = vmul.f32 %v1386, %v1175
      %v1414 = vmul.f32 %v1402, %v1176
      %v1415 = vmul.f32 %v1161, 1.25
      %v1416 = vmul.f32 %v1162, 1.25
      %v1417 = vmul.f32 %v1163, 1.25
      %v1418 = vmul.f32 %v1164, 1.25
      %v1419 = vmul.f32 %v1165, 1.25
      %v1420 = vmul.f32 %v1166, 1.25
      %v1421 = vmul.f32 %v1167, 1.25
      %v1422 = vmul.f32 %v1168, 1.25
      %v1423 = vmul.f32 %v1169, 1.25
      %v1424 = vmul.f32 %v1170, 1.25
      %v1425 = vmul.f32 %v1171, 1.25
      %v1426 = vmul.f32 %v1172, 1.25
      %v1427 = vmul.f32 %v1415, %v1321
      %v1428 = vmul.f32 %v1416, %v1322
      %v1429 = vmul.f32 %v1417, %v1323
      %v1430 = vmul.f32 %v1418, %v1324
      %v1431 = vmul.f32 %v1419, %v1325
      %v1432 = vmul.f32 %v1420, %v1326
      %v1433 = vmul.f32 %v1421, %v1327
      %v1434 = vmul.f32 %v1422, %v1328
      %v1435 = vmul.f32 %v1423, %v1329
      %v1436 = vmul.f32 %v1424, %v1330
      %v1437 = vmul.f32 %v1425, %v1331
      %v1438 = vmul.f32 %v1426, %v1332
      %v1439 = vsub.f32 %v497, %v992
      %v1440 = vsub.f32 %v1341, %v994
      %v1441 = vsub.f32 %v1342, %v1081
      %v1442 = vsub.f32 %v497, %v998
      %v1443 = vsub.f32 %v1341, %v1000
      %v1444 = vsub.f32 %v1342, %v1086
      %v1445 = vsub.f32 %v497, %v1004
      %v1446 = vsub.f32 %v1341, %v1006
      %v1447 = vsub.f32 %v1342, %v1091
      %v1448 = vsub.f32 %v497, %v1010
      %v1449 = vsub.f32 %v1341, %v1012
      %v1450 = vsub.f32 %v1342, %v1096
      %v1451 = vmul.f32 %v1439, 1.25
      %v1452 = vmul.f32 %v1440, 1.25
      %v1453 = vmul.f32 %v1441, 1.25
      %v1454 = vmul.f32 %v1442, 1.25
      %v1455 = vmul.f32 %v1443, 1.25
      %v1456 = vmul.f32 %v1444, 1.25
      %v1457 = vmul.f32 %v1445, 1.25
      %v1458 = vmul.f32 %v1446, 1.25
      %v1459 = vmul.f32 %v1447, 1.25
      %v1460 = vmul.f32 %v1448, 1.25
      %v1461 = vmul.f32 %v1449, 1.25
      %v1462 = vmul.f32 %v1450, 1.25
      %v1463 = vmul.f32 %v1451, %v1403
      %v1464 = vmul.f32 %v1452, %v1404
      %v1465 = vmul.f32 %v1453, %v1405
      %v1466 = vmul.f32 %v1454, %v1406
      %v1467 = vmul.f32 %v1455, %v1407
      %v1468 = vmul.f32 %v1456, %v1408
      %v1469 = vmul.f32 %v1457, %v1409
      %v1470 = vmul.f32 %v1458, %v1410
      %v1471 = vmul.f32 %v1459, %v1411
      %v1472 = vmul.f32 %v1460, %v1412
      %v1473 = vmul.f32 %v1461, %v1413
      %v1474 = vmul.f32 %v1462, %v1414
      %v1475 = vadd.f32 %v1427, %v1463
      %v1476 = vadd.f32 %v1428, %v1464
      %v1477 = vadd.f32 %v1429, %v1465
      %v1478 = vadd.f32 %v1430, %v1466
      %v1479 = vadd.f32 %v1431, %v1467
      %v1480 = vadd.f32 %v1432, %v1468
      %v1481 = vadd.f32 %v1433, %v1469
      %v1482 = vadd.f32 %v1434, %v1470
      %v1483 = vadd.f32 %v1435, %v1471
      %v1484 = vadd.f32 %v1436, %v1472
      %v1485 = vadd.f32 %v1437, %v1473
      %v1486 = vadd.f32 %v1438, %v1474
      %v1487 = vadd.f32 %v882, 4.0
      %v1488 = vadd.f32 %v883, 4.0
      %v1489 = vmin.f32 %v1487, 11.0
      %v1490 = vmin.f32 %v1488, 11.0
      %v1491 = vsub.f32 %v1489, 3.0
      %v1492 = vsub.f32 %v1490, 3.0
      %v1493 = vmul.f32 %v1491, 0.4
      %v1494 = vmul.f32 %v1492, 0.4
      %v1495 = vsub.f32 %v1493, 1.0
      %v1496 = vsub.f32 %v1494, 1.0
      %1509 = vrot.lane.b32.xlu0 %v1475, 127
      %v1510 = vpop.permute.xlu0 %1509
      %1511 = vrot.lane.b32.xlu0 %v1476, 127
      %v1512 = vpop.permute.xlu0 %1511
      %1513 = vrot.lane.b32.xlu0 %v1477, 127
      %v1514 = vpop.permute.xlu0 %1513
      %1515 = vrot.lane.b32.xlu0 %v1478, 127
      %v1516 = vpop.permute.xlu0 %1515
      %1517 = vrot.lane.b32.xlu0 %v1479, 127
      %v1518 = vpop.permute.xlu0 %1517
      %1519 = vrot.lane.b32.xlu0 %v1480, 127
      %v1520 = vpop.permute.xlu0 %1519
      %1521 = vrot.lane.b32.xlu0 %v1481, 127
      %v1522 = vpop.permute.xlu0 %1521
      %1523 = vrot.lane.b32.xlu0 %v1482, 127
      %v1524 = vpop.permute.xlu0 %1523
      %1525 = vrot.lane.b32.xlu0 %v1483, 127
      %v1526 = vpop.permute.xlu0 %1525
      %1527 = vrot.lane.b32.xlu0 %v1484, 127
      %v1528 = vpop.permute.xlu0 %1527
      %1529 = vrot.lane.b32.xlu0 %v1485, 127
      %v1530 = vpop.permute.xlu0 %1529
      %1531 = vrot.lane.b32.xlu0 %v1486, 127
      %v1532 = vpop.permute.xlu0 %1531
      %v1533 = vsel %vm1223, %v1510, %v1512
      %v1534 = vsel %vm1223, %v1512, %v1514
      %v1535 = vsel %vm1223, %v1516, %v1518
      %v1536 = vsel %vm1223, %v1518, %v1520
      %v1537 = vsel %vm1223, %v1522, %v1524
      %v1538 = vsel %vm1223, %v1524, %v1526
      %v1539 = vsel %vm1223, %v1528, %v1530
      %v1540 = vsel %vm1223, %v1530, %v1532
      %v1553 = vsel %vm1244, %v1514, 0.0
      %v1554 = vsel %vm1244, %v1520, 0.0
      %v1555 = vsel %vm1244, %v1526, 0.0
      %v1556 = vsel %vm1244, %v1532, 0.0
      %v1557 = vmul.f32 %v1533, %v438
      %v1558 = vmul.f32 %v1534, %v1175
      %v1559 = vmul.f32 %v1553, %v1176
      %v1560 = vmul.f32 %v1535, %v438
      %v1561 = vmul.f32 %v1536, %v1175
      %v1562 = vmul.f32 %v1554, %v1176
      %v1563 = vmul.f32 %v1537, %v438
      %v1564 = vmul.f32 %v1538, %v1175
      %v1565 = vmul.f32 %v1555, %v1176
      %v1566 = vmul.f32 %v1539, %v438
      %v1567 = vmul.f32 %v1540, %v1175
      %v1568 = vmul.f32 %v1556, %v1176
      %v1569 = vmul.f32 %v1161, 0.8333333
      %v1570 = vmul.f32 %v1162, 0.8333333
      %v1571 = vmul.f32 %v1163, 0.8333333
      %v1572 = vmul.f32 %v1164, 0.8333333
      %v1573 = vmul.f32 %v1165, 0.8333333
      %v1574 = vmul.f32 %v1166, 0.8333333
      %v1575 = vmul.f32 %v1167, 0.8333333
      %v1576 = vmul.f32 %v1168, 0.8333333
      %v1577 = vmul.f32 %v1169, 0.8333333
      %v1578 = vmul.f32 %v1170, 0.8333333
      %v1579 = vmul.f32 %v1171, 0.8333333
      %v1580 = vmul.f32 %v1172, 0.8333333
      %v1581 = vmul.f32 %v1569, %v1475
      %v1582 = vmul.f32 %v1570, %v1476
      %v1583 = vmul.f32 %v1571, %v1477
      %v1584 = vmul.f32 %v1572, %v1478
      %v1585 = vmul.f32 %v1573, %v1479
      %v1586 = vmul.f32 %v1574, %v1480
      %v1587 = vmul.f32 %v1575, %v1481
      %v1588 = vmul.f32 %v1576, %v1482
      %v1589 = vmul.f32 %v1577, %v1483
      %v1590 = vmul.f32 %v1578, %v1484
      %v1591 = vmul.f32 %v1579, %v1485
      %v1592 = vmul.f32 %v1580, %v1486
      %v1593 = vsub.f32 %v550, %v992
      %v1594 = vsub.f32 %v1495, %v994
      %v1595 = vsub.f32 %v1496, %v1081
      %v1596 = vsub.f32 %v550, %v998
      %v1597 = vsub.f32 %v1495, %v1000
      %v1598 = vsub.f32 %v1496, %v1086
      %v1599 = vsub.f32 %v550, %v1004
      %v1600 = vsub.f32 %v1495, %v1006
      %v1601 = vsub.f32 %v1496, %v1091
      %v1602 = vsub.f32 %v550, %v1010
      %v1603 = vsub.f32 %v1495, %v1012
      %v1604 = vsub.f32 %v1496, %v1096
      %v1605 = vmul.f32 %v1593, 0.8333333
      %v1606 = vmul.f32 %v1594, 0.8333333
      %v1607 = vmul.f32 %v1595, 0.8333333
      %v1608 = vmul.f32 %v1596, 0.8333333
      %v1609 = vmul.f32 %v1597, 0.8333333
      %v1610 = vmul.f32 %v1598, 0.8333333
      %v1611 = vmul.f32 %v1599, 0.8333333
      %v1612 = vmul.f32 %v1600, 0.8333333
      %v1613 = vmul.f32 %v1601, 0.8333333
      %v1614 = vmul.f32 %v1602, 0.8333333
      %v1615 = vmul.f32 %v1603, 0.8333333
      %v1616 = vmul.f32 %v1604, 0.8333333
      %v1617 = vmul.f32 %v1605, %v1557
      %v1618 = vmul.f32 %v1606, %v1558
      %v1619 = vmul.f32 %v1607, %v1559
      %v1620 = vmul.f32 %v1608, %v1560
      %v1621 = vmul.f32 %v1609, %v1561
      %v1622 = vmul.f32 %v1610, %v1562
      %v1623 = vmul.f32 %v1611, %v1563
      %v1624 = vmul.f32 %v1612, %v1564
      %v1625 = vmul.f32 %v1613, %v1565
      %v1626 = vmul.f32 %v1614, %v1566
      %v1627 = vmul.f32 %v1615, %v1567
      %v1628 = vmul.f32 %v1616, %v1568
      %v1629 = vadd.f32 %v1581, %v1617
      %v1630 = vadd.f32 %v1582, %v1618
      %v1631 = vadd.f32 %v1583, %v1619
      %v1632 = vadd.f32 %v1584, %v1620
      %v1633 = vadd.f32 %v1585, %v1621
      %v1634 = vadd.f32 %v1586, %v1622
      %v1635 = vadd.f32 %v1587, %v1623
      %v1636 = vadd.f32 %v1588, %v1624
      %v1637 = vadd.f32 %v1589, %v1625
      %v1638 = vadd.f32 %v1590, %v1626
      %v1639 = vadd.f32 %v1591, %v1627
      %v1640 = vadd.f32 %v1592, %v1628
      %v1641 = vxor.u32 %v804, 2147483648
      %v1642 = vxor.u32 %v809, 2147483648
      %v1643 = vxor.u32 %v814, 2147483648
      %v1644 = vxor.u32 %v819, 2147483648
      %v1645 = vmul.f32 %v1641, 1.442695
      %v1646 = vpow.pop %v1645
      %v1647 = vmul.f32 %v1642, 1.442695
      %v1648 = vpow.pop %v1647
      %v1649 = vmul.f32 %v1643, 1.442695
      %v1650 = vpow.pop %v1649
      %v1651 = vmul.f32 %v1644, 1.442695
      %v1652 = vpow.pop %v1651
      %v1653 = vadd.f32 %v1646, 1.0
      %v1654 = vadd.f32 %v1648, 1.0
      %v1655 = vadd.f32 %v1650, 1.0
      %v1656 = vadd.f32 %v1652, 1.0
      %v1657 = vrcp.pop %v1653
      %v1658 = vmul.f32 1.0, %v1657
      %v1659 = vrcp.pop %v1654
      %v1660 = vmul.f32 1.0, %v1659
      %v1661 = vrcp.pop %v1655
      %v1662 = vmul.f32 1.0, %v1661
      %v1663 = vrcp.pop %v1656
      %v1664 = vmul.f32 1.0, %v1663
      %v1665 = vmul.f32 %v804, %v1658
      %v1666 = vmul.f32 %v809, %v1660
      %v1667 = vmul.f32 %v814, %v1662
      %v1668 = vmul.f32 %v819, %v1664
      %vm1669 = vcmask 785408
      %v1671 = vsel %vm1669, %v1631, 0
      %v1674 = vsel %vm1669, %v1634, 0
      %v1677 = vsel %vm1669, %v1637, 0
      %v1680 = vsel %vm1669, %v1640, 0
      %1682 = vmatprep.subr.mxu0 0.0
      %1683 = vmatpush1.msra.mxu0 %v841
      %1684 = vmatprep.subr.mxu0 0.0
      %1685 = vmatpush1.msra.mxu0 %v840
      %1686 = vmatprep.subr.mxu0 0.0
      %1687 = vmatpush1.msra.mxu0 %v839
      %1688 = vmatprep.subr.mxu0 0.0
      %1689 = vmatpush1.msra.mxu0 %v838
      %1690 = vmatprep.subr.mxu0 0.0
      %1691 = vmatpush1.msra.mxu0 %v837
      %1692 = vmatprep.subr.mxu0 0.0
      %1693 = vmatpush1.msra.mxu0 %v836
      %1694 = vmatprep.subr.mxu0 0.0
      %1695 = vmatpush1.msra.mxu0 %v835
      %1696 = vmatprep.subr.mxu0 0.0
      %1697 = vmatpush1.msra.mxu0 %v834
      %1698 = vmatprep.subr.mxu0 0.0
      %1699 = vmatpush1.msra.mxu0 %v833
      %1700 = vmatprep.subr.mxu0 0.0
      %1701 = vmatpush1.msra.mxu0 %v832
      %1702 = vmatprep.subr.mxu0 0.0
      %1703 = vmatpush1.msra.mxu0 %v831
      %1704 = vmatprep.subr.mxu0 0.0
      %1705 = vmatpush1.msra.mxu0 %v830
      %1706 = vmatprep.subr.mxu0 0.0
      %1707 = vmatpush1.msra.mxu0 %v829
      %1708 = vmatprep.subr.mxu0 0.0
      %1709 = vmatpush1.msra.mxu0 %v828
      %1710 = vmatprep.subr.mxu0 0.0
      %1711 = vmatpush1.msra.mxu0 %v827
      %1712 = vmatprep.subr.mxu0 0.0
      %1713 = vmatpush1.msra.mxu0 %v826
      %1714 = vmatprep.subr.mxu0 0.0
      %1715 = vmatpush2.msra.mxu0 %v857
      %1716 = vmatprep.subr.mxu0 0.0
      %1717 = vmatpush2.msra.mxu0 %v856
      %1718 = vmatprep.subr.mxu0 0.0
      %1719 = vmatpush2.msra.mxu0 %v855
      %1720 = vmatprep.subr.mxu0 0.0
      %1721 = vmatpush2.msra.mxu0 %v854
      %1722 = vmatprep.subr.mxu0 0.0
      %1723 = vmatpush2.msra.mxu0 %v853
      %1724 = vmatprep.subr.mxu0 0.0
      %1725 = vmatpush2.msra.mxu0 %v852
      %1726 = vmatprep.subr.mxu0 0.0
      %1727 = vmatpush2.msra.mxu0 %v851
      %1728 = vmatprep.subr.mxu0 0.0
      %1729 = vmatpush2.msra.mxu0 %v850
      %1730 = vmatprep.subr.mxu0 0.0
      %1731 = vmatpush2.msra.mxu0 %v849
      %1732 = vmatprep.subr.mxu0 0.0
      %1733 = vmatpush2.msra.mxu0 %v848
      %1734 = vmatprep.subr.mxu0 0.0
      %1735 = vmatpush2.msra.mxu0 %v847
      %1736 = vmatprep.subr.mxu0 0.0
      %1737 = vmatpush2.msra.mxu0 %v846
      %1738 = vmatprep.subr.mxu0 0.0
      %1739 = vmatpush2.msra.mxu0 %v845
      %1740 = vmatprep.subr.mxu0 0.0
      %1741 = vmatpush2.msra.mxu0 %v844
      %1742 = vmatprep.subr.mxu0 0.0
      %1743 = vmatpush2.msra.mxu0 %v843
      %1744 = vmatprep.subr.mxu0 0.0
      %1745 = vmatpush2.msra.mxu0 %v842
      %1746 = vmatprep.mubr.f32.mxu0 %v1630
      %1747 = vmatmul.mubr.f32.gmra.mxu0 %v1629
      %v1748 = vpop.f32.mrf.mxu0
      %v1749 = vadd.f32 0.0, %v1748
      %v1750 = vpop.f32.mrf.mxu0
      %1751 = vmatprep.mubr.f32.mxu0 %v1633
      %1752 = vmatmul.mubr.f32.gmra.mxu0 %v1632
      %v1753 = vpop.f32.mrf.mxu0
      %v1754 = vadd.f32 0.0, %v1753
      %v1755 = vpop.f32.mrf.mxu0
      %1756 = vmatprep.mubr.f32.mxu0 %v1636
      %1757 = vmatmul.mubr.f32.gmra.mxu0 %v1635
      %v1758 = vpop.f32.mrf.mxu0
      %v1759 = vadd.f32 0.0, %v1758
      %v1760 = vpop.f32.mrf.mxu0
      %1761 = vmatprep.mubr.f32.mxu0 %v1639
      %1762 = vmatmul.mubr.f32.gmra.mxu0 %v1638
      %v1763 = vpop.f32.mrf.mxu0
      %v1764 = vadd.f32 0.0, %v1763
      %v1765 = vpop.f32.mrf.mxu0
      %1766 = vdwg.mxu0
      %1767 = vmatprep.subr.mxu0 0.0
      %1768 = vmatpush1.msra.mxu0 0.0
      %1769 = vmatprep.subr.mxu0 0.0
      %1770 = vmatpush1.msra.mxu0 0.0
      %1771 = vmatprep.subr.mxu0 0.0
      %1772 = vmatpush1.msra.mxu0 0.0
      %1773 = vmatprep.subr.mxu0 0.0
      %1774 = vmatpush1.msra.mxu0 0.0
      %1775 = vmatprep.subr.mxu0 0.0
      %1776 = vmatpush1.msra.mxu0 %v869
      %1777 = vmatprep.subr.mxu0 0.0
      %1778 = vmatpush1.msra.mxu0 %v868
      %1779 = vmatprep.subr.mxu0 0.0
      %1780 = vmatpush1.msra.mxu0 %v867
      %1781 = vmatprep.subr.mxu0 0.0
      %1782 = vmatpush1.msra.mxu0 %v866
      %1783 = vmatprep.subr.mxu0 0.0
      %1784 = vmatpush1.msra.mxu0 %v865
      %1785 = vmatprep.subr.mxu0 0.0
      %1786 = vmatpush1.msra.mxu0 %v864
      %1787 = vmatprep.subr.mxu0 0.0
      %1788 = vmatpush1.msra.mxu0 %v863
      %1789 = vmatprep.subr.mxu0 0.0
      %1790 = vmatpush1.msra.mxu0 %v862
      %1791 = vmatprep.subr.mxu0 0.0
      %1792 = vmatpush1.msra.mxu0 %v861
      %1793 = vmatprep.subr.mxu0 0.0
      %1794 = vmatpush1.msra.mxu0 %v860
      %1795 = vmatprep.subr.mxu0 0.0
      %1796 = vmatpush1.msra.mxu0 %v859
      %1797 = vmatprep.subr.mxu0 0.0
      %1798 = vmatpush1.msra.mxu0 %v858
      %1799 = vmatprep.subr.mxu0 0.0
      %1800 = vmatpush2.msra.mxu0 0.0
      %1801 = vmatprep.subr.mxu0 0.0
      %1802 = vmatpush2.msra.mxu0 0.0
      %1803 = vmatprep.subr.mxu0 0.0
      %1804 = vmatpush2.msra.mxu0 0.0
      %1805 = vmatprep.subr.mxu0 0.0
      %1806 = vmatpush2.msra.mxu0 0.0
      %1807 = vmatprep.subr.mxu0 0.0
      %1808 = vmatpush2.msra.mxu0 0.0
      %1809 = vmatprep.subr.mxu0 0.0
      %1810 = vmatpush2.msra.mxu0 0.0
      %1811 = vmatprep.subr.mxu0 0.0
      %1812 = vmatpush2.msra.mxu0 0.0
      %1813 = vmatprep.subr.mxu0 0.0
      %1814 = vmatpush2.msra.mxu0 0.0
      %1815 = vmatprep.subr.mxu0 0.0
      %1816 = vmatpush2.msra.mxu0 0.0
      %1817 = vmatprep.subr.mxu0 0.0
      %1818 = vmatpush2.msra.mxu0 0.0
      %1819 = vmatprep.subr.mxu0 0.0
      %1820 = vmatpush2.msra.mxu0 0.0
      %1821 = vmatprep.subr.mxu0 0.0
      %1822 = vmatpush2.msra.mxu0 0.0
      %1823 = vmatprep.subr.mxu0 0.0
      %1824 = vmatpush2.msra.mxu0 0.0
      %1825 = vmatprep.subr.mxu0 0.0
      %1826 = vmatpush2.msra.mxu0 0.0
      %1827 = vmatprep.subr.mxu0 0.0
      %1828 = vmatpush2.msra.mxu0 0.0
      %1829 = vmatprep.subr.mxu0 0.0
      %1830 = vmatpush2.msra.mxu0 0.0
      %1831 = vmatprep.mubr.f32.mxu0 0.0
      %1832 = vmatmul.mubr.f32.gmra.mxu0 %v1671
      %v1833 = vpop.f32.mrf.mxu0
      %v1834 = vadd.f32 %v1749, %v1833
      %v1835 = vpop.f32.mrf.mxu0
      %1836 = vmatprep.mubr.f32.mxu0 0.0
      %1837 = vmatmul.mubr.f32.gmra.mxu0 %v1674
      %v1838 = vpop.f32.mrf.mxu0
      %v1839 = vadd.f32 %v1754, %v1838
      %v1840 = vpop.f32.mrf.mxu0
      %1841 = vmatprep.mubr.f32.mxu0 0.0
      %1842 = vmatmul.mubr.f32.gmra.mxu0 %v1677
      %v1843 = vpop.f32.mrf.mxu0
      %v1844 = vadd.f32 %v1759, %v1843
      %v1845 = vpop.f32.mrf.mxu0
      %1846 = vmatprep.mubr.f32.mxu0 0.0
      %1847 = vmatmul.mubr.f32.gmra.mxu0 %v1680
      %v1848 = vpop.f32.mrf.mxu0
      %v1849 = vadd.f32 %v1764, %v1848
      %v1850 = vpop.f32.mrf.mxu0
      %1851 = vdwg.mxu0
      %v1853 = vsel %vm912, %v1665, 0
      %v1856 = vsel %vm912, %v1666, 0
      %v1859 = vsel %vm912, %v1667, 0
      %v1862 = vsel %vm912, %v1668, 0
      %1864 = vmatprep.subr.mxu0 0.0
      %1865 = vmatpush1.msra.mxu0 0.0
      %1866 = vmatprep.subr.mxu0 0.0
      %1867 = vmatpush1.msra.mxu0 0.0
      %1868 = vmatprep.subr.mxu0 0.0
      %1869 = vmatpush1.msra.mxu0 0.0
      %1870 = vmatprep.subr.mxu0 0.0
      %1871 = vmatpush1.msra.mxu0 0.0
      %1872 = vmatprep.subr.mxu0 0.0
      %1873 = vmatpush1.msra.mxu0 0.0
      %1874 = vmatprep.subr.mxu0 0.0
      %1875 = vmatpush1.msra.mxu0 0.0
      %1876 = vmatprep.subr.mxu0 0.0
      %1877 = vmatpush1.msra.mxu0 0.0
      %1878 = vmatprep.subr.mxu0 0.0
      %1879 = vmatpush1.msra.mxu0 0.0
      %1880 = vmatprep.subr.mxu0 0.0
      %1881 = vmatpush1.msra.mxu0 0.0
      %1882 = vmatprep.subr.mxu0 0.0
      %1883 = vmatpush1.msra.mxu0 0.0
      %1884 = vmatprep.subr.mxu0 0.0
      %1885 = vmatpush1.msra.mxu0 0.0
      %1886 = vmatprep.subr.mxu0 0.0
      %1887 = vmatpush1.msra.mxu0 0.0
      %1888 = vmatprep.subr.mxu0 0.0
      %1889 = vmatpush1.msra.mxu0 %v825
      %1890 = vmatprep.subr.mxu0 0.0
      %1891 = vmatpush1.msra.mxu0 %v824
      %1892 = vmatprep.subr.mxu0 0.0
      %1893 = vmatpush1.msra.mxu0 %v823
      %1894 = vmatprep.subr.mxu0 0.0
      %1895 = vmatpush1.msra.mxu0 %v822
      %1896 = vmatprep.subr.mxu0 0.0
      %1897 = vmatpush2.msra.mxu0 0.0
      %1898 = vmatprep.subr.mxu0 0.0
      %1899 = vmatpush2.msra.mxu0 0.0
      %1900 = vmatprep.subr.mxu0 0.0
      %1901 = vmatpush2.msra.mxu0 0.0
      %1902 = vmatprep.subr.mxu0 0.0
      %1903 = vmatpush2.msra.mxu0 0.0
      %1904 = vmatprep.subr.mxu0 0.0
      %1905 = vmatpush2.msra.mxu0 0.0
      %1906 = vmatprep.subr.mxu0 0.0
      %1907 = vmatpush2.msra.mxu0 0.0
      %1908 = vmatprep.subr.mxu0 0.0
      %1909 = vmatpush2.msra.mxu0 0.0
      %1910 = vmatprep.subr.mxu0 0.0
      %1911 = vmatpush2.msra.mxu0 0.0
      %1912 = vmatprep.subr.mxu0 0.0
      %1913 = vmatpush2.msra.mxu0 0.0
      %1914 = vmatprep.subr.mxu0 0.0
      %1915 = vmatpush2.msra.mxu0 0.0
      %1916 = vmatprep.subr.mxu0 0.0
      %1917 = vmatpush2.msra.mxu0 0.0
      %1918 = vmatprep.subr.mxu0 0.0
      %1919 = vmatpush2.msra.mxu0 0.0
      %1920 = vmatprep.subr.mxu0 0.0
      %1921 = vmatpush2.msra.mxu0 0.0
      %1922 = vmatprep.subr.mxu0 0.0
      %1923 = vmatpush2.msra.mxu0 0.0
      %1924 = vmatprep.subr.mxu0 0.0
      %1925 = vmatpush2.msra.mxu0 0.0
      %1926 = vmatprep.subr.mxu0 0.0
      %1927 = vmatpush2.msra.mxu0 0.0
      %1928 = vmatprep.mubr.f32.mxu0 0.0
      %1929 = vmatmul.mubr.f32.gmra.mxu0 %v1853
      %v1930 = vpop.f32.mrf.mxu0
      %v1931 = vadd.f32 %v1834, %v1930
      %v1932 = vpop.f32.mrf.mxu0
      %1933 = vmatprep.mubr.f32.mxu0 0.0
      %1934 = vmatmul.mubr.f32.gmra.mxu0 %v1856
      %v1935 = vpop.f32.mrf.mxu0
      %v1936 = vadd.f32 %v1839, %v1935
      %v1937 = vpop.f32.mrf.mxu0
      %1938 = vmatprep.mubr.f32.mxu0 0.0
      %1939 = vmatmul.mubr.f32.gmra.mxu0 %v1859
      %v1940 = vpop.f32.mrf.mxu0
      %v1941 = vadd.f32 %v1844, %v1940
      %v1942 = vpop.f32.mrf.mxu0
      %1943 = vmatprep.mubr.f32.mxu0 0.0
      %1944 = vmatmul.mubr.f32.gmra.mxu0 %v1862
      %v1945 = vpop.f32.mrf.mxu0
      %v1946 = vadd.f32 %v1849, %v1945
      %v1947 = vpop.f32.mrf.mxu0
      %1948 = vdwg.mxu0
      %v1949 = vld [vmem:[%s5] sm:$0xff]
      %v1950 = vld [vmem:[%s5 + $0x8] sm:$0xff]
      %v1951 = vld [vmem:[%s5 + $0x10] sm:$0xff]
      %v1952 = vld [vmem:[%s5 + $0x18] sm:$0xff]
      %v1953 = vld [vmem:[%s6] sm:$0xff]
      %v1954 = vld [vmem:[%s6 + $0x8] sm:$0xff]
      %v1955 = vld [vmem:[%s6 + $0x10] sm:$0xff]
      %v1956 = vld [vmem:[%s6 + $0x18] sm:$0xff]
      %v1957 = vld [vmem:[%s6 + $0x20] sm:$0xff]
      %v1958 = vld [vmem:[%s6 + $0x28] sm:$0xff]
      %v1959 = vld [vmem:[%s6 + $0x30] sm:$0xff]
      %v1960 = vld [vmem:[%s6 + $0x38] sm:$0xff]
      %v1961 = vld [vmem:[%s6 + $0x40] sm:$0xff]
      %v1962 = vld [vmem:[%s6 + $0x48] sm:$0xff]
      %v1963 = vld [vmem:[%s6 + $0x50] sm:$0xff]
      %v1964 = vld [vmem:[%s6 + $0x58] sm:$0xff]
      %v1965 = vld [vmem:[%s6 + $0x60] sm:$0xff]
      %v1966 = vld [vmem:[%s6 + $0x68] sm:$0xff]
      %v1967 = vld [vmem:[%s6 + $0x70] sm:$0xff]
      %v1968 = vld [vmem:[%s6 + $0x78] sm:$0xff]
      %v1969 = vld [vmem:[%s6 + $0x80] sm:$0xff]
      %v1970 = vld [vmem:[%s6 + $0x88] sm:$0xff]
      %v1971 = vld [vmem:[%s6 + $0x90] sm:$0xff]
      %v1972 = vld [vmem:[%s6 + $0x98] sm:$0xff]
      %v1973 = vld [vmem:[%s6 + $0xa0] sm:$0xff]
      %v1974 = vld [vmem:[%s6 + $0xa8] sm:$0xff]
      %v1975 = vld [vmem:[%s6 + $0xb0] sm:$0xff]
      %v1976 = vld [vmem:[%s6 + $0xb8] sm:$0xff]
      %v1977 = vld [vmem:[%s6 + $0xc0] sm:$0xff]
      %v1978 = vld [vmem:[%s6 + $0xc8] sm:$0xff]
      %v1979 = vld [vmem:[%s6 + $0xd0] sm:$0xff]
      %v1980 = vld [vmem:[%s6 + $0xd8] sm:$0xff]
      %v1981 = vld [vmem:[%s6 + $0xe0] sm:$0xff]
      %v1982 = vld [vmem:[%s6 + $0xe8] sm:$0xff]
      %v1983 = vld [vmem:[%s6 + $0xf0] sm:$0xff]
      %v1984 = vld [vmem:[%s6 + $0xf8] sm:$0xff]
      %v1985 = vld [vmem:[%s6 + $0x100] sm:$0xff]
      %v1986 = vld [vmem:[%s6 + $0x108] sm:$0xff]
      %v1987 = vld [vmem:[%s6 + $0x110] sm:$0xff]
      %v1988 = vld [vmem:[%s6 + $0x118] sm:$0xff]
      %v1989 = vld [vmem:[%s6 + $0x120] sm:$0xff]
      %v1990 = vld [vmem:[%s6 + $0x128] sm:$0xff]
      %v1991 = vld [vmem:[%s6 + $0x130] sm:$0xff]
      %v1992 = vld [vmem:[%s6 + $0x138] sm:$0xff]
      %v1993 = vld [vmem:[%s6 + $0x140] sm:$0xff]
      %v1994 = vld [vmem:[%s6 + $0x148] sm:$0xff]
      %v1995 = vld [vmem:[%s6 + $0x150] sm:$0xff]
      %v1996 = vld [vmem:[%s6 + $0x158] sm:$0xff]
      %v1998 = vsel %vm912, %v1931, 0
      %v2001 = vsel %vm912, %v1936, 0
      %v2004 = vsel %vm912, %v1941, 0
      %v2007 = vsel %vm912, %v1946, 0
      %2009 = vmatprep.subr.mxu0 0.0
      %2010 = vmatpush1.msra.mxu0 0.0
      %2011 = vmatprep.subr.mxu0 0.0
      %2012 = vmatpush1.msra.mxu0 0.0
      %2013 = vmatprep.subr.mxu0 0.0
      %2014 = vmatpush1.msra.mxu0 0.0
      %2015 = vmatprep.subr.mxu0 0.0
      %2016 = vmatpush1.msra.mxu0 0.0
      %2017 = vmatprep.subr.mxu0 0.0
      %2018 = vmatpush1.msra.mxu0 0.0
      %2019 = vmatprep.subr.mxu0 0.0
      %2020 = vmatpush1.msra.mxu0 0.0
      %2021 = vmatprep.subr.mxu0 0.0
      %2022 = vmatpush1.msra.mxu0 0.0
      %2023 = vmatprep.subr.mxu0 0.0
      %2024 = vmatpush1.msra.mxu0 0.0
      %2025 = vmatprep.subr.mxu0 0.0
      %2026 = vmatpush1.msra.mxu0 0.0
      %2027 = vmatprep.subr.mxu0 0.0
      %2028 = vmatpush1.msra.mxu0 0.0
      %2029 = vmatprep.subr.mxu0 0.0
      %2030 = vmatpush1.msra.mxu0 0.0
      %2031 = vmatprep.subr.mxu0 0.0
      %2032 = vmatpush1.msra.mxu0 0.0
      %2033 = vmatprep.subr.mxu0 %v910
      %2034 = vmatpush1.msra.mxu0 %v909
      %2035 = vmatprep.subr.mxu0 %v907
      %2036 = vmatpush1.msra.mxu0 %v906
      %2037 = vmatprep.subr.mxu0 %v904
      %2038 = vmatpush1.msra.mxu0 %v903
      %2039 = vmatprep.subr.mxu0 %v901
      %2040 = vmatpush1.msra.mxu0 %v311
      %2041 = vmatprep.subr.mxu0 0.0
      %2042 = vmatpush2.msra.mxu0 0.0
      %2043 = vmatprep.subr.mxu0 0.0
      %2044 = vmatpush2.msra.mxu0 0.0
      %2045 = vmatprep.subr.mxu0 0.0
      %2046 = vmatpush2.msra.mxu0 0.0
      %2047 = vmatprep.subr.mxu0 0.0
      %2048 = vmatpush2.msra.mxu0 0.0
      %2049 = vmatprep.subr.mxu0 0.0
      %2050 = vmatpush2.msra.mxu0 0.0
      %2051 = vmatprep.subr.mxu0 0.0
      %2052 = vmatpush2.msra.mxu0 0.0
      %2053 = vmatprep.subr.mxu0 0.0
      %2054 = vmatpush2.msra.mxu0 0.0
      %2055 = vmatprep.subr.mxu0 0.0
      %2056 = vmatpush2.msra.mxu0 0.0
      %2057 = vmatprep.subr.mxu0 0.0
      %2058 = vmatpush2.msra.mxu0 0.0
      %2059 = vmatprep.subr.mxu0 0.0
      %2060 = vmatpush2.msra.mxu0 0.0
      %2061 = vmatprep.subr.mxu0 0.0
      %2062 = vmatpush2.msra.mxu0 0.0
      %2063 = vmatprep.subr.mxu0 0.0
      %2064 = vmatpush2.msra.mxu0 0.0
      %2065 = vmatprep.subr.mxu0 0.0
      %2066 = vmatpush2.msra.mxu0 0.0
      %2067 = vmatprep.subr.mxu0 0.0
      %2068 = vmatpush2.msra.mxu0 0.0
      %2069 = vmatprep.subr.mxu0 0.0
      %2070 = vmatpush2.msra.mxu0 0.0
      %2071 = vmatprep.subr.mxu0 0.0
      %2072 = vmatpush2.msra.mxu0 0.0
      %2073 = vmatprep.mubr.f32.mxu0 0.0
      %2074 = vmatmul.mubr.f32.gmra.mxu0 %v1998
      %v2075 = vpop.f32.mrf.mxu0
      %v2076 = vadd.f32 0.0, %v2075
      %v2077 = vpop.f32.mrf.mxu0
      %v2078 = vadd.f32 0.0, %v2077
      %2079 = vmatprep.mubr.f32.mxu0 0.0
      %2080 = vmatmul.mubr.f32.gmra.mxu0 %v2001
      %v2081 = vpop.f32.mrf.mxu0
      %v2082 = vadd.f32 0.0, %v2081
      %v2083 = vpop.f32.mrf.mxu0
      %v2084 = vadd.f32 0.0, %v2083
      %2085 = vmatprep.mubr.f32.mxu0 0.0
      %2086 = vmatmul.mubr.f32.gmra.mxu0 %v2004
      %v2087 = vpop.f32.mrf.mxu0
      %v2088 = vadd.f32 0.0, %v2087
      %v2089 = vpop.f32.mrf.mxu0
      %v2090 = vadd.f32 0.0, %v2089
      %2091 = vmatprep.mubr.f32.mxu0 0.0
      %2092 = vmatmul.mubr.f32.gmra.mxu0 %v2007
      %v2093 = vpop.f32.mrf.mxu0
      %v2094 = vadd.f32 0.0, %v2093
      %v2095 = vpop.f32.mrf.mxu0
      %v2096 = vadd.f32 0.0, %v2095
      %2097 = vdwg.mxu0
      %2098 = vmatprep.subr.mxu0 0.0
      %2099 = vmatpush1.msra.mxu0 0.0
      %2100 = vmatprep.subr.mxu0 0.0
      %2101 = vmatpush1.msra.mxu0 0.0
      %2102 = vmatprep.subr.mxu0 0.0
      %2103 = vmatpush1.msra.mxu0 0.0
      %2104 = vmatprep.subr.mxu0 0.0
      %2105 = vmatpush1.msra.mxu0 0.0
      %2106 = vmatprep.subr.mxu0 0.0
      %2107 = vmatpush1.msra.mxu0 0.0
      %2108 = vmatprep.subr.mxu0 0.0
      %2109 = vmatpush1.msra.mxu0 0.0
      %2110 = vmatprep.subr.mxu0 0.0
      %2111 = vmatpush1.msra.mxu0 0.0
      %2112 = vmatprep.subr.mxu0 0.0
      %2113 = vmatpush1.msra.mxu0 0.0
      %2114 = vmatprep.subr.mxu0 0.0
      %2115 = vmatpush1.msra.mxu0 0.0
      %2116 = vmatprep.subr.mxu0 0.0
      %2117 = vmatpush1.msra.mxu0 0.0
      %2118 = vmatprep.subr.mxu0 0.0
      %2119 = vmatpush1.msra.mxu0 0.0
      %2120 = vmatprep.subr.mxu0 0.0
      %2121 = vmatpush1.msra.mxu0 0.0
      %2122 = vmatprep.subr.mxu0 0.0
      %2123 = vmatpush1.msra.mxu0 %v911
      %2124 = vmatprep.subr.mxu0 0.0
      %2125 = vmatpush1.msra.mxu0 %v908
      %2126 = vmatprep.subr.mxu0 0.0
      %2127 = vmatpush1.msra.mxu0 %v905
      %2128 = vmatprep.subr.mxu0 0.0
      %2129 = vmatpush1.msra.mxu0 %v902
      %2130 = vmatprep.subr.mxu0 0.0
      %2131 = vmatpush2.msra.mxu0 0.0
      %2132 = vmatprep.subr.mxu0 0.0
      %2133 = vmatpush2.msra.mxu0 0.0
      %2134 = vmatprep.subr.mxu0 0.0
      %2135 = vmatpush2.msra.mxu0 0.0
      %2136 = vmatprep.subr.mxu0 0.0
      %2137 = vmatpush2.msra.mxu0 0.0
      %2138 = vmatprep.subr.mxu0 0.0
      %2139 = vmatpush2.msra.mxu0 0.0
      %2140 = vmatprep.subr.mxu0 0.0
      %2141 = vmatpush2.msra.mxu0 0.0
      %2142 = vmatprep.subr.mxu0 0.0
      %2143 = vmatpush2.msra.mxu0 0.0
      %2144 = vmatprep.subr.mxu0 0.0
      %2145 = vmatpush2.msra.mxu0 0.0
      %2146 = vmatprep.subr.mxu0 0.0
      %2147 = vmatpush2.msra.mxu0 0.0
      %2148 = vmatprep.subr.mxu0 0.0
      %2149 = vmatpush2.msra.mxu0 0.0
      %2150 = vmatprep.subr.mxu0 0.0
      %2151 = vmatpush2.msra.mxu0 0.0
      %2152 = vmatprep.subr.mxu0 0.0
      %2153 = vmatpush2.msra.mxu0 0.0
      %2154 = vmatprep.subr.mxu0 0.0
      %2155 = vmatpush2.msra.mxu0 0.0
      %2156 = vmatprep.subr.mxu0 0.0
      %2157 = vmatpush2.msra.mxu0 0.0
      %2158 = vmatprep.subr.mxu0 0.0
      %2159 = vmatpush2.msra.mxu0 0.0
      %2160 = vmatprep.subr.mxu0 0.0
      %2161 = vmatpush2.msra.mxu0 0.0
      %2162 = vmatprep.mubr.f32.mxu0 0.0
      %2163 = vmatmul.mubr.f32.gmra.mxu0 %v1998
      %v2164 = vpop.f32.mrf.mxu0
      %v2165 = vadd.f32 0.0, %v2164
      %v2166 = vpop.f32.mrf.mxu0
      %2167 = vmatprep.mubr.f32.mxu0 0.0
      %2168 = vmatmul.mubr.f32.gmra.mxu0 %v2001
      %v2169 = vpop.f32.mrf.mxu0
      %v2170 = vadd.f32 0.0, %v2169
      %v2171 = vpop.f32.mrf.mxu0
      %2172 = vmatprep.mubr.f32.mxu0 0.0
      %2173 = vmatmul.mubr.f32.gmra.mxu0 %v2004
      %v2174 = vpop.f32.mrf.mxu0
      %v2175 = vadd.f32 0.0, %v2174
      %v2176 = vpop.f32.mrf.mxu0
      %2177 = vmatprep.mubr.f32.mxu0 0.0
      %2178 = vmatmul.mubr.f32.gmra.mxu0 %v2007
      %v2179 = vpop.f32.mrf.mxu0
      %v2180 = vadd.f32 0.0, %v2179
      %v2181 = vpop.f32.mrf.mxu0
      %2182 = vdwg.mxu0
      %vm2183 = vcmp.ge.f32.partialorder %v2076, %v412
      %vm2184 = vcmp.ge.f32.partialorder %v2078, %v1103
      %vm2185 = vcmp.ge.f32.partialorder %v2165, %v1104
      %vm2186 = vcmp.ge.f32.partialorder %v2082, %v412
      %vm2187 = vcmp.ge.f32.partialorder %v2084, %v1103
      %vm2188 = vcmp.ge.f32.partialorder %v2170, %v1104
      %vm2189 = vcmp.ge.f32.partialorder %v2088, %v412
      %vm2190 = vcmp.ge.f32.partialorder %v2090, %v1103
      %vm2191 = vcmp.ge.f32.partialorder %v2175, %v1104
      %vm2192 = vcmp.ge.f32.partialorder %v2094, %v412
      %vm2193 = vcmp.ge.f32.partialorder %v2096, %v1103
      %vm2194 = vcmp.ge.f32.partialorder %v2180, %v1104
      %vm2195 = vcmp.lt.f32.partialorder %v2076, %v416
      %vm2196 = vcmp.lt.f32.partialorder %v2078, %v1111
      %vm2197 = vcmp.lt.f32.partialorder %v2165, %v1112
      %vm2198 = vcmp.lt.f32.partialorder %v2082, %v416
      %vm2199 = vcmp.lt.f32.partialorder %v2084, %v1111
      %vm2200 = vcmp.lt.f32.partialorder %v2170, %v1112
      %vm2201 = vcmp.lt.f32.partialorder %v2088, %v416
      %vm2202 = vcmp.lt.f32.partialorder %v2090, %v1111
      %vm2203 = vcmp.lt.f32.partialorder %v2175, %v1112
      %vm2204 = vcmp.lt.f32.partialorder %v2094, %v416
      %vm2205 = vcmp.lt.f32.partialorder %v2096, %v1111
      %vm2206 = vcmp.lt.f32.partialorder %v2180, %v1112
      %vm2207 = vmand %vm2183, %vm2195
      %vm2208 = vmand %vm2184, %vm2196
      %vm2209 = vmand %vm2185, %vm2197
      %vm2210 = vmand %vm2186, %vm2198
      %vm2211 = vmand %vm2187, %vm2199
      %vm2212 = vmand %vm2188, %vm2200
      %vm2213 = vmand %vm2189, %vm2201
      %vm2214 = vmand %vm2190, %vm2202
      %vm2215 = vmand %vm2191, %vm2203
      %vm2216 = vmand %vm2192, %vm2204
      %vm2217 = vmand %vm2193, %vm2205
      %vm2218 = vmand %vm2194, %vm2206
      %v2219 = vsel %vm2207, 1.0, 0.0
      %v2220 = vsel %vm2208, 1.0, 0.0
      %v2221 = vsel %vm2209, 1.0, 0.0
      %v2222 = vsel %vm2210, 1.0, 0.0
      %v2223 = vsel %vm2211, 1.0, 0.0
      %v2224 = vsel %vm2212, 1.0, 0.0
      %v2225 = vsel %vm2213, 1.0, 0.0
      %v2226 = vsel %vm2214, 1.0, 0.0
      %v2227 = vsel %vm2215, 1.0, 0.0
      %v2228 = vsel %vm2216, 1.0, 0.0
      %v2229 = vsel %vm2217, 1.0, 0.0
      %v2230 = vsel %vm2218, 1.0, 0.0
      %v2231 = vsub.f32 %v2076, %v412
      %v2232 = vsub.f32 %v2078, %v1103
      %v2233 = vsub.f32 %v2165, %v1104
      %v2234 = vsub.f32 %v2082, %v412
      %v2235 = vsub.f32 %v2084, %v1103
      %v2236 = vsub.f32 %v2170, %v1104
      %v2237 = vsub.f32 %v2088, %v412
      %v2238 = vsub.f32 %v2090, %v1103
      %v2239 = vsub.f32 %v2175, %v1104
      %v2240 = vsub.f32 %v2094, %v412
      %v2241 = vsub.f32 %v2096, %v1103
      %v2242 = vsub.f32 %v2180, %v1104
      %2255 = vrot.lane.b32.xlu0 %v2219, 127
      %v2256 = vpop.permute.xlu0 %2255
      %2257 = vrot.lane.b32.xlu0 %v2220, 127
      %v2258 = vpop.permute.xlu0 %2257
      %2259 = vrot.lane.b32.xlu0 %v2221, 127
      %v2260 = vpop.permute.xlu0 %2259
      %2261 = vrot.lane.b32.xlu0 %v2222, 127
      %v2262 = vpop.permute.xlu0 %2261
      %2263 = vrot.lane.b32.xlu0 %v2223, 127
      %v2264 = vpop.permute.xlu0 %2263
      %2265 = vrot.lane.b32.xlu0 %v2224, 127
      %v2266 = vpop.permute.xlu0 %2265
      %2267 = vrot.lane.b32.xlu0 %v2225, 127
      %v2268 = vpop.permute.xlu0 %2267
      %2269 = vrot.lane.b32.xlu0 %v2226, 127
      %v2270 = vpop.permute.xlu0 %2269
      %2271 = vrot.lane.b32.xlu0 %v2227, 127
      %v2272 = vpop.permute.xlu0 %2271
      %2273 = vrot.lane.b32.xlu0 %v2228, 127
      %v2274 = vpop.permute.xlu0 %2273
      %2275 = vrot.lane.b32.xlu0 %v2229, 127
      %v2276 = vpop.permute.xlu0 %2275
      %2277 = vrot.lane.b32.xlu0 %v2230, 127
      %v2278 = vpop.permute.xlu0 %2277
      %v2279 = vsel %vm1223, %v2256, %v2258
      %v2280 = vsel %vm1223, %v2258, %v2260
      %v2281 = vsel %vm1223, %v2262, %v2264
      %v2282 = vsel %vm1223, %v2264, %v2266
      %v2283 = vsel %vm1223, %v2268, %v2270
      %v2284 = vsel %vm1223, %v2270, %v2272
      %v2285 = vsel %vm1223, %v2274, %v2276
      %v2286 = vsel %vm1223, %v2276, %v2278
      %v2299 = vsel %vm1244, %v2260, 0.0
      %v2300 = vsel %vm1244, %v2266, 0.0
      %v2301 = vsel %vm1244, %v2272, 0.0
      %v2302 = vsel %vm1244, %v2278, 0.0
      %v2303 = vmul.f32 %v2279, %v438
      %v2304 = vmul.f32 %v2280, %v1175
      %v2305 = vmul.f32 %v2299, %v1176
      %v2306 = vmul.f32 %v2281, %v438
      %v2307 = vmul.f32 %v2282, %v1175
      %v2308 = vmul.f32 %v2300, %v1176
      %v2309 = vmul.f32 %v2283, %v438
      %v2310 = vmul.f32 %v2284, %v1175
      %v2311 = vmul.f32 %v2301, %v1176
      %v2312 = vmul.f32 %v2285, %v438
      %v2313 = vmul.f32 %v2286, %v1175
      %v2314 = vmul.f32 %v2302, %v1176
      %v2315 = vmul.f32 %v2231, 2.5
      %v2316 = vmul.f32 %v2232, 2.5
      %v2317 = vmul.f32 %v2233, 2.5
      %v2318 = vmul.f32 %v2234, 2.5
      %v2319 = vmul.f32 %v2235, 2.5
      %v2320 = vmul.f32 %v2236, 2.5
      %v2321 = vmul.f32 %v2237, 2.5
      %v2322 = vmul.f32 %v2238, 2.5
      %v2323 = vmul.f32 %v2239, 2.5
      %v2324 = vmul.f32 %v2240, 2.5
      %v2325 = vmul.f32 %v2241, 2.5
      %v2326 = vmul.f32 %v2242, 2.5
      %v2327 = vmul.f32 %v2315, %v2219
      %v2328 = vmul.f32 %v2316, %v2220
      %v2329 = vmul.f32 %v2317, %v2221
      %v2330 = vmul.f32 %v2318, %v2222
      %v2331 = vmul.f32 %v2319, %v2223
      %v2332 = vmul.f32 %v2320, %v2224
      %v2333 = vmul.f32 %v2321, %v2225
      %v2334 = vmul.f32 %v2322, %v2226
      %v2335 = vmul.f32 %v2323, %v2227
      %v2336 = vmul.f32 %v2324, %v2228
      %v2337 = vmul.f32 %v2325, %v2229
      %v2338 = vmul.f32 %v2326, %v2230
      %v2339 = vsub.f32 %v443, %v2076
      %v2340 = vsub.f32 %v1185, %v2078
      %v2341 = vsub.f32 %v1186, %v2165
      %v2342 = vsub.f32 %v443, %v2082
      %v2343 = vsub.f32 %v1185, %v2084
      %v2344 = vsub.f32 %v1186, %v2170
      %v2345 = vsub.f32 %v443, %v2088
      %v2346 = vsub.f32 %v1185, %v2090
      %v2347 = vsub.f32 %v1186, %v2175
      %v2348 = vsub.f32 %v443, %v2094
      %v2349 = vsub.f32 %v1185, %v2096
      %v2350 = vsub.f32 %v1186, %v2180
      %v2351 = vmul.f32 %v2339, 2.5
      %v2352 = vmul.f32 %v2340, 2.5
      %v2353 = vmul.f32 %v2341, 2.5
      %v2354 = vmul.f32 %v2342, 2.5
      %v2355 = vmul.f32 %v2343, 2.5
      %v2356 = vmul.f32 %v2344, 2.5
      %v2357 = vmul.f32 %v2345, 2.5
      %v2358 = vmul.f32 %v2346, 2.5
      %v2359 = vmul.f32 %v2347, 2.5
      %v2360 = vmul.f32 %v2348, 2.5
      %v2361 = vmul.f32 %v2349, 2.5
      %v2362 = vmul.f32 %v2350, 2.5
      %v2363 = vmul.f32 %v2351, %v2303
      %v2364 = vmul.f32 %v2352, %v2304
      %v2365 = vmul.f32 %v2353, %v2305
      %v2366 = vmul.f32 %v2354, %v2306
      %v2367 = vmul.f32 %v2355, %v2307
      %v2368 = vmul.f32 %v2356, %v2308
      %v2369 = vmul.f32 %v2357, %v2309
      %v2370 = vmul.f32 %v2358, %v2310
      %v2371 = vmul.f32 %v2359, %v2311
      %v2372 = vmul.f32 %v2360, %v2312
      %v2373 = vmul.f32 %v2361, %v2313
      %v2374 = vmul.f32 %v2362, %v2314
      %v2375 = vadd.f32 %v2327, %v2363
      %v2376 = vadd.f32 %v2328, %v2364
      %v2377 = vadd.f32 %v2329, %v2365
      %v2378 = vadd.f32 %v2330, %v2366
      %v2379 = vadd.f32 %v2331, %v2367
      %v2380 = vadd.f32 %v2332, %v2368
      %v2381 = vadd.f32 %v2333, %v2369
      %v2382 = vadd.f32 %v2334, %v2370
      %v2383 = vadd.f32 %v2335, %v2371
      %v2384 = vadd.f32 %v2336, %v2372
      %v2385 = vadd.f32 %v2337, %v2373
      %v2386 = vadd.f32 %v2338, %v2374
      %2399 = vrot.lane.b32.xlu0 %v2375, 127
      %v2400 = vpop.permute.xlu0 %2399
      %2401 = vrot.lane.b32.xlu0 %v2376, 127
      %v2402 = vpop.permute.xlu0 %2401
      %2403 = vrot.lane.b32.xlu0 %v2377, 127
      %v2404 = vpop.permute.xlu0 %2403
      %2405 = vrot.lane.b32.xlu0 %v2378, 127
      %v2406 = vpop.permute.xlu0 %2405
      %2407 = vrot.lane.b32.xlu0 %v2379, 127
      %v2408 = vpop.permute.xlu0 %2407
      %2409 = vrot.lane.b32.xlu0 %v2380, 127
      %v2410 = vpop.permute.xlu0 %2409
      %2411 = vrot.lane.b32.xlu0 %v2381, 127
      %v2412 = vpop.permute.xlu0 %2411
      %2413 = vrot.lane.b32.xlu0 %v2382, 127
      %v2414 = vpop.permute.xlu0 %2413
      %2415 = vrot.lane.b32.xlu0 %v2383, 127
      %v2416 = vpop.permute.xlu0 %2415
      %2417 = vrot.lane.b32.xlu0 %v2384, 127
      %v2418 = vpop.permute.xlu0 %2417
      %2419 = vrot.lane.b32.xlu0 %v2385, 127
      %v2420 = vpop.permute.xlu0 %2419
      %2421 = vrot.lane.b32.xlu0 %v2386, 127
      %v2422 = vpop.permute.xlu0 %2421
      %v2423 = vsel %vm1223, %v2400, %v2402
      %v2424 = vsel %vm1223, %v2402, %v2404
      %v2425 = vsel %vm1223, %v2406, %v2408
      %v2426 = vsel %vm1223, %v2408, %v2410
      %v2427 = vsel %vm1223, %v2412, %v2414
      %v2428 = vsel %vm1223, %v2414, %v2416
      %v2429 = vsel %vm1223, %v2418, %v2420
      %v2430 = vsel %vm1223, %v2420, %v2422
      %v2443 = vsel %vm1244, %v2404, 0.0
      %v2444 = vsel %vm1244, %v2410, 0.0
      %v2445 = vsel %vm1244, %v2416, 0.0
      %v2446 = vsel %vm1244, %v2422, 0.0
      %v2447 = vmul.f32 %v2423, %v438
      %v2448 = vmul.f32 %v2424, %v1175
      %v2449 = vmul.f32 %v2443, %v1176
      %v2450 = vmul.f32 %v2425, %v438
      %v2451 = vmul.f32 %v2426, %v1175
      %v2452 = vmul.f32 %v2444, %v1176
      %v2453 = vmul.f32 %v2427, %v438
      %v2454 = vmul.f32 %v2428, %v1175
      %v2455 = vmul.f32 %v2445, %v1176
      %v2456 = vmul.f32 %v2429, %v438
      %v2457 = vmul.f32 %v2430, %v1175
      %v2458 = vmul.f32 %v2446, %v1176
      %v2459 = vmul.f32 %v2231, 1.25
      %v2460 = vmul.f32 %v2232, 1.25
      %v2461 = vmul.f32 %v2233, 1.25
      %v2462 = vmul.f32 %v2234, 1.25
      %v2463 = vmul.f32 %v2235, 1.25
      %v2464 = vmul.f32 %v2236, 1.25
      %v2465 = vmul.f32 %v2237, 1.25
      %v2466 = vmul.f32 %v2238, 1.25
      %v2467 = vmul.f32 %v2239, 1.25
      %v2468 = vmul.f32 %v2240, 1.25
      %v2469 = vmul.f32 %v2241, 1.25
      %v2470 = vmul.f32 %v2242, 1.25
      %v2471 = vmul.f32 %v2459, %v2375
      %v2472 = vmul.f32 %v2460, %v2376
      %v2473 = vmul.f32 %v2461, %v2377
      %v2474 = vmul.f32 %v2462, %v2378
      %v2475 = vmul.f32 %v2463, %v2379
      %v2476 = vmul.f32 %v2464, %v2380
      %v2477 = vmul.f32 %v2465, %v2381
      %v2478 = vmul.f32 %v2466, %v2382
      %v2479 = vmul.f32 %v2467, %v2383
      %v2480 = vmul.f32 %v2468, %v2384
      %v2481 = vmul.f32 %v2469, %v2385
      %v2482 = vmul.f32 %v2470, %v2386
      %v2483 = vsub.f32 %v497, %v2076
      %v2484 = vsub.f32 %v1341, %v2078
      %v2485 = vsub.f32 %v1342, %v2165
      %v2486 = vsub.f32 %v497, %v2082
      %v2487 = vsub.f32 %v1341, %v2084
      %v2488 = vsub.f32 %v1342, %v2170
      %v2489 = vsub.f32 %v497, %v2088
      %v2490 = vsub.f32 %v1341, %v2090
      %v2491 = vsub.f32 %v1342, %v2175
      %v2492 = vsub.f32 %v497, %v2094
      %v2493 = vsub.f32 %v1341, %v2096
      %v2494 = vsub.f32 %v1342, %v2180
      %v2495 = vmul.f32 %v2483, 1.25
      %v2496 = vmul.f32 %v2484, 1.25
      %v2497 = vmul.f32 %v2485, 1.25
      %v2498 = vmul.f32 %v2486, 1.25
      %v2499 = vmul.f32 %v2487, 1.25
      %v2500 = vmul.f32 %v2488, 1.25
      %v2501 = vmul.f32 %v2489, 1.25
      %v2502 = vmul.f32 %v2490, 1.25
      %v2503 = vmul.f32 %v2491, 1.25
      %v2504 = vmul.f32 %v2492, 1.25
      %v2505 = vmul.f32 %v2493, 1.25
      %v2506 = vmul.f32 %v2494, 1.25
      %v2507 = vmul.f32 %v2495, %v2447
      %v2508 = vmul.f32 %v2496, %v2448
      %v2509 = vmul.f32 %v2497, %v2449
      %v2510 = vmul.f32 %v2498, %v2450
      %v2511 = vmul.f32 %v2499, %v2451
      %v2512 = vmul.f32 %v2500, %v2452
      %v2513 = vmul.f32 %v2501, %v2453
      %v2514 = vmul.f32 %v2502, %v2454
      %v2515 = vmul.f32 %v2503, %v2455
      %v2516 = vmul.f32 %v2504, %v2456
      %v2517 = vmul.f32 %v2505, %v2457
      %v2518 = vmul.f32 %v2506, %v2458
      %v2519 = vadd.f32 %v2471, %v2507
      %v2520 = vadd.f32 %v2472, %v2508
      %v2521 = vadd.f32 %v2473, %v2509
      %v2522 = vadd.f32 %v2474, %v2510
      %v2523 = vadd.f32 %v2475, %v2511
      %v2524 = vadd.f32 %v2476, %v2512
      %v2525 = vadd.f32 %v2477, %v2513
      %v2526 = vadd.f32 %v2478, %v2514
      %v2527 = vadd.f32 %v2479, %v2515
      %v2528 = vadd.f32 %v2480, %v2516
      %v2529 = vadd.f32 %v2481, %v2517
      %v2530 = vadd.f32 %v2482, %v2518
      %2543 = vrot.lane.b32.xlu0 %v2519, 127
      %v2544 = vpop.permute.xlu0 %2543
      %2545 = vrot.lane.b32.xlu0 %v2520, 127
      %v2546 = vpop.permute.xlu0 %2545
      %2547 = vrot.lane.b32.xlu0 %v2521, 127
      %v2548 = vpop.permute.xlu0 %2547
      %2549 = vrot.lane.b32.xlu0 %v2522, 127
      %v2550 = vpop.permute.xlu0 %2549
      %2551 = vrot.lane.b32.xlu0 %v2523, 127
      %v2552 = vpop.permute.xlu0 %2551
      %2553 = vrot.lane.b32.xlu0 %v2524, 127
      %v2554 = vpop.permute.xlu0 %2553
      %2555 = vrot.lane.b32.xlu0 %v2525, 127
      %v2556 = vpop.permute.xlu0 %2555
      %2557 = vrot.lane.b32.xlu0 %v2526, 127
      %v2558 = vpop.permute.xlu0 %2557
      %2559 = vrot.lane.b32.xlu0 %v2527, 127
      %v2560 = vpop.permute.xlu0 %2559
      %2561 = vrot.lane.b32.xlu0 %v2528, 127
      %v2562 = vpop.permute.xlu0 %2561
      %2563 = vrot.lane.b32.xlu0 %v2529, 127
      %v2564 = vpop.permute.xlu0 %2563
      %2565 = vrot.lane.b32.xlu0 %v2530, 127
      %v2566 = vpop.permute.xlu0 %2565
      %v2567 = vsel %vm1223, %v2544, %v2546
      %v2568 = vsel %vm1223, %v2546, %v2548
      %v2569 = vsel %vm1223, %v2550, %v2552
      %v2570 = vsel %vm1223, %v2552, %v2554
      %v2571 = vsel %vm1223, %v2556, %v2558
      %v2572 = vsel %vm1223, %v2558, %v2560
      %v2573 = vsel %vm1223, %v2562, %v2564
      %v2574 = vsel %vm1223, %v2564, %v2566
      %v2587 = vsel %vm1244, %v2548, 0.0
      %v2588 = vsel %vm1244, %v2554, 0.0
      %v2589 = vsel %vm1244, %v2560, 0.0
      %v2590 = vsel %vm1244, %v2566, 0.0
      %v2591 = vmul.f32 %v2567, %v438
      %v2592 = vmul.f32 %v2568, %v1175
      %v2593 = vmul.f32 %v2587, %v1176
      %v2594 = vmul.f32 %v2569, %v438
      %v2595 = vmul.f32 %v2570, %v1175
      %v2596 = vmul.f32 %v2588, %v1176
      %v2597 = vmul.f32 %v2571, %v438
      %v2598 = vmul.f32 %v2572, %v1175
      %v2599 = vmul.f32 %v2589, %v1176
      %v2600 = vmul.f32 %v2573, %v438
      %v2601 = vmul.f32 %v2574, %v1175
      %v2602 = vmul.f32 %v2590, %v1176
      %v2603 = vmul.f32 %v2231, 0.8333333
      %v2604 = vmul.f32 %v2232, 0.8333333
      %v2605 = vmul.f32 %v2233, 0.8333333
      %v2606 = vmul.f32 %v2234, 0.8333333
      %v2607 = vmul.f32 %v2235, 0.8333333
      %v2608 = vmul.f32 %v2236, 0.8333333
      %v2609 = vmul.f32 %v2237, 0.8333333
      %v2610 = vmul.f32 %v2238, 0.8333333
      %v2611 = vmul.f32 %v2239, 0.8333333
      %v2612 = vmul.f32 %v2240, 0.8333333
      %v2613 = vmul.f32 %v2241, 0.8333333
      %v2614 = vmul.f32 %v2242, 0.8333333
      %v2615 = vmul.f32 %v2603, %v2519
      %v2616 = vmul.f32 %v2604, %v2520
      %v2617 = vmul.f32 %v2605, %v2521
      %v2618 = vmul.f32 %v2606, %v2522
      %v2619 = vmul.f32 %v2607, %v2523
      %v2620 = vmul.f32 %v2608, %v2524
      %v2621 = vmul.f32 %v2609, %v2525
      %v2622 = vmul.f32 %v2610, %v2526
      %v2623 = vmul.f32 %v2611, %v2527
      %v2624 = vmul.f32 %v2612, %v2528
      %v2625 = vmul.f32 %v2613, %v2529
      %v2626 = vmul.f32 %v2614, %v2530
      %v2627 = vsub.f32 %v550, %v2076
      %v2628 = vsub.f32 %v1495, %v2078
      %v2629 = vsub.f32 %v1496, %v2165
      %v2630 = vsub.f32 %v550, %v2082
      %v2631 = vsub.f32 %v1495, %v2084
      %v2632 = vsub.f32 %v1496, %v2170
      %v2633 = vsub.f32 %v550, %v2088
      %v2634 = vsub.f32 %v1495, %v2090
      %v2635 = vsub.f32 %v1496, %v2175
      %v2636 = vsub.f32 %v550, %v2094
      %v2637 = vsub.f32 %v1495, %v2096
      %v2638 = vsub.f32 %v1496, %v2180
      %v2639 = vmul.f32 %v2627, 0.8333333
      %v2640 = vmul.f32 %v2628, 0.8333333
      %v2641 = vmul.f32 %v2629, 0.8333333
      %v2642 = vmul.f32 %v2630, 0.8333333
      %v2643 = vmul.f32 %v2631, 0.8333333
      %v2644 = vmul.f32 %v2632, 0.8333333
      %v2645 = vmul.f32 %v2633, 0.8333333
      %v2646 = vmul.f32 %v2634, 0.8333333
      %v2647 = vmul.f32 %v2635, 0.8333333
      %v2648 = vmul.f32 %v2636, 0.8333333
      %v2649 = vmul.f32 %v2637, 0.8333333
      %v2650 = vmul.f32 %v2638, 0.8333333
      %v2651 = vmul.f32 %v2639, %v2591
      %v2652 = vmul.f32 %v2640, %v2592
      %v2653 = vmul.f32 %v2641, %v2593
      %v2654 = vmul.f32 %v2642, %v2594
      %v2655 = vmul.f32 %v2643, %v2595
      %v2656 = vmul.f32 %v2644, %v2596
      %v2657 = vmul.f32 %v2645, %v2597
      %v2658 = vmul.f32 %v2646, %v2598
      %v2659 = vmul.f32 %v2647, %v2599
      %v2660 = vmul.f32 %v2648, %v2600
      %v2661 = vmul.f32 %v2649, %v2601
      %v2662 = vmul.f32 %v2650, %v2602
      %v2663 = vadd.f32 %v2615, %v2651
      %v2664 = vadd.f32 %v2616, %v2652
      %v2665 = vadd.f32 %v2617, %v2653
      %v2666 = vadd.f32 %v2618, %v2654
      %v2667 = vadd.f32 %v2619, %v2655
      %v2668 = vadd.f32 %v2620, %v2656
      %v2669 = vadd.f32 %v2621, %v2657
      %v2670 = vadd.f32 %v2622, %v2658
      %v2671 = vadd.f32 %v2623, %v2659
      %v2672 = vadd.f32 %v2624, %v2660
      %v2673 = vadd.f32 %v2625, %v2661
      %v2674 = vadd.f32 %v2626, %v2662
      %v2675 = vxor.u32 %v1931, 2147483648
      %v2676 = vxor.u32 %v1936, 2147483648
      %v2677 = vxor.u32 %v1941, 2147483648
      %v2678 = vxor.u32 %v1946, 2147483648
      %v2679 = vmul.f32 %v2675, 1.442695
      %v2680 = vpow.pop %v2679
      %v2681 = vmul.f32 %v2676, 1.442695
      %v2682 = vpow.pop %v2681
      %v2683 = vmul.f32 %v2677, 1.442695
      %v2684 = vpow.pop %v2683
      %v2685 = vmul.f32 %v2678, 1.442695
      %v2686 = vpow.pop %v2685
      %v2687 = vadd.f32 %v2680, 1.0
      %v2688 = vadd.f32 %v2682, 1.0
      %v2689 = vadd.f32 %v2684, 1.0
      %v2690 = vadd.f32 %v2686, 1.0
      %v2691 = vrcp.pop %v2687
      %v2692 = vmul.f32 1.0, %v2691
      %v2693 = vrcp.pop %v2688
      %v2694 = vmul.f32 1.0, %v2693
      %v2695 = vrcp.pop %v2689
      %v2696 = vmul.f32 1.0, %v2695
      %v2697 = vrcp.pop %v2690
      %v2698 = vmul.f32 1.0, %v2697
      %v2699 = vmul.f32 %v1931, %v2692
      %v2700 = vmul.f32 %v1936, %v2694
      %v2701 = vmul.f32 %v1941, %v2696
      %v2702 = vmul.f32 %v1946, %v2698
      %v2704 = vsel %vm1669, %v2665, 0
      %v2707 = vsel %vm1669, %v2668, 0
      %v2710 = vsel %vm1669, %v2671, 0
      %v2713 = vsel %vm1669, %v2674, 0
      %2715 = vmatprep.subr.mxu0 0.0
      %2716 = vmatpush1.msra.mxu0 %v1968
      %2717 = vmatprep.subr.mxu0 0.0
      %2718 = vmatpush1.msra.mxu0 %v1967
      %2719 = vmatprep.subr.mxu0 0.0
      %2720 = vmatpush1.msra.mxu0 %v1966
      %2721 = vmatprep.subr.mxu0 0.0
      %2722 = vmatpush1.msra.mxu0 %v1965
      %2723 = vmatprep.subr.mxu0 0.0
      %2724 = vmatpush1.msra.mxu0 %v1964
      %2725 = vmatprep.subr.mxu0 0.0
      %2726 = vmatpush1.msra.mxu0 %v1963
      %2727 = vmatprep.subr.mxu0 0.0
      %2728 = vmatpush1.msra.mxu0 %v1962
      %2729 = vmatprep.subr.mxu0 0.0
      %2730 = vmatpush1.msra.mxu0 %v1961
      %2731 = vmatprep.subr.mxu0 0.0
      %2732 = vmatpush1.msra.mxu0 %v1960
      %2733 = vmatprep.subr.mxu0 0.0
      %2734 = vmatpush1.msra.mxu0 %v1959
      %2735 = vmatprep.subr.mxu0 0.0
      %2736 = vmatpush1.msra.mxu0 %v1958
      %2737 = vmatprep.subr.mxu0 0.0
      %2738 = vmatpush1.msra.mxu0 %v1957
      %2739 = vmatprep.subr.mxu0 0.0
      %2740 = vmatpush1.msra.mxu0 %v1956
      %2741 = vmatprep.subr.mxu0 0.0
      %2742 = vmatpush1.msra.mxu0 %v1955
      %2743 = vmatprep.subr.mxu0 0.0
      %2744 = vmatpush1.msra.mxu0 %v1954
      %2745 = vmatprep.subr.mxu0 0.0
      %2746 = vmatpush1.msra.mxu0 %v1953
      %2747 = vmatprep.subr.mxu0 0.0
      %2748 = vmatpush2.msra.mxu0 %v1984
      %2749 = vmatprep.subr.mxu0 0.0
      %2750 = vmatpush2.msra.mxu0 %v1983
      %2751 = vmatprep.subr.mxu0 0.0
      %2752 = vmatpush2.msra.mxu0 %v1982
      %2753 = vmatprep.subr.mxu0 0.0
      %2754 = vmatpush2.msra.mxu0 %v1981
      %2755 = vmatprep.subr.mxu0 0.0
      %2756 = vmatpush2.msra.mxu0 %v1980
      %2757 = vmatprep.subr.mxu0 0.0
      %2758 = vmatpush2.msra.mxu0 %v1979
      %2759 = vmatprep.subr.mxu0 0.0
      %2760 = vmatpush2.msra.mxu0 %v1978
      %2761 = vmatprep.subr.mxu0 0.0
      %2762 = vmatpush2.msra.mxu0 %v1977
      %2763 = vmatprep.subr.mxu0 0.0
      %2764 = vmatpush2.msra.mxu0 %v1976
      %2765 = vmatprep.subr.mxu0 0.0
      %2766 = vmatpush2.msra.mxu0 %v1975
      %2767 = vmatprep.subr.mxu0 0.0
      %2768 = vmatpush2.msra.mxu0 %v1974
      %2769 = vmatprep.subr.mxu0 0.0
      %2770 = vmatpush2.msra.mxu0 %v1973
      %2771 = vmatprep.subr.mxu0 0.0
      %2772 = vmatpush2.msra.mxu0 %v1972
      %2773 = vmatprep.subr.mxu0 0.0
      %2774 = vmatpush2.msra.mxu0 %v1971
      %2775 = vmatprep.subr.mxu0 0.0
      %2776 = vmatpush2.msra.mxu0 %v1970
      %2777 = vmatprep.subr.mxu0 0.0
      %2778 = vmatpush2.msra.mxu0 %v1969
      %2779 = vmatprep.mubr.f32.mxu0 %v2664
      %2780 = vmatmul.mubr.f32.gmra.mxu0 %v2663
      %v2781 = vpop.f32.mrf.mxu0
      %v2782 = vadd.f32 0.0, %v2781
      %v2783 = vpop.f32.mrf.mxu0
      %2784 = vmatprep.mubr.f32.mxu0 %v2667
      %2785 = vmatmul.mubr.f32.gmra.mxu0 %v2666
      %v2786 = vpop.f32.mrf.mxu0
      %v2787 = vadd.f32 0.0, %v2786
      %v2788 = vpop.f32.mrf.mxu0
      %2789 = vmatprep.mubr.f32.mxu0 %v2670
      %2790 = vmatmul.mubr.f32.gmra.mxu0 %v2669
      %v2791 = vpop.f32.mrf.mxu0
      %v2792 = vadd.f32 0.0, %v2791
      %v2793 = vpop.f32.mrf.mxu0
      %2794 = vmatprep.mubr.f32.mxu0 %v2673
      %2795 = vmatmul.mubr.f32.gmra.mxu0 %v2672
      %v2796 = vpop.f32.mrf.mxu0
      %v2797 = vadd.f32 0.0, %v2796
      %v2798 = vpop.f32.mrf.mxu0
      %2799 = vdwg.mxu0
      %2800 = vmatprep.subr.mxu0 0.0
      %2801 = vmatpush1.msra.mxu0 0.0
      %2802 = vmatprep.subr.mxu0 0.0
      %2803 = vmatpush1.msra.mxu0 0.0
      %2804 = vmatprep.subr.mxu0 0.0
      %2805 = vmatpush1.msra.mxu0 0.0
      %2806 = vmatprep.subr.mxu0 0.0
      %2807 = vmatpush1.msra.mxu0 0.0
      %2808 = vmatprep.subr.mxu0 0.0
      %2809 = vmatpush1.msra.mxu0 %v1996
      %2810 = vmatprep.subr.mxu0 0.0
      %2811 = vmatpush1.msra.mxu0 %v1995
      %2812 = vmatprep.subr.mxu0 0.0
      %2813 = vmatpush1.msra.mxu0 %v1994
      %2814 = vmatprep.subr.mxu0 0.0
      %2815 = vmatpush1.msra.mxu0 %v1993
      %2816 = vmatprep.subr.mxu0 0.0
      %2817 = vmatpush1.msra.mxu0 %v1992
      %2818 = vmatprep.subr.mxu0 0.0
      %2819 = vmatpush1.msra.mxu0 %v1991
      %2820 = vmatprep.subr.mxu0 0.0
      %2821 = vmatpush1.msra.mxu0 %v1990
      %2822 = vmatprep.subr.mxu0 0.0
      %2823 = vmatpush1.msra.mxu0 %v1989
      %2824 = vmatprep.subr.mxu0 0.0
      %2825 = vmatpush1.msra.mxu0 %v1988
      %2826 = vmatprep.subr.mxu0 0.0
      %2827 = vmatpush1.msra.mxu0 %v1987
      %2828 = vmatprep.subr.mxu0 0.0
      %2829 = vmatpush1.msra.mxu0 %v1986
      %2830 = vmatprep.subr.mxu0 0.0
      %2831 = vmatpush1.msra.mxu0 %v1985
      %2832 = vmatprep.subr.mxu0 0.0
      %2833 = vmatpush2.msra.mxu0 0.0
      %2834 = vmatprep.subr.mxu0 0.0
      %2835 = vmatpush2.msra.mxu0 0.0
      %2836 = vmatprep.subr.mxu0 0.0
      %2837 = vmatpush2.msra.mxu0 0.0
      %2838 = vmatprep.subr.mxu0 0.0
      %2839 = vmatpush2.msra.mxu0 0.0
      %2840 = vmatprep.subr.mxu0 0.0
      %2841 = vmatpush2.msra.mxu0 0.0
      %2842 = vmatprep.subr.mxu0 0.0
      %2843 = vmatpush2.msra.mxu0 0.0
      %2844 = vmatprep.subr.mxu0 0.0
      %2845 = vmatpush2.msra.mxu0 0.0
      %2846 = vmatprep.subr.mxu0 0.0
      %2847 = vmatpush2.msra.mxu0 0.0
      %2848 = vmatprep.subr.mxu0 0.0
      %2849 = vmatpush2.msra.mxu0 0.0
      %2850 = vmatprep.subr.mxu0 0.0
      %2851 = vmatpush2.msra.mxu0 0.0
      %2852 = vmatprep.subr.mxu0 0.0
      %2853 = vmatpush2.msra.mxu0 0.0
      %2854 = vmatprep.subr.mxu0 0.0
      %2855 = vmatpush2.msra.mxu0 0.0
      %2856 = vmatprep.subr.mxu0 0.0
      %2857 = vmatpush2.msra.mxu0 0.0
      %2858 = vmatprep.subr.mxu0 0.0
      %2859 = vmatpush2.msra.mxu0 0.0
      %2860 = vmatprep.subr.mxu0 0.0
      %2861 = vmatpush2.msra.mxu0 0.0
      %2862 = vmatprep.subr.mxu0 0.0
      %2863 = vmatpush2.msra.mxu0 0.0
      %2864 = vmatprep.mubr.f32.mxu0 0.0
      %2865 = vmatmul.mubr.f32.gmra.mxu0 %v2704
      %v2866 = vpop.f32.mrf.mxu0
      %v2867 = vadd.f32 %v2782, %v2866
      %v2868 = vpop.f32.mrf.mxu0
      %2869 = vmatprep.mubr.f32.mxu0 0.0
      %2870 = vmatmul.mubr.f32.gmra.mxu0 %v2707
      %v2871 = vpop.f32.mrf.mxu0
      %v2872 = vadd.f32 %v2787, %v2871
      %v2873 = vpop.f32.mrf.mxu0
      %2874 = vmatprep.mubr.f32.mxu0 0.0
      %2875 = vmatmul.mubr.f32.gmra.mxu0 %v2710
      %v2876 = vpop.f32.mrf.mxu0
      %v2877 = vadd.f32 %v2792, %v2876
      %v2878 = vpop.f32.mrf.mxu0
      %2879 = vmatprep.mubr.f32.mxu0 0.0
      %2880 = vmatmul.mubr.f32.gmra.mxu0 %v2713
      %v2881 = vpop.f32.mrf.mxu0
      %v2882 = vadd.f32 %v2797, %v2881
      %v2883 = vpop.f32.mrf.mxu0
      %2884 = vdwg.mxu0
      %v2886 = vsel %vm912, %v2699, 0
      %v2889 = vsel %vm912, %v2700, 0
      %v2892 = vsel %vm912, %v2701, 0
      %v2895 = vsel %vm912, %v2702, 0
      %2897 = vmatprep.subr.mxu0 0.0
      %2898 = vmatpush1.msra.mxu0 0.0
      %2899 = vmatprep.subr.mxu0 0.0
      %2900 = vmatpush1.msra.mxu0 0.0
      %2901 = vmatprep.subr.mxu0 0.0
      %2902 = vmatpush1.msra.mxu0 0.0
      %2903 = vmatprep.subr.mxu0 0.0
      %2904 = vmatpush1.msra.mxu0 0.0
      %2905 = vmatprep.subr.mxu0 0.0
      %2906 = vmatpush1.msra.mxu0 0.0
      %2907 = vmatprep.subr.mxu0 0.0
      %2908 = vmatpush1.msra.mxu0 0.0
      %2909 = vmatprep.subr.mxu0 0.0
      %2910 = vmatpush1.msra.mxu0 0.0
      %2911 = vmatprep.subr.mxu0 0.0
      %2912 = vmatpush1.msra.mxu0 0.0
      %2913 = vmatprep.subr.mxu0 0.0
      %2914 = vmatpush1.msra.mxu0 0.0
      %2915 = vmatprep.subr.mxu0 0.0
      %2916 = vmatpush1.msra.mxu0 0.0
      %2917 = vmatprep.subr.mxu0 0.0
      %2918 = vmatpush1.msra.mxu0 0.0
      %2919 = vmatprep.subr.mxu0 0.0
      %2920 = vmatpush1.msra.mxu0 0.0
      %2921 = vmatprep.subr.mxu0 0.0
      %2922 = vmatpush1.msra.mxu0 %v1952
      %2923 = vmatprep.subr.mxu0 0.0
      %2924 = vmatpush1.msra.mxu0 %v1951
      %2925 = vmatprep.subr.mxu0 0.0
      %2926 = vmatpush1.msra.mxu0 %v1950
      %2927 = vmatprep.subr.mxu0 0.0
      %2928 = vmatpush1.msra.mxu0 %v1949
      %2929 = vmatprep.subr.mxu0 0.0
      %2930 = vmatpush2.msra.mxu0 0.0
      %2931 = vmatprep.subr.mxu0 0.0
      %2932 = vmatpush2.msra.mxu0 0.0
      %2933 = vmatprep.subr.mxu0 0.0
      %2934 = vmatpush2.msra.mxu0 0.0
      %2935 = vmatprep.subr.mxu0 0.0
      %2936 = vmatpush2.msra.mxu0 0.0
      %2937 = vmatprep.subr.mxu0 0.0
      %2938 = vmatpush2.msra.mxu0 0.0
      %2939 = vmatprep.subr.mxu0 0.0
      %2940 = vmatpush2.msra.mxu0 0.0
      %2941 = vmatprep.subr.mxu0 0.0
      %2942 = vmatpush2.msra.mxu0 0.0
      %2943 = vmatprep.subr.mxu0 0.0
      %2944 = vmatpush2.msra.mxu0 0.0
      %2945 = vmatprep.subr.mxu0 0.0
      %2946 = vmatpush2.msra.mxu0 0.0
      %2947 = vmatprep.subr.mxu0 0.0
      %2948 = vmatpush2.msra.mxu0 0.0
      %2949 = vmatprep.subr.mxu0 0.0
      %2950 = vmatpush2.msra.mxu0 0.0
      %2951 = vmatprep.subr.mxu0 0.0
      %2952 = vmatpush2.msra.mxu0 0.0
      %2953 = vmatprep.subr.mxu0 0.0
      %2954 = vmatpush2.msra.mxu0 0.0
      %2955 = vmatprep.subr.mxu0 0.0
      %2956 = vmatpush2.msra.mxu0 0.0
      %2957 = vmatprep.subr.mxu0 0.0
      %2958 = vmatpush2.msra.mxu0 0.0
      %2959 = vmatprep.subr.mxu0 0.0
      %2960 = vmatpush2.msra.mxu0 0.0
      %2961 = vmatprep.mubr.f32.mxu0 0.0
      %2962 = vmatmul.mubr.f32.gmra.mxu0 %v2886
      %v2963 = vpop.f32.mrf.mxu0
      %v2964 = vadd.f32 %v2867, %v2963
      %v2965 = vpop.f32.mrf.mxu0
      %2966 = vmatprep.mubr.f32.mxu0 0.0
      %2967 = vmatmul.mubr.f32.gmra.mxu0 %v2889
      %v2968 = vpop.f32.mrf.mxu0
      %v2969 = vadd.f32 %v2872, %v2968
      %v2970 = vpop.f32.mrf.mxu0
      %2971 = vmatprep.mubr.f32.mxu0 0.0
      %2972 = vmatmul.mubr.f32.gmra.mxu0 %v2892
      %v2973 = vpop.f32.mrf.mxu0
      %v2974 = vadd.f32 %v2877, %v2973
      %v2975 = vpop.f32.mrf.mxu0
      %2976 = vmatprep.mubr.f32.mxu0 0.0
      %2977 = vmatmul.mubr.f32.gmra.mxu0 %v2895
      %v2978 = vpop.f32.mrf.mxu0
      %v2979 = vadd.f32 %v2882, %v2978
      %v2980 = vpop.f32.mrf.mxu0
      %2981 = vdwg.mxu0
      %vm2982 = vcmask 31744
      %2983 = vst.msk [vmem:[%s280] sm:$0xff] %vm2982, %v2964
      %2984 = vst.msk [vmem:[%s280 + $0x8] sm:$0xff] %vm2982, %v2969
      %2985 = vst.msk [vmem:[%s280 + $0x10] sm:$0xff] %vm2982, %v2974
      %2986 = vst.msk [vmem:[%s280 + $0x18] sm:$0xff] %vm2982, %v2979
      %s2987 = smul.u32 4, %s18
      %p2988 = scmp.lt.s32.totalorder %s2987, 7
      %s2989 = scalar_select %p2988, %s2987, 7
      %s2990 = smul.addr %s2989, 8
      %s2991 = scalar_lea.vmem %s7, %s2990
      // Predicated region
      $region49: #{tpu_custom_call.1} parent=47 // pred_check
        %p2992 = pneg %p188
      $region50: #{tpu_custom_call.1} parent=47 // pred_check_branch
        %2994 = sbr.rel (%p2992) target = $region52
      $region51: #{tpu_custom_call.1} parent=47 // pred_region
        %s2995 = smul.u32 4, %s18
      $region52: #{tpu_custom_call.1} parent=47 // pred_fallthru
        _
    $region48: #{tpu_custom_call.1} parent=5 // pred_fallthru
      _
    %p2996 = scmp.le.s32.totalorder 2, %s13
    // Predicated region
    $region53: #{tpu_custom_call.1} parent=5 // pred_check
      %p2997 = pneg %p2996
    $region54: #{tpu_custom_call.1} parent=5 // pred_check_branch
      %2999 = sbr.rel (%p2997) target = $region56
    $region55: #{tpu_custom_call.1} parent=5 // pred_region
      %s3000 = ssub.s32 %s13, 2
      // Predicated region
      $region57: #{tpu_custom_call.1} parent=55 // pred_check
        %p3001 = pneg %p194
      $region58: #{tpu_custom_call.1} parent=55 // pred_check_branch
        %3003 = sbr.rel (%p3001) target = $region60
      $region59: #{tpu_custom_call.1} parent=55 // pred_region
        %s3004 = smul.u32 4, %s19
        %p3005 = scmp.lt.s32.totalorder %s3004, 7
        %s3006 = scalar_select %p3005, %s3004, 7
        %s3007 = smul.addr %s3006, 8
        %s3008 = scalar_lea.vmem %s7, %s3007
      $region60: #{tpu_custom_call.1} parent=55 // pred_fallthru
        _
    $region56: #{tpu_custom_call.1} parent=5 // pred_fallthru
      _
  $region6: #{tpu_custom_call.1} parent=0 // loop_footer
    %s17 = sadd.s32 1, %s13
  $region7: #{tpu_custom_call.1} parent=0 // loop_footer_branch
    %12 = sbr.rel target = $region3
  $region8: #{tpu_custom_call.1} parent=0 // loop_exit
    _

</llo_original>
